<compile_context>
chip_gen: v7x
topology: tpu7x:2x2x1
jax: 0.10.0
libtpu: 0.0.40
codegen_flags: <defaults>
</compile_context>

<pallas_src>
import jax
import jax.numpy as jnp
from jax.experimental import pallas as pl
from jax.experimental.pallas import tpu as pltpu

NUM_LAYERS = 5
NUM_FEATURES = 64


# ----------------------------- Pallas kernel --------------------------------

def _make_stack_kernel(MP, F, NP, row_stride, margin, n_layers):
    """One network layer per grid step (grid = (batch, n_layers)).

    MP         : flattened padded-spatial rows per image ((OH+2)*(OW+2)).
    F          : hidden feature channels.
    NP         : lane-dense accumulator width (multiple of 128, >= F).
    row_stride : OW + 2 (flat-row stride of one padded image row).
    margin     : scratch row offset of the activation (mult. of 8, > row_stride).
    """

    def kernel(mask_ref, taps_ref, w_ref, b_ref, res_ref, out_ref, scr_ref):
        l = pl.program_id(1)

        def conv9(tap_fn):
            # 3x3 conv as 9 shifted matmuls, f32 accumulation on the MXU.
            acc = jnp.zeros((MP, NP), jnp.float32)
            for ky in range(3):
                for kx in range(3):
                    t = ky * 3 + kx
                    shift = (ky - 1) * row_stride + (kx - 1)
                    acc = acc + jnp.dot(tap_fn(t, shift), w_ref[0, t],
                                        preferred_element_type=jnp.float32)
            return acc + b_ref[0]

        def scr_tap(t, shift):
            start = margin + shift
            return scr_ref[start:start + MP, :].astype(jnp.bfloat16)

        def write_act(acc):
            # mask kills the padded rows -> zero border stays intact in VMEM.
            act = jnp.maximum(acc, 0.0)[:, :F] * mask_ref[...]
            scr_ref[margin:margin + MP, :] = act

        @pl.when(l == 0)
        def _():
            # init conv (stride 2); its taps are pre-gathered, channel-padded.
            scr_ref[...] = jnp.zeros_like(scr_ref)
            write_act(conv9(lambda t, shift: taps_ref[0, t]))

        @pl.when(jnp.logical_and(l > 0, l < n_layers - 1))
        def _():
            # inner conv / stride-1 deconv layers (deconv == flipped conv).
            write_act(conv9(scr_tap))

        @pl.when(l == n_layers - 1)
        def _():
            # final stride-2 transposed conv (4 sub-pixel phases packed along
            # lanes) + residual + ReLU; single lane-dense (MP, NP) store.
            acc = conv9(scr_tap)
            out_ref[0] = jnp.maximum(acc + res_ref[0], 0.0)

    return kernel


# ------------------------------ JAX wrapper ---------------------------------

def rednet1_forward(x_nchw, params, num_layers=NUM_LAYERS,
                    num_features=NUM_FEATURES):
    F = num_features
    B, C, H, W = x_nchw.shape
    assert C == 3 and H % 2 == 0 and W % 2 == 0
    OH, OW = H // 2, W // 2
    RS = OW + 2                                   # flat row stride (padded grid)
    MP = (OH + 2) * (OW + 2)                      # flattened padded rows / image
    NP = max(128, ((F + 127) // 128) * 128)       # lane-dense accumulator width
    CP = NP // 4                                  # per-phase slot of final layer
    L = 2 * num_layers                            # init + inner layers + final
    MARGIN = ((RS + 1 + 7) // 8) * 8
    ROWS = ((MARGIN + MP + RS + 1 + 7) // 8) * 8

    x = jnp.transpose(x_nchw, (0, 2, 3, 1)).astype(jnp.float32)    # NHWC

    # ---- init-conv taps: x_pad[2m+ky, 2n+kx, :], channel-padded 3->F,
    #      laid out on the padded (OH+2, OW+2) row grid (pad rows zero).
    xp = jnp.pad(x, ((0, 0), (1, 1), (1, 1), (0, 0)))
    taps = []
    for ky in range(3):
        for kx in range(3):
            s = xp[:, ky:ky + 2 * OH:2, kx:kx + 2 * OW:2, :]        # (B,OH,OW,3)
            s = jnp.pad(s, ((0, 0), (1, 1), (1, 1), (0, F - C)))
            taps.append(s.reshape(B, MP, F))
    init_taps = jnp.stack(taps, axis=1).astype(jnp.bfloat16)        # (B,9,MP,F)

    # ---- per-layer weight / bias stacks: 9 taps of (F, NP) each -----------
    w_stack = jnp.zeros((L, 9, F, NP), jnp.float32)
    b_stack = jnp.zeros((L, 1, NP), jnp.float32)

    # layer 0: Conv2d(3, F, k=3, s=2, p=1), weight OIHW (F,3,3,3)
    wi = jnp.transpose(params['init_w'], (2, 3, 1, 0)).reshape(9, C, F)
    w_stack = w_stack.at[0, :, :C, :F].set(wi)
    b_stack = b_stack.at[0, 0, :F].set(params['init_b'])

    # layers 1..num_layers-1: Conv2d(F, F, k=3, p=1)
    for i in range(num_layers - 1):
        wc = jnp.transpose(params['conv_w'][i], (2, 3, 1, 0)).reshape(9, F, F)
        w_stack = w_stack.at[1 + i, :, :, :F].set(wc)
        b_stack = b_stack.at[1 + i, 0, :F].set(params['conv_b'][i])

    # layers num_layers..2*num_layers-2: ConvTranspose2d(F,F,k=3,p=1)
    # == same-size conv with channel-swapped, spatially flipped kernel.
    for i in range(num_layers - 1):
        w_eq = jnp.transpose(params['deconv_w'][i], (1, 0, 2, 3))[:, :, ::-1, ::-1]
        wd = jnp.transpose(w_eq, (2, 3, 1, 0)).reshape(9, F, F)
        w_stack = w_stack.at[num_layers + i, :, :, :F].set(wd)
        b_stack = b_stack.at[num_layers + i, 0, :F].set(params['deconv_b'][i])

    # final layer: ConvTranspose2d(F, 3, k=3, s=2, p=1, output_padding=1),
    # decomposed into 4 sub-pixel phases packed along lanes:
    #   y[2m+a, 2n+b, c]  ->  output column (2a+b)*CP + c.
    # Transposed-conv tap (ky,kx) reads input offset (ky==0, kx==0) and
    # writes phase (a,b) = (ky!=1, kx!=1).
    wf = params['final_w']                                          # (F,3,3,3)
    wf_taps = jnp.zeros((9, F, NP), jnp.float32)
    for ky in range(3):
        ty = 2 if ky == 0 else 1
        a = 0 if ky == 1 else 1
        for kx in range(3):
            tx = 2 if kx == 0 else 1
            b_ph = 0 if kx == 1 else 1
            t = ty * 3 + tx
            p = a * 2 + b_ph
            wf_taps = wf_taps.at[t, :, p * CP:p * CP + C].add(wf[:, :, ky, kx])
    w_stack = w_stack.at[L - 1].set(wf_taps)
    b_stack = b_stack.at[L - 1, 0, :].set(
        jnp.tile(jnp.pad(params['final_b'], (0, CP - C)), 4))

    # ---- residual (network input) packed in the same phase layout ---------
    res_ph = []
    for a in range(2):
        for b_ph in range(2):
            r = x[:, a::2, b_ph::2, :]                              # (B,OH,OW,3)
            res_ph.append(jnp.pad(r, ((0, 0), (0, 0), (0, 0), (0, CP - C))))
    res = jnp.concatenate(res_ph, axis=-1)                          # (B,OH,OW,NP)
    res = jnp.pad(res, ((0, 0), (1, 1), (1, 1), (0, 0))).reshape(B, MP, NP)

    # ---- interior-row mask (keeps the zero border of the VMEM scratch) ----
    mask = jnp.zeros((OH + 2, OW + 2), jnp.float32)
    mask = mask.at[1:OH + 1, 1:OW + 1].set(1.0).reshape(MP, 1)

    kernel = _make_stack_kernel(MP, F, NP, RS, MARGIN, L)
    out = pl.pallas_call(
        kernel,
        out_shape=jax.ShapeDtypeStruct((B, MP, NP), jnp.float32),
        grid_spec=pltpu.PrefetchScalarGridSpec(
            num_scalar_prefetch=0,
            grid=(B, L),
            in_specs=[
                pl.BlockSpec((MP, 1), lambda b, l: (0, 0)),              # mask
                pl.BlockSpec((1, 9, MP, F), lambda b, l: (b, 0, 0, 0)),  # init taps
                pl.BlockSpec((1, 9, F, NP), lambda b, l: (l, 0, 0, 0)),  # weights
                pl.BlockSpec((1, 1, NP), lambda b, l: (l, 0, 0)),        # bias
                pl.BlockSpec((1, MP, NP), lambda b, l: (b, 0, 0)),       # residual
            ],
            out_specs=pl.BlockSpec((1, MP, NP), lambda b, l: (b, 0, 0)),
            scratch_shapes=[pltpu.VMEM((ROWS, F), jnp.float32)],
        ),
        compiler_params=pltpu.CompilerParams(
            dimension_semantics=("parallel", "arbitrary"),
            vmem_limit_bytes=32 * 1024 * 1024,
        ),
    )(mask, init_taps, w_stack.astype(jnp.bfloat16), b_stack, res)

    # unpack the 4 sub-pixel phases into the (H, W) grid, drop padded rows.
    y = out.reshape(B, OH + 2, OW + 2, 2, 2, CP)[:, 1:OH + 1, 1:OW + 1, :, :, :C]
    y = jnp.transpose(y, (0, 1, 3, 2, 4, 5)).reshape(B, H, W, C)
    return jnp.transpose(y, (0, 3, 1, 2))                            # NCHW


# -------------------- pure-JAX reference (sanity check) ---------------------

def rednet1_reference(x, params, num_layers=NUM_LAYERS):
    dn = ('NCHW', 'OIHW', 'NCHW')

    def conv(x, w, b, stride=1, pad=1):
        y = jax.lax.conv_general_dilated(x, w, (stride, stride),
                                         [(pad, pad)] * 2,
                                         dimension_numbers=dn)
        return y + b.reshape(1, -1, 1, 1)

    def deconv(x, w, b, stride=1, pad=1, op=0):
        wc = jnp.transpose(w, (1, 0, 2, 3))[:, :, ::-1, ::-1]
        y = jax.lax.conv_general_dilated(x, wc, (1, 1),
                                         [(2 - pad, 2 - pad + op)] * 2,
                                         lhs_dilation=(stride, stride),
                                         dimension_numbers=dn)
        return y + b.reshape(1, -1, 1, 1)

    out = jax.nn.relu(conv(x, params['init_w'], params['init_b'], stride=2))
    for i in range(num_layers - 1):
        out = jax.nn.relu(conv(out, params['conv_w'][i], params['conv_b'][i]))
    for i in range(num_layers - 1):
        out = jax.nn.relu(deconv(out, params['deconv_w'][i],
                                 params['deconv_b'][i]))
    out = deconv(out, params['final_w'], params['final_b'],
                 stride=2, pad=1, op=1)
    return jax.nn.relu(out + x)


# ------------------------------ params init ---------------------------------

def init_params(key, num_layers=NUM_LAYERS, num_features=NUM_FEATURES):
    F = num_features
    nk = 4 + 4 * (num_layers - 1)
    keys = list(jax.random.split(key, nk))
    nrm = lambda k, shape, s: s * jax.random.normal(k, shape, jnp.float32)
    params = {
        'init_w': nrm(keys.pop(), (F, 3, 3, 3), 0.02),     # Conv2d OIHW
        'init_b': nrm(keys.pop(), (F,), 0.01),
        'conv_w': [], 'conv_b': [],
        'deconv_w': [], 'deconv_b': [],
        'final_w': nrm(keys.pop(), (F, 3, 3, 3), 0.02),    # ConvT  IOHW
        'final_b': nrm(keys.pop(), (3,), 0.01),
    }
    for _ in range(num_layers - 1):
        params['conv_w'].append(nrm(keys.pop(), (F, F, 3, 3), 0.02))
        params['conv_b'].append(nrm(keys.pop(), (F,), 0.01))
    for _ in range(num_layers - 1):
        params['deconv_w'].append(nrm(keys.pop(), (F, F, 3, 3), 0.02))
        params['deconv_b'].append(nrm(keys.pop(), (F,), 0.01))
    return params


# --------------------------------- main --------------------------------------

if __name__ == "__main__":
    key = jax.random.PRNGKey(0)
    k_x, k_p = jax.random.split(key)
    x = jax.random.normal(k_x, (2, 3, 16, 16), jnp.float32)   # NCHW, like torch
    params = init_params(k_p)

    fwd = jax.jit(lambda xx: rednet1_forward(xx, params))
    out = jax.block_until_ready(fwd(x))
    assert out.shape == x.shape, out.shape

    ref = jax.block_until_ready(
        jax.jit(lambda xx: rednet1_reference(xx, params))(x))
    max_err = float(jnp.max(jnp.abs(out - ref)))
    assert jnp.allclose(out, ref, rtol=2e-2, atol=2e-2), max_err

    print("KERNEL_OK")
</pallas_src>

<mosaic_0001>
module attributes {stable_mosaic.version = 11 : i64} {
  func.func @kernel(%arg0: i32, %arg1: i32, %arg2: memref<100x1xf32, #tpu.memory_space<vmem>>, %arg3: memref<1x9x100x64xbf16, #tpu.memory_space<vmem>>, %arg4: memref<1x9x64x128xbf16, #tpu.memory_space<vmem>>, %arg5: memref<1x1x128xf32, #tpu.memory_space<vmem>>, %arg6: memref<1x100x128xf32, #tpu.memory_space<vmem>>, %arg7: memref<1x100x128xf32, #tpu.memory_space<vmem>>, %arg8: memref<128x64xf32, #tpu.memory_space<vmem>>) attributes {dimension_semantics = [#tpu.dimension_semantics<parallel>, #tpu.dimension_semantics<arbitrary>], iteration_bounds = array<i64: 2, 10>, scalar_prefetch = 0 : i64, scratch_operands = 1 : i64, tpu.core_type = #tpu.core_type<tc>, window_params = [{pipeline_mode = #tpu.pipeline_mode<synchronous>, transform_indices = @transform_0, window_bounds = array<i64: 100, 1>}, {transform_indices = @transform_1, window_bounds = array<i64: 1, 9, 100, 64>}, {transform_indices = @transform_2, window_bounds = array<i64: 1, 9, 64, 128>}, {transform_indices = @transform_3, window_bounds = array<i64: 1, 1, 128>}, {transform_indices = @transform_4, window_bounds = array<i64: 1, 100, 128>}, {transform_indices = @transform_5, window_bounds = array<i64: 1, 100, 128>}]} {
    %c0_i32 = arith.constant 0 : i32
    %0 = arith.cmpi eq, %arg1, %c0_i32 : i32
    %1 = arith.extui %0 : i1 to i32
    %c0_i32_0 = arith.constant 0 : i32
    %2 = arith.cmpi ne, %1, %c0_i32_0 : i32
    scf.if %2 {
      %cst = arith.constant 0.000000e+00 : f32
      %11 = vector.broadcast %cst : f32 to vector<128x64xf32>
      %c0 = arith.constant 0 : index
      %c0_5 = arith.constant 0 : index
      %12 = vector.load %arg8[%c0, %c0_5] : memref<128x64xf32, #tpu.memory_space<vmem>>, vector<128x64xf32>
      tpu.vector_store %arg8[%c0, %c0_5], %11 {strides = array<i32>} : memref<128x64xf32, #tpu.memory_space<vmem>>, vector<128x64xf32>,
      %cst_6 = arith.constant 0.000000e+00 : f32
      %13 = vector.broadcast %cst_6 : f32 to vector<100x128xf32>
      %c0_7 = arith.constant 0 : index
      %c0_8 = arith.constant 0 : index
      %c0_9 = arith.constant 0 : index
      %c0_10 = arith.constant 0 : index
      %14 = vector.load %arg3[%c0_7, %c0_8, %c0_9, %c0_10] : memref<1x9x100x64xbf16, #tpu.memory_space<vmem>>, vector<1x1x100x64xbf16>
      %15 = vector.shape_cast %14 : vector<1x1x100x64xbf16> to vector<100x64xbf16>
      %c0_11 = arith.constant 0 : index
      %c0_12 = arith.constant 0 : index
      %c0_13 = arith.constant 0 : index
      %c0_14 = arith.constant 0 : index
      %16 = vector.load %arg4[%c0_11, %c0_12, %c0_13, %c0_14] : memref<1x9x64x128xbf16, #tpu.memory_space<vmem>>, vector<1x1x64x128xbf16>
      %17 = vector.shape_cast %16 : vector<1x1x64x128xbf16> to vector<64x128xbf16>
      %cst_15 = arith.constant dense<0.000000e+00> : vector<100x128xf32>
      %18 = tpu.matmul %15, %17, %cst_15 {dimension_numbers = #tpu.dot_dimension_numbers<[1], [0], [0], [1], [0, 0, 1, 1], [], []>} : vector<100x64xbf16>, vector<64x128xbf16>, vector<100x128xf32> -> vector<100x128xf32>
      %19 = arith.addf %13, %18 : vector<100x128xf32>
      %c0_16 = arith.constant 0 : index
      %c1 = arith.constant 1 : index
      %c0_17 = arith.constant 0 : index
      %c0_18 = arith.constant 0 : index
      %20 = vector.load %arg3[%c0_16, %c1, %c0_17, %c0_18] : memref<1x9x100x64xbf16, #tpu.memory_space<vmem>>, vector<1x1x100x64xbf16>
      %21 = vector.shape_cast %20 : vector<1x1x100x64xbf16> to vector<100x64xbf16>
      %c0_19 = arith.constant 0 : index
      %c1_20 = arith.constant 1 : index
      %c0_21 = arith.constant 0 : index
      %c0_22 = arith.constant 0 : index
      %22 = vector.load %arg4[%c0_19, %c1_20, %c0_21, %c0_22] : memref<1x9x64x128xbf16, #tpu.memory_space<vmem>>, vector<1x1x64x128xbf16>
      %23 = vector.shape_cast %22 : vector<1x1x64x128xbf16> to vector<64x128xbf16>
      %cst_23 = arith.constant dense<0.000000e+00> : vector<100x128xf32>
      %24 = tpu.matmul %21, %23, %cst_23 {dimension_numbers = #tpu.dot_dimension_numbers<[1], [0], [0], [1], [0, 0, 1, 1], [], []>} : vector<100x64xbf16>, vector<64x128xbf16>, vector<100x128xf32> -> vector<100x128xf32>
      %25 = arith.addf %19, %24 : vector<100x128xf32>
      %c0_24 = arith.constant 0 : index
      %c2 = arith.constant 2 : index
      %c0_25 = arith.constant 0 : index
      %c0_26 = arith.constant 0 : index
      %26 = vector.load %arg3[%c0_24, %c2, %c0_25, %c0_26] : memref<1x9x100x64xbf16, #tpu.memory_space<vmem>>, vector<1x1x100x64xbf16>
      %27 = vector.shape_cast %26 : vector<1x1x100x64xbf16> to vector<100x64xbf16>
      %c0_27 = arith.constant 0 : index
      %c2_28 = arith.constant 2 : index
      %c0_29 = arith.constant 0 : index
      %c0_30 = arith.constant 0 : index
      %28 = vector.load %arg4[%c0_27, %c2_28, %c0_29, %c0_30] : memref<1x9x64x128xbf16, #tpu.memory_space<vmem>>, vector<1x1x64x128xbf16>
      %29 = vector.shape_cast %28 : vector<1x1x64x128xbf16> to vector<64x128xbf16>
      %cst_31 = arith.constant dense<0.000000e+00> : vector<100x128xf32>
      %30 = tpu.matmul %27, %29, %cst_31 {dimension_numbers = #tpu.dot_dimension_numbers<[1], [0], [0], [1], [0, 0, 1, 1], [], []>} : vector<100x64xbf16>, vector<64x128xbf16>, vector<100x128xf32> -> vector<100x128xf32>
      %31 = arith.addf %25, %30 : vector<100x128xf32>
      %c0_32 = arith.constant 0 : index
      %c3 = arith.constant 3 : index
      %c0_33 = arith.constant 0 : index
      %c0_34 = arith.constant 0 : index
      %32 = vector.load %arg3[%c0_32, %c3, %c0_33, %c0_34] : memref<1x9x100x64xbf16, #tpu.memory_space<vmem>>, vector<1x1x100x64xbf16>
      %33 = vector.shape_cast %32 : vector<1x1x100x64xbf16> to vector<100x64xbf16>
      %c0_35 = arith.constant 0 : index
      %c3_36 = arith.constant 3 : index
      %c0_37 = arith.constant 0 : index
      %c0_38 = arith.constant 0 : index
      %34 = vector.load %arg4[%c0_35, %c3_36, %c0_37, %c0_38] : memref<1x9x64x128xbf16, #tpu.memory_space<vmem>>, vector<1x1x64x128xbf16>
      %35 = vector.shape_cast %34 : vector<1x1x64x128xbf16> to vector<64x128xbf16>
      %cst_39 = arith.constant dense<0.000000e+00> : vector<100x128xf32>
      %36 = tpu.matmul %33, %35, %cst_39 {dimension_numbers = #tpu.dot_dimension_numbers<[1], [0], [0], [1], [0, 0, 1, 1], [], []>} : vector<100x64xbf16>, vector<64x128xbf16>, vector<100x128xf32> -> vector<100x128xf32>
      %37 = arith.addf %31, %36 : vector<100x128xf32>
      %c0_40 = arith.constant 0 : index
      %c4 = arith.constant 4 : index
      %c0_41 = arith.constant 0 : index
      %c0_42 = arith.constant 0 : index
      %38 = vector.load %arg3[%c0_40, %c4, %c0_41, %c0_42] : memref<1x9x100x64xbf16, #tpu.memory_space<vmem>>, vector<1x1x100x64xbf16>
      %39 = vector.shape_cast %38 : vector<1x1x100x64xbf16> to vector<100x64xbf16>
      %c0_43 = arith.constant 0 : index
      %c4_44 = arith.constant 4 : index
      %c0_45 = arith.constant 0 : index
      %c0_46 = arith.constant 0 : index
      %40 = vector.load %arg4[%c0_43, %c4_44, %c0_45, %c0_46] : memref<1x9x64x128xbf16, #tpu.memory_space<vmem>>, vector<1x1x64x128xbf16>
      %41 = vector.shape_cast %40 : vector<1x1x64x128xbf16> to vector<64x128xbf16>
      %cst_47 = arith.constant dense<0.000000e+00> : vector<100x128xf32>
      %42 = tpu.matmul %39, %41, %cst_47 {dimension_numbers = #tpu.dot_dimension_numbers<[1], [0], [0], [1], [0, 0, 1, 1], [], []>} : vector<100x64xbf16>, vector<64x128xbf16>, vector<100x128xf32> -> vector<100x128xf32>
      %43 = arith.addf %37, %42 : vector<100x128xf32>
      %c0_48 = arith.constant 0 : index
      %c5 = arith.constant 5 : index
      %c0_49 = arith.constant 0 : index
      %c0_50 = arith.constant 0 : index
      %44 = vector.load %arg3[%c0_48, %c5, %c0_49, %c0_50] : memref<1x9x100x64xbf16, #tpu.memory_space<vmem>>, vector<1x1x100x64xbf16>
      %45 = vector.shape_cast %44 : vector<1x1x100x64xbf16> to vector<100x64xbf16>
      %c0_51 = arith.constant 0 : index
      %c5_52 = arith.constant 5 : index
      %c0_53 = arith.constant 0 : index
      %c0_54 = arith.constant 0 : index
      %46 = vector.load %arg4[%c0_51, %c5_52, %c0_53, %c0_54] : memref<1x9x64x128xbf16, #tpu.memory_space<vmem>>, vector<1x1x64x128xbf16>
      %47 = vector.shape_cast %46 : vector<1x1x64x128xbf16> to vector<64x128xbf16>
      %cst_55 = arith.constant dense<0.000000e+00> : vector<100x128xf32>
      %48 = tpu.matmul %45, %47, %cst_55 {dimension_numbers = #tpu.dot_dimension_numbers<[1], [0], [0], [1], [0, 0, 1, 1], [], []>} : vector<100x64xbf16>, vector<64x128xbf16>, vector<100x128xf32> -> vector<100x128xf32>
      %49 = arith.addf %43, %48 : vector<100x128xf32>
      %c0_56 = arith.constant 0 : index
      %c6 = arith.constant 6 : index
      %c0_57 = arith.constant 0 : index
      %c0_58 = arith.constant 0 : index
      %50 = vector.load %arg3[%c0_56, %c6, %c0_57, %c0_58] : memref<1x9x100x64xbf16, #tpu.memory_space<vmem>>, vector<1x1x100x64xbf16>
      %51 = vector.shape_cast %50 : vector<1x1x100x64xbf16> to vector<100x64xbf16>
      %c0_59 = arith.constant 0 : index
      %c6_60 = arith.constant 6 : index
      %c0_61 = arith.constant 0 : index
      %c0_62 = arith.constant 0 : index
      %52 = vector.load %arg4[%c0_59, %c6_60, %c0_61, %c0_62] : memref<1x9x64x128xbf16, #tpu.memory_space<vmem>>, vector<1x1x64x128xbf16>
      %53 = vector.shape_cast %52 : vector<1x1x64x128xbf16> to vector<64x128xbf16>
      %cst_63 = arith.constant dense<0.000000e+00> : vector<100x128xf32>
      %54 = tpu.matmul %51, %53, %cst_63 {dimension_numbers = #tpu.dot_dimension_numbers<[1], [0], [0], [1], [0, 0, 1, 1], [], []>} : vector<100x64xbf16>, vector<64x128xbf16>, vector<100x128xf32> -> vector<100x128xf32>
      %55 = arith.addf %49, %54 : vector<100x128xf32>
      %c0_64 = arith.constant 0 : index
      %c7 = arith.constant 7 : index
      %c0_65 = arith.constant 0 : index
      %c0_66 = arith.constant 0 : index
      %56 = vector.load %arg3[%c0_64, %c7, %c0_65, %c0_66] : memref<1x9x100x64xbf16, #tpu.memory_space<vmem>>, vector<1x1x100x64xbf16>
      %57 = vector.shape_cast %56 : vector<1x1x100x64xbf16> to vector<100x64xbf16>
      %c0_67 = arith.constant 0 : index
      %c7_68 = arith.constant 7 : index
      %c0_69 = arith.constant 0 : index
      %c0_70 = arith.constant 0 : index
      %58 = vector.load %arg4[%c0_67, %c7_68, %c0_69, %c0_70] : memref<1x9x64x128xbf16, #tpu.memory_space<vmem>>, vector<1x1x64x128xbf16>
      %59 = vector.shape_cast %58 : vector<1x1x64x128xbf16> to vector<64x128xbf16>
      %cst_71 = arith.constant dense<0.000000e+00> : vector<100x128xf32>
      %60 = tpu.matmul %57, %59, %cst_71 {dimension_numbers = #tpu.dot_dimension_numbers<[1], [0], [0], [1], [0, 0, 1, 1], [], []>} : vector<100x64xbf16>, vector<64x128xbf16>, vector<100x128xf32> -> vector<100x128xf32>
      %61 = arith.addf %55, %60 : vector<100x128xf32>
      %c0_72 = arith.constant 0 : index
      %c8 = arith.constant 8 : index
      %c0_73 = arith.constant 0 : index
      %c0_74 = arith.constant 0 : index
      %62 = vector.load %arg3[%c0_72, %c8, %c0_73, %c0_74] : memref<1x9x100x64xbf16, #tpu.memory_space<vmem>>, vector<1x1x100x64xbf16>
      %63 = vector.shape_cast %62 : vector<1x1x100x64xbf16> to vector<100x64xbf16>
      %c0_75 = arith.constant 0 : index
      %c8_76 = arith.constant 8 : index
      %c0_77 = arith.constant 0 : index
      %c0_78 = arith.constant 0 : index
      %64 = vector.load %arg4[%c0_75, %c8_76, %c0_77, %c0_78] : memref<1x9x64x128xbf16, #tpu.memory_space<vmem>>, vector<1x1x64x128xbf16>
      %65 = vector.shape_cast %64 : vector<1x1x64x128xbf16> to vector<64x128xbf16>
      %cst_79 = arith.constant dense<0.000000e+00> : vector<100x128xf32>
      %66 = tpu.matmul %63, %65, %cst_79 {dimension_numbers = #tpu.dot_dimension_numbers<[1], [0], [0], [1], [0, 0, 1, 1], [], []>} : vector<100x64xbf16>, vector<64x128xbf16>, vector<100x128xf32> -> vector<100x128xf32>
      %67 = arith.addf %61, %66 : vector<100x128xf32>
      %c0_80 = arith.constant 0 : index
      %c0_81 = arith.constant 0 : index
      %c0_82 = arith.constant 0 : index
      %68 = vector.load %arg5[%c0_80, %c0_81, %c0_82] : memref<1x1x128xf32, #tpu.memory_space<vmem>>, vector<1x1x128xf32>
      %69 = vector.shape_cast %68 : vector<1x1x128xf32> to vector<1x128xf32>
      %70 = vector.broadcast %69 : vector<1x128xf32> to vector<100x128xf32>
      %71 = arith.addf %67, %70 : vector<100x128xf32>
      %cst_83 = arith.constant 0.000000e+00 : f32
      %72 = vector.broadcast %cst_83 : f32 to vector<100x128xf32>
      %73 = arith.maximumf %71, %72 : vector<100x128xf32>
      %74 = vector.extract_strided_slice %73 {offsets = [0, 0], sizes = [100, 64], strides = [1, 1]} : vector<100x128xf32> to vector<100x64xf32>
      %c0_84 = arith.constant 0 : index
      %c0_85 = arith.constant 0 : index
      %75 = vector.load %arg2[%c0_84, %c0_85] : memref<100x1xf32, #tpu.memory_space<vmem>>, vector<100x1xf32>
      %76 = vector.broadcast %75 : vector<100x1xf32> to vector<100x64xf32>
      %77 = arith.mulf %74, %76 : vector<100x64xf32>
      %c16 = arith.constant 16 : index
      %c0_86 = arith.constant 0 : index
      %78 = vector.load %arg8[%c16, %c0_86] : memref<128x64xf32, #tpu.memory_space<vmem>>, vector<100x64xf32>
      tpu.vector_store %arg8[%c16, %c0_86], %77 {strides = array<i32>} : memref<128x64xf32, #tpu.memory_space<vmem>>, vector<100x64xf32>,
    } else {
    }
    %c0_i32_1 = arith.constant 0 : i32
    %3 = arith.cmpi sgt, %arg1, %c0_i32_1 : i32
    %c9_i32 = arith.constant 9 : i32
    %4 = arith.cmpi slt, %arg1, %c9_i32 : i32
    %5 = arith.andi %3, %4 : i1
    %6 = arith.extui %5 : i1 to i32
    %c0_i32_2 = arith.constant 0 : i32
    %7 = arith.cmpi ne, %6, %c0_i32_2 : i32
    scf.if %7 {
      %cst = arith.constant 0.000000e+00 : f32
      %11 = vector.broadcast %cst : f32 to vector<100x128xf32>
      %c5 = arith.constant 5 : index
      %c0 = arith.constant 0 : index
      %12 = vector.load %arg8[%c5, %c0] : memref<128x64xf32, #tpu.memory_space<vmem>>, vector<100x64xf32>
      %13 = arith.truncf %12 : vector<100x64xf32> to vector<100x64xbf16>
      %c0_5 = arith.constant 0 : index
      %c0_6 = arith.constant 0 : index
      %c0_7 = arith.constant 0 : index
      %c0_8 = arith.constant 0 : index
      %14 = vector.load %arg4[%c0_5, %c0_6, %c0_7, %c0_8] : memref<1x9x64x128xbf16, #tpu.memory_space<vmem>>, vector<1x1x64x128xbf16>
      %15 = vector.shape_cast %14 : vector<1x1x64x128xbf16> to vector<64x128xbf16>
      %cst_9 = arith.constant dense<0.000000e+00> : vector<100x128xf32>
      %16 = tpu.matmul %13, %15, %cst_9 {dimension_numbers = #tpu.dot_dimension_numbers<[1], [0], [0], [1], [0, 0, 1, 1], [], []>} : vector<100x64xbf16>, vector<64x128xbf16>, vector<100x128xf32> -> vector<100x128xf32>
      %17 = arith.addf %11, %16 : vector<100x128xf32>
      %c6 = arith.constant 6 : index
      %c0_10 = arith.constant 0 : index
      %18 = vector.load %arg8[%c6, %c0_10] : memref<128x64xf32, #tpu.memory_space<vmem>>, vector<100x64xf32>
      %19 = arith.truncf %18 : vector<100x64xf32> to vector<100x64xbf16>
      %c0_11 = arith.constant 0 : index
      %c1 = arith.constant 1 : index
      %c0_12 = arith.constant 0 : index
      %c0_13 = arith.constant 0 : index
      %20 = vector.load %arg4[%c0_11, %c1, %c0_12, %c0_13] : memref<1x9x64x128xbf16, #tpu.memory_space<vmem>>, vector<1x1x64x128xbf16>
      %21 = vector.shape_cast %20 : vector<1x1x64x128xbf16> to vector<64x128xbf16>
      %cst_14 = arith.constant dense<0.000000e+00> : vector<100x128xf32>
      %22 = tpu.matmul %19, %21, %cst_14 {dimension_numbers = #tpu.dot_dimension_numbers<[1], [0], [0], [1], [0, 0, 1, 1], [], []>} : vector<100x64xbf16>, vector<64x128xbf16>, vector<100x128xf32> -> vector<100x128xf32>
      %23 = arith.addf %17, %22 : vector<100x128xf32>
      %c7 = arith.constant 7 : index
      %c0_15 = arith.constant 0 : index
      %24 = vector.load %arg8[%c7, %c0_15] : memref<128x64xf32, #tpu.memory_space<vmem>>, vector<100x64xf32>
      %25 = arith.truncf %24 : vector<100x64xf32> to vector<100x64xbf16>
      %c0_16 = arith.constant 0 : index
      %c2 = arith.constant 2 : index
      %c0_17 = arith.constant 0 : index
      %c0_18 = arith.constant 0 : index
      %26 = vector.load %arg4[%c0_16, %c2, %c0_17, %c0_18] : memref<1x9x64x128xbf16, #tpu.memory_space<vmem>>, vector<1x1x64x128xbf16>
      %27 = vector.shape_cast %26 : vector<1x1x64x128xbf16> to vector<64x128xbf16>
      %cst_19 = arith.constant dense<0.000000e+00> : vector<100x128xf32>
      %28 = tpu.matmul %25, %27, %cst_19 {dimension_numbers = #tpu.dot_dimension_numbers<[1], [0], [0], [1], [0, 0, 1, 1], [], []>} : vector<100x64xbf16>, vector<64x128xbf16>, vector<100x128xf32> -> vector<100x128xf32>
      %29 = arith.addf %23, %28 : vector<100x128xf32>
      %c15 = arith.constant 15 : index
      %c0_20 = arith.constant 0 : index
      %30 = vector.load %arg8[%c15, %c0_20] : memref<128x64xf32, #tpu.memory_space<vmem>>, vector<100x64xf32>
      %31 = arith.truncf %30 : vector<100x64xf32> to vector<100x64xbf16>
      %c0_21 = arith.constant 0 : index
      %c3 = arith.constant 3 : index
      %c0_22 = arith.constant 0 : index
      %c0_23 = arith.constant 0 : index
      %32 = vector.load %arg4[%c0_21, %c3, %c0_22, %c0_23] : memref<1x9x64x128xbf16, #tpu.memory_space<vmem>>, vector<1x1x64x128xbf16>
      %33 = vector.shape_cast %32 : vector<1x1x64x128xbf16> to vector<64x128xbf16>
      %cst_24 = arith.constant dense<0.000000e+00> : vector<100x128xf32>
      %34 = tpu.matmul %31, %33, %cst_24 {dimension_numbers = #tpu.dot_dimension_numbers<[1], [0], [0], [1], [0, 0, 1, 1], [], []>} : vector<100x64xbf16>, vector<64x128xbf16>, vector<100x128xf32> -> vector<100x128xf32>
      %35 = arith.addf %29, %34 : vector<100x128xf32>
      %c16 = arith.constant 16 : index
      %c0_25 = arith.constant 0 : index
      %36 = vector.load %arg8[%c16, %c0_25] : memref<128x64xf32, #tpu.memory_space<vmem>>, vector<100x64xf32>
      %37 = arith.truncf %36 : vector<100x64xf32> to vector<100x64xbf16>
      %c0_26 = arith.constant 0 : index
      %c4 = arith.constant 4 : index
      %c0_27 = arith.constant 0 : index
      %c0_28 = arith.constant 0 : index
      %38 = vector.load %arg4[%c0_26, %c4, %c0_27, %c0_28] : memref<1x9x64x128xbf16, #tpu.memory_space<vmem>>, vector<1x1x64x128xbf16>
      %39 = vector.shape_cast %38 : vector<1x1x64x128xbf16> to vector<64x128xbf16>
      %cst_29 = arith.constant dense<0.000000e+00> : vector<100x128xf32>
      %40 = tpu.matmul %37, %39, %cst_29 {dimension_numbers = #tpu.dot_dimension_numbers<[1], [0], [0], [1], [0, 0, 1, 1], [], []>} : vector<100x64xbf16>, vector<64x128xbf16>, vector<100x128xf32> -> vector<100x128xf32>
      %41 = arith.addf %35, %40 : vector<100x128xf32>
      %c17 = arith.constant 17 : index
      %c0_30 = arith.constant 0 : index
      %42 = vector.load %arg8[%c17, %c0_30] : memref<128x64xf32, #tpu.memory_space<vmem>>, vector<100x64xf32>
      %43 = arith.truncf %42 : vector<100x64xf32> to vector<100x64xbf16>
      %c0_31 = arith.constant 0 : index
      %c5_32 = arith.constant 5 : index
      %c0_33 = arith.constant 0 : index
      %c0_34 = arith.constant 0 : index
      %44 = vector.load %arg4[%c0_31, %c5_32, %c0_33, %c0_34] : memref<1x9x64x128xbf16, #tpu.memory_space<vmem>>, vector<1x1x64x128xbf16>
      %45 = vector.shape_cast %44 : vector<1x1x64x128xbf16> to vector<64x128xbf16>
      %cst_35 = arith.constant dense<0.000000e+00> : vector<100x128xf32>
      %46 = tpu.matmul %43, %45, %cst_35 {dimension_numbers = #tpu.dot_dimension_numbers<[1], [0], [0], [1], [0, 0, 1, 1], [], []>} : vector<100x64xbf16>, vector<64x128xbf16>, vector<100x128xf32> -> vector<100x128xf32>
      %47 = arith.addf %41, %46 : vector<100x128xf32>
      %c25 = arith.constant 25 : index
      %c0_36 = arith.constant 0 : index
      %48 = vector.load %arg8[%c25, %c0_36] : memref<128x64xf32, #tpu.memory_space<vmem>>, vector<100x64xf32>
      %49 = arith.truncf %48 : vector<100x64xf32> to vector<100x64xbf16>
      %c0_37 = arith.constant 0 : index
      %c6_38 = arith.constant 6 : index
      %c0_39 = arith.constant 0 : index
      %c0_40 = arith.constant 0 : index
      %50 = vector.load %arg4[%c0_37, %c6_38, %c0_39, %c0_40] : memref<1x9x64x128xbf16, #tpu.memory_space<vmem>>, vector<1x1x64x128xbf16>
      %51 = vector.shape_cast %50 : vector<1x1x64x128xbf16> to vector<64x128xbf16>
      %cst_41 = arith.constant dense<0.000000e+00> : vector<100x128xf32>
      %52 = tpu.matmul %49, %51, %cst_41 {dimension_numbers = #tpu.dot_dimension_numbers<[1], [0], [0], [1], [0, 0, 1, 1], [], []>} : vector<100x64xbf16>, vector<64x128xbf16>, vector<100x128xf32> -> vector<100x128xf32>
      %53 = arith.addf %47, %52 : vector<100x128xf32>
      %c26 = arith.constant 26 : index
      %c0_42 = arith.constant 0 : index
      %54 = vector.load %arg8[%c26, %c0_42] : memref<128x64xf32, #tpu.memory_space<vmem>>, vector<100x64xf32>
      %55 = arith.truncf %54 : vector<100x64xf32> to vector<100x64xbf16>
      %c0_43 = arith.constant 0 : index
      %c7_44 = arith.constant 7 : index
      %c0_45 = arith.constant 0 : index
      %c0_46 = arith.constant 0 : index
      %56 = vector.load %arg4[%c0_43, %c7_44, %c0_45, %c0_46] : memref<1x9x64x128xbf16, #tpu.memory_space<vmem>>, vector<1x1x64x128xbf16>
      %57 = vector.shape_cast %56 : vector<1x1x64x128xbf16> to vector<64x128xbf16>
      %cst_47 = arith.constant dense<0.000000e+00> : vector<100x128xf32>
      %58 = tpu.matmul %55, %57, %cst_47 {dimension_numbers = #tpu.dot_dimension_numbers<[1], [0], [0], [1], [0, 0, 1, 1], [], []>} : vector<100x64xbf16>, vector<64x128xbf16>, vector<100x128xf32> -> vector<100x128xf32>
      %59 = arith.addf %53, %58 : vector<100x128xf32>
      %c27 = arith.constant 27 : index
      %c0_48 = arith.constant 0 : index
      %60 = vector.load %arg8[%c27, %c0_48] : memref<128x64xf32, #tpu.memory_space<vmem>>, vector<100x64xf32>
      %61 = arith.truncf %60 : vector<100x64xf32> to vector<100x64xbf16>
      %c0_49 = arith.constant 0 : index
      %c8 = arith.constant 8 : index
      %c0_50 = arith.constant 0 : index
      %c0_51 = arith.constant 0 : index
      %62 = vector.load %arg4[%c0_49, %c8, %c0_50, %c0_51] : memref<1x9x64x128xbf16, #tpu.memory_space<vmem>>, vector<1x1x64x128xbf16>
      %63 = vector.shape_cast %62 : vector<1x1x64x128xbf16> to vector<64x128xbf16>
      %cst_52 = arith.constant dense<0.000000e+00> : vector<100x128xf32>
      %64 = tpu.matmul %61, %63, %cst_52 {dimension_numbers = #tpu.dot_dimension_numbers<[1], [0], [0], [1], [0, 0, 1, 1], [], []>} : vector<100x64xbf16>, vector<64x128xbf16>, vector<100x128xf32> -> vector<100x128xf32>
      %65 = arith.addf %59, %64 : vector<100x128xf32>
      %c0_53 = arith.constant 0 : index
      %c0_54 = arith.constant 0 : index
      %c0_55 = arith.constant 0 : index
      %66 = vector.load %arg5[%c0_53, %c0_54, %c0_55] : memref<1x1x128xf32, #tpu.memory_space<vmem>>, vector<1x1x128xf32>
      %67 = vector.shape_cast %66 : vector<1x1x128xf32> to vector<1x128xf32>
      %68 = vector.broadcast %67 : vector<1x128xf32> to vector<100x128xf32>
      %69 = arith.addf %65, %68 : vector<100x128xf32>
      %cst_56 = arith.constant 0.000000e+00 : f32
      %70 = vector.broadcast %cst_56 : f32 to vector<100x128xf32>
      %71 = arith.maximumf %69, %70 : vector<100x128xf32>
      %72 = vector.extract_strided_slice %71 {offsets = [0, 0], sizes = [100, 64], strides = [1, 1]} : vector<100x128xf32> to vector<100x64xf32>
      %c0_57 = arith.constant 0 : index
      %c0_58 = arith.constant 0 : index
      %73 = vector.load %arg2[%c0_57, %c0_58] : memref<100x1xf32, #tpu.memory_space<vmem>>, vector<100x1xf32>
      %74 = vector.broadcast %73 : vector<100x1xf32> to vector<100x64xf32>
      %75 = arith.mulf %72, %74 : vector<100x64xf32>
      %c16_59 = arith.constant 16 : index
      %c0_60 = arith.constant 0 : index
      %76 = vector.load %arg8[%c16_59, %c0_60] : memref<128x64xf32, #tpu.memory_space<vmem>>, vector<100x64xf32>
      tpu.vector_store %arg8[%c16_59, %c0_60], %75 {strides = array<i32>} : memref<128x64xf32, #tpu.memory_space<vmem>>, vector<100x64xf32>,
    } else {
    }
    %c9_i32_3 = arith.constant 9 : i32
    %8 = arith.cmpi eq, %arg1, %c9_i32_3 : i32
    %9 = arith.extui %8 : i1 to i32
    %c0_i32_4 = arith.constant 0 : i32
    %10 = arith.cmpi ne, %9, %c0_i32_4 : i32
    scf.if %10 {
      %cst = arith.constant 0.000000e+00 : f32
      %11 = vector.broadcast %cst : f32 to vector<100x128xf32>
      %c5 = arith.constant 5 : index
      %c0 = arith.constant 0 : index
      %12 = vector.load %arg8[%c5, %c0] : memref<128x64xf32, #tpu.memory_space<vmem>>, vector<100x64xf32>
      %13 = arith.truncf %12 : vector<100x64xf32> to vector<100x64xbf16>
      %c0_5 = arith.constant 0 : index
      %c0_6 = arith.constant 0 : index
      %c0_7 = arith.constant 0 : index
      %c0_8 = arith.constant 0 : index
      %14 = vector.load %arg4[%c0_5, %c0_6, %c0_7, %c0_8] : memref<1x9x64x128xbf16, #tpu.memory_space<vmem>>, vector<1x1x64x128xbf16>
      %15 = vector.shape_cast %14 : vector<1x1x64x128xbf16> to vector<64x128xbf16>
      %cst_9 = arith.constant dense<0.000000e+00> : vector<100x128xf32>
      %16 = tpu.matmul %13, %15, %cst_9 {dimension_numbers = #tpu.dot_dimension_numbers<[1], [0], [0], [1], [0, 0, 1, 1], [], []>} : vector<100x64xbf16>, vector<64x128xbf16>, vector<100x128xf32> -> vector<100x128xf32>
      %17 = arith.addf %11, %16 : vector<100x128xf32>
      %c6 = arith.constant 6 : index
      %c0_10 = arith.constant 0 : index
      %18 = vector.load %arg8[%c6, %c0_10] : memref<128x64xf32, #tpu.memory_space<vmem>>, vector<100x64xf32>
      %19 = arith.truncf %18 : vector<100x64xf32> to vector<100x64xbf16>
      %c0_11 = arith.constant 0 : index
      %c1 = arith.constant 1 : index
      %c0_12 = arith.constant 0 : index
      %c0_13 = arith.constant 0 : index
      %20 = vector.load %arg4[%c0_11, %c1, %c0_12, %c0_13] : memref<1x9x64x128xbf16, #tpu.memory_space<vmem>>, vector<1x1x64x128xbf16>
      %21 = vector.shape_cast %20 : vector<1x1x64x128xbf16> to vector<64x128xbf16>
      %cst_14 = arith.constant dense<0.000000e+00> : vector<100x128xf32>
      %22 = tpu.matmul %19, %21, %cst_14 {dimension_numbers = #tpu.dot_dimension_numbers<[1], [0], [0], [1], [0, 0, 1, 1], [], []>} : vector<100x64xbf16>, vector<64x128xbf16>, vector<100x128xf32> -> vector<100x128xf32>
      %23 = arith.addf %17, %22 : vector<100x128xf32>
      %c7 = arith.constant 7 : index
      %c0_15 = arith.constant 0 : index
      %24 = vector.load %arg8[%c7, %c0_15] : memref<128x64xf32, #tpu.memory_space<vmem>>, vector<100x64xf32>
      %25 = arith.truncf %24 : vector<100x64xf32> to vector<100x64xbf16>
      %c0_16 = arith.constant 0 : index
      %c2 = arith.constant 2 : index
      %c0_17 = arith.constant 0 : index
      %c0_18 = arith.constant 0 : index
      %26 = vector.load %arg4[%c0_16, %c2, %c0_17, %c0_18] : memref<1x9x64x128xbf16, #tpu.memory_space<vmem>>, vector<1x1x64x128xbf16>
      %27 = vector.shape_cast %26 : vector<1x1x64x128xbf16> to vector<64x128xbf16>
      %cst_19 = arith.constant dense<0.000000e+00> : vector<100x128xf32>
      %28 = tpu.matmul %25, %27, %cst_19 {dimension_numbers = #tpu.dot_dimension_numbers<[1], [0], [0], [1], [0, 0, 1, 1], [], []>} : vector<100x64xbf16>, vector<64x128xbf16>, vector<100x128xf32> -> vector<100x128xf32>
      %29 = arith.addf %23, %28 : vector<100x128xf32>
      %c15 = arith.constant 15 : index
      %c0_20 = arith.constant 0 : index
      %30 = vector.load %arg8[%c15, %c0_20] : memref<128x64xf32, #tpu.memory_space<vmem>>, vector<100x64xf32>
      %31 = arith.truncf %30 : vector<100x64xf32> to vector<100x64xbf16>
      %c0_21 = arith.constant 0 : index
      %c3 = arith.constant 3 : index
      %c0_22 = arith.constant 0 : index
      %c0_23 = arith.constant 0 : index
      %32 = vector.load %arg4[%c0_21, %c3, %c0_22, %c0_23] : memref<1x9x64x128xbf16, #tpu.memory_space<vmem>>, vector<1x1x64x128xbf16>
      %33 = vector.shape_cast %32 : vector<1x1x64x128xbf16> to vector<64x128xbf16>
      %cst_24 = arith.constant dense<0.000000e+00> : vector<100x128xf32>
      %34 = tpu.matmul %31, %33, %cst_24 {dimension_numbers = #tpu.dot_dimension_numbers<[1], [0], [0], [1], [0, 0, 1, 1], [], []>} : vector<100x64xbf16>, vector<64x128xbf16>, vector<100x128xf32> -> vector<100x128xf32>
      %35 = arith.addf %29, %34 : vector<100x128xf32>
      %c16 = arith.constant 16 : index
      %c0_25 = arith.constant 0 : index
      %36 = vector.load %arg8[%c16, %c0_25] : memref<128x64xf32, #tpu.memory_space<vmem>>, vector<100x64xf32>
      %37 = arith.truncf %36 : vector<100x64xf32> to vector<100x64xbf16>
      %c0_26 = arith.constant 0 : index
      %c4 = arith.constant 4 : index
      %c0_27 = arith.constant 0 : index
      %c0_28 = arith.constant 0 : index
      %38 = vector.load %arg4[%c0_26, %c4, %c0_27, %c0_28] : memref<1x9x64x128xbf16, #tpu.memory_space<vmem>>, vector<1x1x64x128xbf16>
      %39 = vector.shape_cast %38 : vector<1x1x64x128xbf16> to vector<64x128xbf16>
      %cst_29 = arith.constant dense<0.000000e+00> : vector<100x128xf32>
      %40 = tpu.matmul %37, %39, %cst_29 {dimension_numbers = #tpu.dot_dimension_numbers<[1], [0], [0], [1], [0, 0, 1, 1], [], []>} : vector<100x64xbf16>, vector<64x128xbf16>, vector<100x128xf32> -> vector<100x128xf32>
      %41 = arith.addf %35, %40 : vector<100x128xf32>
      %c17 = arith.constant 17 : index
      %c0_30 = arith.constant 0 : index
      %42 = vector.load %arg8[%c17, %c0_30] : memref<128x64xf32, #tpu.memory_space<vmem>>, vector<100x64xf32>
      %43 = arith.truncf %42 : vector<100x64xf32> to vector<100x64xbf16>
      %c0_31 = arith.constant 0 : index
      %c5_32 = arith.constant 5 : index
      %c0_33 = arith.constant 0 : index
      %c0_34 = arith.constant 0 : index
      %44 = vector.load %arg4[%c0_31, %c5_32, %c0_33, %c0_34] : memref<1x9x64x128xbf16, #tpu.memory_space<vmem>>, vector<1x1x64x128xbf16>
      %45 = vector.shape_cast %44 : vector<1x1x64x128xbf16> to vector<64x128xbf16>
      %cst_35 = arith.constant dense<0.000000e+00> : vector<100x128xf32>
      %46 = tpu.matmul %43, %45, %cst_35 {dimension_numbers = #tpu.dot_dimension_numbers<[1], [0], [0], [1], [0, 0, 1, 1], [], []>} : vector<100x64xbf16>, vector<64x128xbf16>, vector<100x128xf32> -> vector<100x128xf32>
      %47 = arith.addf %41, %46 : vector<100x128xf32>
      %c25 = arith.constant 25 : index
      %c0_36 = arith.constant 0 : index
      %48 = vector.load %arg8[%c25, %c0_36] : memref<128x64xf32, #tpu.memory_space<vmem>>, vector<100x64xf32>
      %49 = arith.truncf %48 : vector<100x64xf32> to vector<100x64xbf16>
      %c0_37 = arith.constant 0 : index
      %c6_38 = arith.constant 6 : index
      %c0_39 = arith.constant 0 : index
      %c0_40 = arith.constant 0 : index
      %50 = vector.load %arg4[%c0_37, %c6_38, %c0_39, %c0_40] : memref<1x9x64x128xbf16, #tpu.memory_space<vmem>>, vector<1x1x64x128xbf16>
      %51 = vector.shape_cast %50 : vector<1x1x64x128xbf16> to vector<64x128xbf16>
      %cst_41 = arith.constant dense<0.000000e+00> : vector<100x128xf32>
      %52 = tpu.matmul %49, %51, %cst_41 {dimension_numbers = #tpu.dot_dimension_numbers<[1], [0], [0], [1], [0, 0, 1, 1], [], []>} : vector<100x64xbf16>, vector<64x128xbf16>, vector<100x128xf32> -> vector<100x128xf32>
      %53 = arith.addf %47, %52 : vector<100x128xf32>
      %c26 = arith.constant 26 : index
      %c0_42 = arith.constant 0 : index
      %54 = vector.load %arg8[%c26, %c0_42] : memref<128x64xf32, #tpu.memory_space<vmem>>, vector<100x64xf32>
      %55 = arith.truncf %54 : vector<100x64xf32> to vector<100x64xbf16>
      %c0_43 = arith.constant 0 : index
      %c7_44 = arith.constant 7 : index
      %c0_45 = arith.constant 0 : index
      %c0_46 = arith.constant 0 : index
      %56 = vector.load %arg4[%c0_43, %c7_44, %c0_45, %c0_46] : memref<1x9x64x128xbf16, #tpu.memory_space<vmem>>, vector<1x1x64x128xbf16>
      %57 = vector.shape_cast %56 : vector<1x1x64x128xbf16> to vector<64x128xbf16>
      %cst_47 = arith.constant dense<0.000000e+00> : vector<100x128xf32>
      %58 = tpu.matmul %55, %57, %cst_47 {dimension_numbers = #tpu.dot_dimension_numbers<[1], [0], [0], [1], [0, 0, 1, 1], [], []>} : vector<100x64xbf16>, vector<64x128xbf16>, vector<100x128xf32> -> vector<100x128xf32>
      %59 = arith.addf %53, %58 : vector<100x128xf32>
      %c27 = arith.constant 27 : index
      %c0_48 = arith.constant 0 : index
      %60 = vector.load %arg8[%c27, %c0_48] : memref<128x64xf32, #tpu.memory_space<vmem>>, vector<100x64xf32>
      %61 = arith.truncf %60 : vector<100x64xf32> to vector<100x64xbf16>
      %c0_49 = arith.constant 0 : index
      %c8 = arith.constant 8 : index
      %c0_50 = arith.constant 0 : index
      %c0_51 = arith.constant 0 : index
      %62 = vector.load %arg4[%c0_49, %c8, %c0_50, %c0_51] : memref<1x9x64x128xbf16, #tpu.memory_space<vmem>>, vector<1x1x64x128xbf16>
      %63 = vector.shape_cast %62 : vector<1x1x64x128xbf16> to vector<64x128xbf16>
      %cst_52 = arith.constant dense<0.000000e+00> : vector<100x128xf32>
      %64 = tpu.matmul %61, %63, %cst_52 {dimension_numbers = #tpu.dot_dimension_numbers<[1], [0], [0], [1], [0, 0, 1, 1], [], []>} : vector<100x64xbf16>, vector<64x128xbf16>, vector<100x128xf32> -> vector<100x128xf32>
      %65 = arith.addf %59, %64 : vector<100x128xf32>
      %c0_53 = arith.constant 0 : index
      %c0_54 = arith.constant 0 : index
      %c0_55 = arith.constant 0 : index
      %66 = vector.load %arg5[%c0_53, %c0_54, %c0_55] : memref<1x1x128xf32, #tpu.memory_space<vmem>>, vector<1x1x128xf32>
      %67 = vector.shape_cast %66 : vector<1x1x128xf32> to vector<1x128xf32>
      %68 = vector.broadcast %67 : vector<1x128xf32> to vector<100x128xf32>
      %69 = arith.addf %65, %68 : vector<100x128xf32>
      %c0_56 = arith.constant 0 : index
      %c0_57 = arith.constant 0 : index
      %c0_58 = arith.constant 0 : index
      %70 = vector.load %arg6[%c0_56, %c0_57, %c0_58] : memref<1x100x128xf32, #tpu.memory_space<vmem>>, vector<1x100x128xf32>
      %71 = vector.shape_cast %70 : vector<1x100x128xf32> to vector<100x128xf32>
      %72 = arith.addf %69, %71 : vector<100x128xf32>
      %cst_59 = arith.constant 0.000000e+00 : f32
      %73 = vector.broadcast %cst_59 : f32 to vector<100x128xf32>
      %74 = arith.maximumf %72, %73 : vector<100x128xf32>
      %c0_60 = arith.constant 0 : index
      %c0_61 = arith.constant 0 : index
      %c0_62 = arith.constant 0 : index
      %75 = vector.load %arg7[%c0_60, %c0_61, %c0_62] : memref<1x100x128xf32, #tpu.memory_space<vmem>>, vector<1x100x128xf32>
      %76 = vector.shape_cast %75 : vector<1x100x128xf32> to vector<100x128xf32>
      %77 = vector.shape_cast %74 : vector<100x128xf32> to vector<1x100x128xf32>
      tpu.vector_store %arg7[%c0_60, %c0_61, %c0_62], %77 {strides = array<i32>} : memref<1x100x128xf32, #tpu.memory_space<vmem>>, vector<1x100x128xf32>,
    } else {
    }
    return
  }
  func.func @transform_0(%arg0: i32, %arg1: i32) -> (i32, i32) {
    %c0_i32 = arith.constant 0 : i32
    %c0_i32_0 = arith.constant 0 : i32
    %c0_i32_1 = arith.constant 0 : i32
    return %c0_i32, %c0_i32_0 : i32, i32
  }
  func.func @transform_1(%arg0: i32, %arg1: i32) -> (i32, i32, i32, i32) {
    %c0_i32 = arith.constant 0 : i32
    %c0_i32_0 = arith.constant 0 : i32
    %c0_i32_1 = arith.constant 0 : i32
    %c0_i32_2 = arith.constant 0 : i32
    return %arg0, %c0_i32, %c0_i32_0, %c0_i32_1 : i32, i32, i32, i32
  }
  func.func @transform_2(%arg0: i32, %arg1: i32) -> (i32, i32, i32, i32) {
    %c0_i32 = arith.constant 0 : i32
    %c0_i32_0 = arith.constant 0 : i32
    %c0_i32_1 = arith.constant 0 : i32
    %c0_i32_2 = arith.constant 0 : i32
    return %arg1, %c0_i32, %c0_i32_0, %c0_i32_1 : i32, i32, i32, i32
  }
  func.func @transform_3(%arg0: i32, %arg1: i32) -> (i32, i32, i32) {
    %c0_i32 = arith.constant 0 : i32
    %c0_i32_0 = arith.constant 0 : i32
    %c0_i32_1 = arith.constant 0 : i32
    return %arg1, %c0_i32, %c0_i32_0 : i32, i32, i32
  }
  func.func @transform_4(%arg0: i32, %arg1: i32) -> (i32, i32, i32) {
    %c0_i32 = arith.constant 0 : i32
    %c0_i32_0 = arith.constant 0 : i32
    %c0_i32_1 = arith.constant 0 : i32
    return %arg0, %c0_i32, %c0_i32_0 : i32, i32, i32
  }
  func.func @transform_5(%arg0: i32, %arg1: i32) -> (i32, i32, i32) {
    %c0_i32 = arith.constant 0 : i32
    %c0_i32_0 = arith.constant 0 : i32
    %c0_i32_1 = arith.constant 0 : i32
    return %arg0, %c0_i32, %c0_i32_0 : i32, i32, i32
  }
}

</mosaic_0001>

<llo_original>
// kernel: tile.8
$region0: #{tile.8}
  #allocation0 [shape = 's32[1]{0}', space=sflag, size = 0x4, scoped, tag = 'scoped memory for tile.8']
  %s0 = inlined_call_operand.vmem [shape: f32[32], index: 0, kind: input, shape index: {}]
  %s1 = inlined_call_operand.vmem [shape: f32[4,32], index: 1, kind: output, shape index: {}]
  // Predicated region
  $region2: #{tile.8} parent=0 // pred_check
    _
  $region3: #{tile.8} parent=0 // pred_check_branch
    %3 = sbr.rel (0) target = $region5
  $region4: #{tile.8} parent=0 // pred_region
    _
  $region5: #{tile.8} parent=0 // pred_fallthru
    _
  %v4 = vld [vmem:[%s0] ss:$0 sm:$0xff]
  %5 = vst [vmem:[%s1] sm:$0xf] %v4

// kernel: _lambda_.1
$region0: #{_lambda_.1}
  #allocation0 [shape = 'u32[]', space=smem, size = 0x4, offset = 0x4, fixed_abs, tag = 'smem constant byte address 0x4 - core index']
  #allocation1 [shape = 'u32[144,128]{1,0:T(1,128)}', space=vmem, size = 0x12000, scoped, tag = 'internal scratch']
  #allocation2 [shape = 'f32[128,64]{1,0:T(8,128)}', space=vmem, size = 0x10000, scoped, tag = 'scratch operand']
  %s0 = inlined_call_operand.vmem [shape: f32[100,1], index: 0, kind: input, shape index: {}]
  %s1 = inlined_call_operand.vmem [shape: bf16[2,9,100,64], index: 1, kind: input, shape index: {}]
  %s2 = inlined_call_operand.vmem [shape: bf16[10,9,64,128], index: 2, kind: input, shape index: {}]
  %s3 = inlined_call_operand.vmem [shape: f32[10,1,128], index: 3, kind: input, shape index: {}]
  %s4 = inlined_call_operand.vmem [shape: f32[2,100,128], index: 4, kind: input, shape index: {}]
  %s5 = inlined_call_operand.vmem [shape: f32[2,100,128], index: 5, kind: output, shape index: {}]
  %s6 = sld [smem:[#allocation0]]
  $region65: #{_lambda_.1} parent=0
    _
  %s8 = ssub.s32 1, %s6
  %s9 = scalar_select 0, %s8, %s6
  loop: start=0, step=1, limit=22
  $region2: #{_lambda_.1} parent=0 // loop_pre_header
    _
  $region3: #{_lambda_.1} parent=0 // loop_header
    %s11 = sphi 0, %s15
    %p12 = scmp.ge.s32.totalorder %s11, 22
    %s18 = sphi 0, %s30
    %s19 = sphi 0, %s26
    %s20 = sphi 0, %s18
    %s21 = sphi 0, %s19
    %s22 = sphi 0, %s20
    %s23 = sphi 0, %s21
    %s31 = sphi 0, %s31
    %s33 = sphi 0, %s31
    %s34 = sphi 0, %s33
    %s48 = sphi 0, %s34
    %s54 = sphi 0, %s56
    %s57 = sphi 0, %s54
    %s58 = sphi 0, %s57
    %s74 = sphi 0, %s58
    %s80 = sphi 0, %s82
    %s83 = sphi 0, %s80
    %s84 = sphi 0, %s83
    %s100 = sphi 0, %s84
    %s106 = sphi 0, %s108
    %s109 = sphi 0, %s106
    %s110 = sphi 0, %s109
    %s126 = sphi 0, %s110
    %s132 = sphi 0, %s134
    %s135 = sphi 0, %s132
    %s136 = sphi 0, %s135
    %s152 = sphi 0, %s136
    %s158 = sphi 0, %s160
    %s161 = sphi 0, %s158
    %s162 = sphi 0, %s161
    %s178 = sphi 0, %s162
  $region4: #{_lambda_.1} parent=0 // loop_header_branch
    %14 = sbr.rel (%p12) target = $region8
  $region5: #{_lambda_.1} parent=0 // loop_body
    %s16 = ssub.s32 %s11, 1
    %s17 = ssub.s32 %s11, 2
    %s24 = sadd.s32 1, %s19
    %p25 = scmp.ge.s32.totalorder %s24, 10
    %s26 = scalar_select %p25, 0, %s24
    %s27 = sadd.s32 1, %s18
    %s28 = scalar_select %p25, %s27, %s18
    %p29 = scmp.ge.s32.totalorder %s28, 2
    %s30 = scalar_select %p29, 0, %s28
    %s32 = sadd.s32 %s31, 1
    %p35 = scmp.eq.s32.totalorder %s11, 19
    %p36 = scmp.ne.s32.totalorder %s31, %s33
    %p37 = scmp.eq.s32.totalorder %s11, 0
    %p38 = por %p36, %p37
    %p39 = scmp.ne.s32.totalorder %s31, %s33
    %p40 = scmp.eq.s32.totalorder %s16, 19
    %p41 = por %p39, %p40
    %p42 = scmp.ne.s32.totalorder %s33, %s34
    %p43 = scmp.eq.s32.totalorder %s16, 0
    %p44 = por %p42, %p43
    %p45 = scmp.ne.s32.totalorder %s33, %s34
    %p46 = scmp.eq.s32.totalorder %s17, 19
    %p47 = por %p45, %p46
    %p49 = scmp.ne.s32.totalorder %s34, %s48
    %p50 = scmp.eq.s32.totalorder %s17, 0
    %p51 = por %p49, %p50
    %s52 = ssub.s32 %s18, %s30
    %p53 = scmp.eq.s32.totalorder %s52, 0
    %s55 = sadd.s32 %s54, 1
    %s56 = scalar_select %p53, %s54, %s55
    %p59 = pneg %p53
    %p60 = scmp.eq.s32.totalorder %s11, 19
    %p61 = por %p59, %p60
    %p62 = scmp.ne.s32.totalorder %s54, %s57
    %p63 = scmp.eq.s32.totalorder %s11, 0
    %p64 = por %p62, %p63
    %p65 = scmp.ne.s32.totalorder %s54, %s57
    %p66 = scmp.eq.s32.totalorder %s16, 19
    %p67 = por %p65, %p66
    %p68 = scmp.ne.s32.totalorder %s57, %s58
    %p69 = scmp.eq.s32.totalorder %s16, 0
    %p70 = por %p68, %p69
    %p71 = scmp.ne.s32.totalorder %s57, %s58
    %p72 = scmp.eq.s32.totalorder %s17, 19
    %p73 = por %p71, %p72
    %p75 = scmp.ne.s32.totalorder %s58, %s74
    %p76 = scmp.eq.s32.totalorder %s17, 0
    %p77 = por %p75, %p76
    %s78 = ssub.s32 %s19, %s26
    %p79 = scmp.eq.s32.totalorder %s78, 0
    %s81 = sadd.s32 %s80, 1
    %s82 = scalar_select %p79, %s80, %s81
    %p85 = pneg %p79
    %p86 = scmp.eq.s32.totalorder %s11, 19
    %p87 = por %p85, %p86
    %p88 = scmp.ne.s32.totalorder %s80, %s83
    %p89 = scmp.eq.s32.totalorder %s11, 0
    %p90 = por %p88, %p89
    %p91 = scmp.ne.s32.totalorder %s80, %s83
    %p92 = scmp.eq.s32.totalorder %s16, 19
    %p93 = por %p91, %p92
    %p94 = scmp.ne.s32.totalorder %s83, %s84
    %p95 = scmp.eq.s32.totalorder %s16, 0
    %p96 = por %p94, %p95
    %p97 = scmp.ne.s32.totalorder %s83, %s84
    %p98 = scmp.eq.s32.totalorder %s17, 19
    %p99 = por %p97, %p98
    %p101 = scmp.ne.s32.totalorder %s84, %s100
    %p102 = scmp.eq.s32.totalorder %s17, 0
    %p103 = por %p101, %p102
    %s104 = ssub.s32 %s19, %s26
    %p105 = scmp.eq.s32.totalorder %s104, 0
    %s107 = sadd.s32 %s106, 1
    %s108 = scalar_select %p105, %s106, %s107
    %p111 = pneg %p105
    %p112 = scmp.eq.s32.totalorder %s11, 19
    %p113 = por %p111, %p112
    %p114 = scmp.ne.s32.totalorder %s106, %s109
    %p115 = scmp.eq.s32.totalorder %s11, 0
    %p116 = por %p114, %p115
    %p117 = scmp.ne.s32.totalorder %s106, %s109
    %p118 = scmp.eq.s32.totalorder %s16, 19
    %p119 = por %p117, %p118
    %p120 = scmp.ne.s32.totalorder %s109, %s110
    %p121 = scmp.eq.s32.totalorder %s16, 0
    %p122 = por %p120, %p121
    %p123 = scmp.ne.s32.totalorder %s109, %s110
    %p124 = scmp.eq.s32.totalorder %s17, 19
    %p125 = por %p123, %p124
    %p127 = scmp.ne.s32.totalorder %s110, %s126
    %p128 = scmp.eq.s32.totalorder %s17, 0
    %p129 = por %p127, %p128
    %s130 = ssub.s32 %s18, %s30
    %p131 = scmp.eq.s32.totalorder %s130, 0
    %s133 = sadd.s32 %s132, 1
    %s134 = scalar_select %p131, %s132, %s133
    %p137 = pneg %p131
    %p138 = scmp.eq.s32.totalorder %s11, 19
    %p139 = por %p137, %p138
    %p140 = scmp.ne.s32.totalorder %s132, %s135
    %p141 = scmp.eq.s32.totalorder %s11, 0
    %p142 = por %p140, %p141
    %p143 = scmp.ne.s32.totalorder %s132, %s135
    %p144 = scmp.eq.s32.totalorder %s16, 19
    %p145 = por %p143, %p144
    %p146 = scmp.ne.s32.totalorder %s135, %s136
    %p147 = scmp.eq.s32.totalorder %s16, 0
    %p148 = por %p146, %p147
    %p149 = scmp.ne.s32.totalorder %s135, %s136
    %p150 = scmp.eq.s32.totalorder %s17, 19
    %p151 = por %p149, %p150
    %p153 = scmp.ne.s32.totalorder %s136, %s152
    %p154 = scmp.eq.s32.totalorder %s17, 0
    %p155 = por %p153, %p154
    %s156 = ssub.s32 %s18, %s30
    %p157 = scmp.eq.s32.totalorder %s156, 0
    %s159 = sadd.s32 %s158, 1
    %s160 = scalar_select %p157, %s158, %s159
    %p163 = pneg %p157
    %p164 = scmp.eq.s32.totalorder %s11, 19
    %p165 = por %p163, %p164
    %p166 = scmp.ne.s32.totalorder %s158, %s161
    %p167 = scmp.eq.s32.totalorder %s11, 0
    %p168 = por %p166, %p167
    %p169 = scmp.ne.s32.totalorder %s158, %s161
    %p170 = scmp.eq.s32.totalorder %s16, 19
    %p171 = por %p169, %p170
    %p172 = scmp.ne.s32.totalorder %s161, %s162
    %p173 = scmp.eq.s32.totalorder %s16, 0
    %p174 = por %p172, %p173
    %p175 = scmp.ne.s32.totalorder %s161, %s162
    %p176 = scmp.eq.s32.totalorder %s17, 19
    %p177 = por %p175, %p176
    %p179 = scmp.ne.s32.totalorder %s162, %s178
    %p180 = scmp.eq.s32.totalorder %s17, 0
    %p181 = por %p179, %p180
    %p182 = scmp.le.s32.totalorder 1, %s11
    %p183 = scmp.lt.s32.totalorder %s11, 21
    %p184 = pnand %p182, %p183
    %p185 = pneg %p184
    // Predicated region
    $region9: #{_lambda_.1} parent=5 // pred_check
      _
    $region10: #{_lambda_.1} parent=5 // pred_check_branch
      %187 = sbr.rel (%p184) target = $region12
    $region11: #{_lambda_.1} parent=5 // pred_region
      %s188 = ssub.s32 %s11, 1
      // Predicated region
      $region13: #{_lambda_.1} parent=11 // pred_check
        %p189 = pneg %p44
      $region14: #{_lambda_.1} parent=11 // pred_check_branch
        %191 = sbr.rel (%p189) target = $region16
      $region15: #{_lambda_.1} parent=11 // pred_region
        _
      $region16: #{_lambda_.1} parent=11 // pred_fallthru
        _
    $region12: #{_lambda_.1} parent=5 // pred_fallthru
      _
    %p192 = scmp.lt.s32.totalorder %s11, 20
    // Predicated region
    $region17: #{_lambda_.1} parent=5 // pred_check
      %p193 = pneg %p192
    $region18: #{_lambda_.1} parent=5 // pred_check_branch
      %195 = sbr.rel (%p193) target = $region20
    $region19: #{_lambda_.1} parent=5 // pred_region
      // Predicated region
      $region21: #{_lambda_.1} parent=19 // pred_check
        %p196 = pneg %p64
      $region22: #{_lambda_.1} parent=19 // pred_check_branch
        %198 = sbr.rel (%p196) target = $region24
      $region23: #{_lambda_.1} parent=19 // pred_region
        %p199 = scmp.lt.s32.totalorder %s18, 1
        %s200 = scalar_select %p199, %s18, 1
        %s201 = smul.addr %s200, 117
        %s202 = smul.addr %s201, 4
        %s203 = scalar_lea.vmem %s1, %s202
      $region24: #{_lambda_.1} parent=19 // pred_fallthru
        _
      // Predicated region
      $region25: #{_lambda_.1} parent=19 // pred_check
        %p204 = pneg %p90
      $region26: #{_lambda_.1} parent=19 // pred_check_branch
        %206 = sbr.rel (%p204) target = $region28
      $region27: #{_lambda_.1} parent=19 // pred_region
        %p207 = scmp.lt.s32.totalorder %s19, 9
        %s208 = scalar_select %p207, %s19, 9
        %s209 = smul.addr %s208, 72
        %s210 = smul.addr %s209, 4
        %s211 = scalar_lea.vmem %s2, %s210
      $region28: #{_lambda_.1} parent=19 // pred_fallthru
        _
      // Predicated region
      $region29: #{_lambda_.1} parent=19 // pred_check
        %p212 = pneg %p116
      $region30: #{_lambda_.1} parent=19 // pred_check_branch
        %214 = sbr.rel (%p212) target = $region32
      $region31: #{_lambda_.1} parent=19 // pred_region
        %p215 = scmp.lt.s32.totalorder %s19, 9
        %s216 = scalar_select %p215, %s19, 9
        %s217 = scalar_lea.vmem %s3, %s216
      $region32: #{_lambda_.1} parent=19 // pred_fallthru
        _
      // Predicated region
      $region33: #{_lambda_.1} parent=19 // pred_check
        %p218 = pneg %p142
      $region34: #{_lambda_.1} parent=19 // pred_check_branch
        %220 = sbr.rel (%p218) target = $region36
      $region35: #{_lambda_.1} parent=19 // pred_region
        %p221 = scmp.lt.s32.totalorder %s18, 1
        %s222 = scalar_select %p221, %s18, 1
        %s223 = smul.addr %s222, 13
        %s224 = smul.addr %s223, 8
        %s225 = scalar_lea.vmem %s4, %s224
      $region36: #{_lambda_.1} parent=19 // pred_fallthru
        _
    $region20: #{_lambda_.1} parent=5 // pred_fallthru
      _
    %p226 = scmp.le.s32.totalorder 1, %s11
    %p227 = scmp.lt.s32.totalorder %s11, 21
    %p228 = pnand %p226, %p227
    %p229 = pneg %p228
    // Predicated region
    $region37: #{_lambda_.1} parent=5 // pred_check
      _
    $region38: #{_lambda_.1} parent=5 // pred_check_branch
      %231 = sbr.rel (%p228) target = $region40
    $region39: #{_lambda_.1} parent=5 // pred_region
      %s232 = ssub.s32 %s11, 1
      %p233 = pneg %p44
      %p234 = pneg %p41
      %p235 = scmp.lt.s32.totalorder %s20, 1
      %s236 = scalar_select %p235, %s20, 1
      %s237 = smul.addr %s236, 117
      %s238 = smul.addr %s237, 4
      %s239 = scalar_lea.vmem %s1, %s238
      %p240 = pneg %p70
      %p241 = pneg %p67
      %p242 = scmp.lt.s32.totalorder %s21, 9
      %s243 = scalar_select %p242, %s21, 9
      %s244 = smul.addr %s243, 72
      %s245 = smul.addr %s244, 4
      %s246 = scalar_lea.vmem %s2, %s245
      %p247 = pneg %p96
      %p248 = pneg %p93
      %p249 = scmp.lt.s32.totalorder %s21, 9
      %s250 = scalar_select %p249, %s21, 9
      %s251 = scalar_lea.vmem %s3, %s250
      %p252 = pneg %p122
      %p253 = pneg %p119
      %p254 = scmp.lt.s32.totalorder %s20, 1
      %s255 = scalar_select %p254, %s20, 1
      %s256 = smul.addr %s255, 13
      %s257 = smul.addr %s256, 8
      %s258 = scalar_lea.vmem %s4, %s257
      %p259 = pneg %p148
      %p260 = pneg %p145
      %p261 = pneg %p174
      %p262 = pneg %p171
      %p263 = scmp.lt.s32.totalorder %s20, 1
      %s264 = scalar_select %p263, %s20, 1
      %s265 = smul.addr %s264, 13
      %s266 = smul.addr %s265, 8
      %s267 = scalar_lea.vmem %s5, %s266
      %p268 = scmp.lt.s32.totalorder %s20, 1
      %s269 = scalar_select %p268, %s20, 1
      %s270 = smul.addr %s269, 117
      %s271 = smul.addr %s270, 4
      %s272 = scalar_lea.vmem %s1, %s271
      %p273 = scmp.lt.s32.totalorder %s21, 9
      %s274 = scalar_select %p273, %s21, 9
      %s275 = smul.addr %s274, 72
      %s276 = smul.addr %s275, 4
      %s277 = scalar_lea.vmem %s2, %s276
      %p278 = scmp.lt.s32.totalorder %s21, 9
      %s279 = scalar_select %p278, %s21, 9
      %s280 = scalar_lea.vmem %s3, %s279
      %p281 = scmp.lt.s32.totalorder %s20, 1
      %s282 = scalar_select %p281, %s20, 1
      %s283 = smul.addr %s282, 13
      %s284 = smul.addr %s283, 8
      %s285 = scalar_lea.vmem %s4, %s284
      %p286 = scmp.lt.s32.totalorder %s20, 1
      %s287 = scalar_select %p286, %s20, 1
      %s288 = smul.addr %s287, 13
      %s289 = smul.addr %s288, 8
      %s290 = scalar_lea.vmem %s5, %s289
      %p292 = scmp.eq.s32.totalorder %s21, 0
      // Predicated region
      $region41: #{_lambda_.1} parent=39 // pred_check
        %p293 = pneg %p292
      $region42: #{_lambda_.1} parent=39 // pred_check_branch
        %295 = sbr.rel (%p293) target = $region44
      $region43: #{_lambda_.1} parent=39 // pred_region
        %vm296 = vcmask 523264
        %297 = vst.msk [vmem:[#allocation2] sm:$0xff] %vm296, 0.0
        %298 = vst.msk [vmem:[#allocation2 + $0x8] sm:$0xff] %vm296, 0.0
        %299 = vst.msk [vmem:[#allocation2 + $0x10] sm:$0xff] %vm296, 0.0
        %300 = vst.msk [vmem:[#allocation2 + $0x18] sm:$0xff] %vm296, 0.0
        %301 = vst.msk [vmem:[#allocation2 + $0x20] sm:$0xff] %vm296, 0.0
        %302 = vst.msk [vmem:[#allocation2 + $0x28] sm:$0xff] %vm296, 0.0
        %303 = vst.msk [vmem:[#allocation2 + $0x30] sm:$0xff] %vm296, 0.0
        %304 = vst.msk [vmem:[#allocation2 + $0x38] sm:$0xff] %vm296, 0.0
        %305 = vst.msk [vmem:[#allocation2 + $0x40] sm:$0xff] %vm296, 0.0
        %306 = vst.msk [vmem:[#allocation2 + $0x48] sm:$0xff] %vm296, 0.0
        %307 = vst.msk [vmem:[#allocation2 + $0x50] sm:$0xff] %vm296, 0.0
        %308 = vst.msk [vmem:[#allocation2 + $0x58] sm:$0xff] %vm296, 0.0
        %309 = vst.msk [vmem:[#allocation2 + $0x60] sm:$0xff] %vm296, 0.0
        %310 = vst.msk [vmem:[#allocation2 + $0x68] sm:$0xff] %vm296, 0.0
        %311 = vst.msk [vmem:[#allocation2 + $0x70] sm:$0xff] %vm296, 0.0
        %312 = vst.msk [vmem:[#allocation2 + $0x78] sm:$0xff] %vm296, 0.0
        %v313 = vld [vmem:[%s272] sm:$0xf]
        %v314 = vld [vmem:[%s272 + $0x4] sm:$0xf]
        %v315 = vld [vmem:[%s272 + $0x8] sm:$0xf]
        %v316 = vld [vmem:[%s272 + $0xc] sm:$0xf]
        %v317 = vld [vmem:[%s272 + $0x10] sm:$0xf]
        %v318 = vld [vmem:[%s272 + $0x14] sm:$0xf]
        %v319 = vld [vmem:[%s272 + $0x18] sm:$0xf]
        %v320 = vld [vmem:[%s272 + $0x1c] sm:$0xf]
        %v321 = vld [vmem:[%s272 + $0x20] sm:$0xf]
        %v322 = vld [vmem:[%s272 + $0x24] sm:$0xf]
        %v323 = vld [vmem:[%s272 + $0x28] sm:$0xf]
        %v324 = vld [vmem:[%s272 + $0x2c] sm:$0xf]
        %v325 = vld [vmem:[%s272 + $0x30] sm:$0x3]
        %v326 = vld [vmem:[%s277] sm:$0xf]
        %v327 = vld [vmem:[%s277 + $0x4] sm:$0xf]
        %v328 = vld [vmem:[%s277 + $0x8] sm:$0xf]
        %v329 = vld [vmem:[%s277 + $0xc] sm:$0xf]
        %v330 = vld [vmem:[%s277 + $0x10] sm:$0xf]
        %v331 = vld [vmem:[%s277 + $0x14] sm:$0xf]
        %v332 = vld [vmem:[%s277 + $0x18] sm:$0xf]
        %v333 = vld [vmem:[%s277 + $0x1c] sm:$0xf]
        %s334 = scalar_lea.vmem %s272, 52
        %v335 = vld [vmem:[%s334] sm:$0xf]
        %v336 = vld [vmem:[%s334 + $0x4] sm:$0xf]
        %v337 = vld [vmem:[%s334 + $0x8] sm:$0xf]
        %v338 = vld [vmem:[%s334 + $0xc] sm:$0xf]
        %v339 = vld [vmem:[%s334 + $0x10] sm:$0xf]
        %v340 = vld [vmem:[%s334 + $0x14] sm:$0xf]
        %v341 = vld [vmem:[%s334 + $0x18] sm:$0xf]
        %v342 = vld [vmem:[%s334 + $0x1c] sm:$0xf]
        %v343 = vld [vmem:[%s334 + $0x20] sm:$0xf]
        %v344 = vld [vmem:[%s334 + $0x24] sm:$0xf]
        %v345 = vld [vmem:[%s334 + $0x28] sm:$0xf]
        %v346 = vld [vmem:[%s334 + $0x2c] sm:$0xf]
        %v347 = vld [vmem:[%s334 + $0x30] sm:$0x3]
        %s348 = scalar_lea.vmem %s277, 32
        %v349 = vld [vmem:[%s348] sm:$0xf]
        %v350 = vld [vmem:[%s348 + $0x4] sm:$0xf]
        %v351 = vld [vmem:[%s348 + $0x8] sm:$0xf]
        %v352 = vld [vmem:[%s348 + $0xc] sm:$0xf]
        %v353 = vld [vmem:[%s348 + $0x10] sm:$0xf]
        %v354 = vld [vmem:[%s348 + $0x14] sm:$0xf]
        %v355 = vld [vmem:[%s348 + $0x18] sm:$0xf]
        %v356 = vld [vmem:[%s348 + $0x1c] sm:$0xf]
        %v370 = vunpack.c.l.b16 %v335
        %v371 = vunpack.c.l.b16 %v336
        %v372 = vunpack.c.l.b16 %v337
        %v373 = vunpack.c.l.b16 %v338
        %v374 = vunpack.c.l.b16 %v339
        %v375 = vunpack.c.l.b16 %v340
        %v376 = vunpack.c.l.b16 %v341
        %v377 = vunpack.c.l.b16 %v342
        %v378 = vunpack.c.l.b16 %v343
        %v379 = vunpack.c.l.b16 %v344
        %v380 = vunpack.c.l.b16 %v345
        %v381 = vunpack.c.l.b16 %v346
        %v382 = vunpack.c.l.b16 %v347
        %v383 = vpack.c.b16 %v371, %v370
        %v384 = vpack.c.b16 %v373, %v372
        %v385 = vpack.c.b16 %v375, %v374
        %v386 = vpack.c.b16 %v377, %v376
        %v387 = vpack.c.b16 %v379, %v378
        %v388 = vpack.c.b16 %v381, %v380
        %v389 = vpack.c.b16 %v382, %v382
        %v398 = vunpack.c.l.b16 %v349
        %v399 = vunpack.c.l.b16 %v350
        %v400 = vunpack.c.l.b16 %v351
        %v401 = vunpack.c.l.b16 %v352
        %v402 = vunpack.c.l.b16 %v353
        %v403 = vunpack.c.l.b16 %v354
        %v404 = vunpack.c.l.b16 %v355
        %v405 = vunpack.c.l.b16 %v356
        %v406 = vpack.c.b16 %v399, %v398
        %v407 = vpack.c.b16 %v401, %v400
        %v408 = vpack.c.b16 %v403, %v402
        %v409 = vpack.c.b16 %v405, %v404
        %v415 = vsel %vm296, %v383, 0
        %v418 = vsel %vm296, %v384, 0
        %v421 = vsel %vm296, %v385, 0
        %v424 = vsel %vm296, %v386, 0
        %v427 = vsel %vm296, %v387, 0
        %v430 = vsel %vm296, %v388, 0
        %v433 = vsel %vm296, %v389, 0
        %435 = vmatprep.subr.bf16.mxu0 0
        %436 = vmatpush1.bf16.msra.mxu0 %v406
        %437 = vmatprep.subr.bf16.mxu0 0
        %438 = vmatpush1.bf16.msra.mxu0 %v407
        %439 = vmatprep.subr.bf16.mxu0 0
        %440 = vmatpush1.bf16.msra.mxu0 %v408
        %441 = vmatprep.subr.bf16.mxu0 0
        %442 = vmatpush1.bf16.msra.mxu0 %v409
        %443 = vmatprep.subr.bf16.mxu0 0
        %444 = vmatpush1.bf16.msra.mxu0 0
        %445 = vmatprep.subr.bf16.mxu0 0
        %446 = vmatpush1.bf16.msra.mxu0 0
        %447 = vmatprep.subr.bf16.mxu0 0
        %448 = vmatpush1.bf16.msra.mxu0 0
        %449 = vmatprep.subr.bf16.mxu0 0
        %450 = vmatpush1.bf16.msra.mxu0 0
        %451 = vmatprep.subr.bf16.mxu0 0
        %452 = vmatpush1.bf16.msra.mxu0 0
        %453 = vmatprep.subr.bf16.mxu0 0
        %454 = vmatpush1.bf16.msra.mxu0 0
        %455 = vmatprep.subr.bf16.mxu0 0
        %456 = vmatpush1.bf16.msra.mxu0 0
        %457 = vmatprep.subr.bf16.mxu0 0
        %458 = vmatpush1.bf16.msra.mxu0 0
        %459 = vmatprep.subr.bf16.mxu0 0
        %460 = vmatpush1.bf16.msra.mxu0 0
        %461 = vmatprep.subr.bf16.mxu0 0
        %462 = vmatpush1.bf16.msra.mxu0 0
        %463 = vmatprep.subr.bf16.mxu0 0
        %464 = vmatpush1.bf16.msra.mxu0 0
        %465 = vmatprep.subr.bf16.mxu0 0
        %466 = vmatpush1.bf16.msra.mxu0 0
        %467 = vmatprep.mubr.bf16.mxu0 0
        %468 = vmatmul.mubr.bf16.gmra.mrb[0].mxu0 %v415
        %v469 = vpop.f32.mrb[0].mxu0
        %v470 = vadd.f32 0.0, %v469
        %v471 = vpop.f32.mrb[0].mxu0
        %v472 = vpop.f32.mrb[0].mxu0
        %v473 = vadd.f32 0.0, %v472
        %v474 = vpop.f32.mrb[0].mxu0
        %475 = vmatprep.mubr.bf16.mxu0 0
        %476 = vmatmul.mubr.bf16.gmra.mrb[0].mxu0 %v418
        %v477 = vpop.f32.mrb[0].mxu0
        %v478 = vadd.f32 0.0, %v477
        %v479 = vpop.f32.mrb[0].mxu0
        %v480 = vpop.f32.mrb[0].mxu0
        %v481 = vadd.f32 0.0, %v480
        %v482 = vpop.f32.mrb[0].mxu0
        %483 = vmatprep.mubr.bf16.mxu0 0
        %484 = vmatmul.mubr.bf16.gmra.mrb[0].mxu0 %v421
        %v485 = vpop.f32.mrb[0].mxu0
        %v486 = vadd.f32 0.0, %v485
        %v487 = vpop.f32.mrb[0].mxu0
        %v488 = vpop.f32.mrb[0].mxu0
        %v489 = vadd.f32 0.0, %v488
        %v490 = vpop.f32.mrb[0].mxu0
        %491 = vmatprep.mubr.bf16.mxu0 0
        %492 = vmatmul.mubr.bf16.gmra.mrb[0].mxu0 %v424
        %v493 = vpop.f32.mrb[0].mxu0
        %v494 = vadd.f32 0.0, %v493
        %v495 = vpop.f32.mrb[0].mxu0
        %v496 = vpop.f32.mrb[0].mxu0
        %v497 = vadd.f32 0.0, %v496
        %v498 = vpop.f32.mrb[0].mxu0
        %499 = vmatprep.mubr.bf16.mxu0 0
        %500 = vmatmul.mubr.bf16.gmra.mrb[0].mxu0 %v427
        %v501 = vpop.f32.mrb[0].mxu0
        %v502 = vadd.f32 0.0, %v501
        %v503 = vpop.f32.mrb[0].mxu0
        %v504 = vpop.f32.mrb[0].mxu0
        %v505 = vadd.f32 0.0, %v504
        %v506 = vpop.f32.mrb[0].mxu0
        %507 = vmatprep.mubr.bf16.mxu0 0
        %508 = vmatmul.mubr.bf16.gmra.mrb[0].mxu0 %v430
        %v509 = vpop.f32.mrb[0].mxu0
        %v510 = vadd.f32 0.0, %v509
        %v511 = vpop.f32.mrb[0].mxu0
        %v512 = vpop.f32.mrb[0].mxu0
        %v513 = vadd.f32 0.0, %v512
        %v514 = vpop.f32.mrb[0].mxu0
        %515 = vmatprep.mubr.bf16.mxu0 0
        %516 = vmatmul.mubr.bf16.gmra.mrb[0].mxu0 %v433
        %v517 = vpop.f32.mrb[0].mxu0
        %v518 = vadd.f32 0.0, %v517
        %v519 = vpop.f32.mrb[0].mxu0
        %v520 = vpop.f32.mrb[0].mxu0
        %v521 = vpop.f32.mrb[0].mxu0
        %522 = vdwg.mxu0
        %v536 = vunpack.c.l.b16 %v313
        %v537 = vunpack.c.l.b16 %v314
        %v538 = vunpack.c.l.b16 %v315
        %v539 = vunpack.c.l.b16 %v316
        %v540 = vunpack.c.l.b16 %v317
        %v541 = vunpack.c.l.b16 %v318
        %v542 = vunpack.c.l.b16 %v319
        %v543 = vunpack.c.l.b16 %v320
        %v544 = vunpack.c.l.b16 %v321
        %v545 = vunpack.c.l.b16 %v322
        %v546 = vunpack.c.l.b16 %v323
        %v547 = vunpack.c.l.b16 %v324
        %v548 = vunpack.c.l.b16 %v325
        %v549 = vpack.c.b16 %v537, %v536
        %v550 = vpack.c.b16 %v539, %v538
        %v551 = vpack.c.b16 %v541, %v540
        %v552 = vpack.c.b16 %v543, %v542
        %v553 = vpack.c.b16 %v545, %v544
        %v554 = vpack.c.b16 %v547, %v546
        %v555 = vpack.c.b16 %v548, %v548
        %v564 = vunpack.c.l.b16 %v326
        %v565 = vunpack.c.l.b16 %v327
        %v566 = vunpack.c.l.b16 %v328
        %v567 = vunpack.c.l.b16 %v329
        %v568 = vunpack.c.l.b16 %v330
        %v569 = vunpack.c.l.b16 %v331
        %v570 = vunpack.c.l.b16 %v332
        %v571 = vunpack.c.l.b16 %v333
        %v572 = vpack.c.b16 %v565, %v564
        %v573 = vpack.c.b16 %v567, %v566
        %v574 = vpack.c.b16 %v569, %v568
        %v575 = vpack.c.b16 %v571, %v570
        %v581 = vsel %vm296, %v549, 0
        %v584 = vsel %vm296, %v550, 0
        %v587 = vsel %vm296, %v551, 0
        %v590 = vsel %vm296, %v552, 0
        %v593 = vsel %vm296, %v553, 0
        %v596 = vsel %vm296, %v554, 0
        %v599 = vsel %vm296, %v555, 0
        %601 = vmatprep.subr.bf16.mxu0 0
        %602 = vmatpush1.bf16.msra.mxu0 %v572
        %603 = vmatprep.subr.bf16.mxu0 0
        %604 = vmatpush1.bf16.msra.mxu0 %v573
        %605 = vmatprep.subr.bf16.mxu0 0
        %606 = vmatpush1.bf16.msra.mxu0 %v574
        %607 = vmatprep.subr.bf16.mxu0 0
        %608 = vmatpush1.bf16.msra.mxu0 %v575
        %609 = vmatprep.subr.bf16.mxu0 0
        %610 = vmatpush1.bf16.msra.mxu0 0
        %611 = vmatprep.subr.bf16.mxu0 0
        %612 = vmatpush1.bf16.msra.mxu0 0
        %613 = vmatprep.subr.bf16.mxu0 0
        %614 = vmatpush1.bf16.msra.mxu0 0
        %615 = vmatprep.subr.bf16.mxu0 0
        %616 = vmatpush1.bf16.msra.mxu0 0
        %617 = vmatprep.subr.bf16.mxu0 0
        %618 = vmatpush1.bf16.msra.mxu0 0
        %619 = vmatprep.subr.bf16.mxu0 0
        %620 = vmatpush1.bf16.msra.mxu0 0
        %621 = vmatprep.subr.bf16.mxu0 0
        %622 = vmatpush1.bf16.msra.mxu0 0
        %623 = vmatprep.subr.bf16.mxu0 0
        %624 = vmatpush1.bf16.msra.mxu0 0
        %625 = vmatprep.subr.bf16.mxu0 0
        %626 = vmatpush1.bf16.msra.mxu0 0
        %627 = vmatprep.subr.bf16.mxu0 0
        %628 = vmatpush1.bf16.msra.mxu0 0
        %629 = vmatprep.subr.bf16.mxu0 0
        %630 = vmatpush1.bf16.msra.mxu0 0
        %631 = vmatprep.subr.bf16.mxu0 0
        %632 = vmatpush1.bf16.msra.mxu0 0
        %633 = vmatprep.mubr.bf16.mxu0 0
        %634 = vmatmul.mubr.bf16.gmra.mrb[0].mxu0 %v581
        %v635 = vpop.f32.mrb[0].mxu0
        %v636 = vadd.f32 %v470, %v635
        %v637 = vpop.f32.mrb[0].mxu0
        %v638 = vpop.f32.mrb[0].mxu0
        %v639 = vadd.f32 %v473, %v638
        %v640 = vpop.f32.mrb[0].mxu0
        %641 = vmatprep.mubr.bf16.mxu0 0
        %642 = vmatmul.mubr.bf16.gmra.mrb[0].mxu0 %v584
        %v643 = vpop.f32.mrb[0].mxu0
        %v644 = vadd.f32 %v478, %v643
        %v645 = vpop.f32.mrb[0].mxu0
        %v646 = vpop.f32.mrb[0].mxu0
        %v647 = vadd.f32 %v481, %v646
        %v648 = vpop.f32.mrb[0].mxu0
        %649 = vmatprep.mubr.bf16.mxu0 0
        %650 = vmatmul.mubr.bf16.gmra.mrb[0].mxu0 %v587
        %v651 = vpop.f32.mrb[0].mxu0
        %v652 = vadd.f32 %v486, %v651
        %v653 = vpop.f32.mrb[0].mxu0
        %v654 = vpop.f32.mrb[0].mxu0
        %v655 = vadd.f32 %v489, %v654
        %v656 = vpop.f32.mrb[0].mxu0
        %657 = vmatprep.mubr.bf16.mxu0 0
        %658 = vmatmul.mubr.bf16.gmra.mrb[0].mxu0 %v590
        %v659 = vpop.f32.mrb[0].mxu0
        %v660 = vadd.f32 %v494, %v659
        %v661 = vpop.f32.mrb[0].mxu0
        %v662 = vpop.f32.mrb[0].mxu0
        %v663 = vadd.f32 %v497, %v662
        %v664 = vpop.f32.mrb[0].mxu0
        %665 = vmatprep.mubr.bf16.mxu0 0
        %666 = vmatmul.mubr.bf16.gmra.mrb[0].mxu0 %v593
        %v667 = vpop.f32.mrb[0].mxu0
        %v668 = vadd.f32 %v502, %v667
        %v669 = vpop.f32.mrb[0].mxu0
        %v670 = vpop.f32.mrb[0].mxu0
        %v671 = vadd.f32 %v505, %v670
        %v672 = vpop.f32.mrb[0].mxu0
        %673 = vmatprep.mubr.bf16.mxu0 0
        %674 = vmatmul.mubr.bf16.gmra.mrb[0].mxu0 %v596
        %v675 = vpop.f32.mrb[0].mxu0
        %v676 = vadd.f32 %v510, %v675
        %v677 = vpop.f32.mrb[0].mxu0
        %v678 = vpop.f32.mrb[0].mxu0
        %v679 = vadd.f32 %v513, %v678
        %v680 = vpop.f32.mrb[0].mxu0
        %681 = vmatprep.mubr.bf16.mxu0 0
        %682 = vmatmul.mubr.bf16.gmra.mrb[0].mxu0 %v599
        %v683 = vpop.f32.mrb[0].mxu0
        %v684 = vadd.f32 %v518, %v683
        %v685 = vpop.f32.mrb[0].mxu0
        %v686 = vpop.f32.mrb[0].mxu0
        %v687 = vpop.f32.mrb[0].mxu0
        %688 = vdwg.mxu0
        %s689 = scalar_lea.vmem %s272, 104
        %v690 = vld [vmem:[%s689] sm:$0xf]
        %v691 = vld [vmem:[%s689 + $0x4] sm:$0xf]
        %v692 = vld [vmem:[%s689 + $0x8] sm:$0xf]
        %v693 = vld [vmem:[%s689 + $0xc] sm:$0xf]
        %v694 = vld [vmem:[%s689 + $0x10] sm:$0xf]
        %v695 = vld [vmem:[%s689 + $0x14] sm:$0xf]
        %v696 = vld [vmem:[%s689 + $0x18] sm:$0xf]
        %v697 = vld [vmem:[%s689 + $0x1c] sm:$0xf]
        %v698 = vld [vmem:[%s689 + $0x20] sm:$0xf]
        %v699 = vld [vmem:[%s689 + $0x24] sm:$0xf]
        %v700 = vld [vmem:[%s689 + $0x28] sm:$0xf]
        %v701 = vld [vmem:[%s689 + $0x2c] sm:$0xf]
        %v702 = vld [vmem:[%s689 + $0x30] sm:$0x3]
        %s703 = scalar_lea.vmem %s277, 64
        %v704 = vld [vmem:[%s703] sm:$0xf]
        %v705 = vld [vmem:[%s703 + $0x4] sm:$0xf]
        %v706 = vld [vmem:[%s703 + $0x8] sm:$0xf]
        %v707 = vld [vmem:[%s703 + $0xc] sm:$0xf]
        %v708 = vld [vmem:[%s703 + $0x10] sm:$0xf]
        %v709 = vld [vmem:[%s703 + $0x14] sm:$0xf]
        %v710 = vld [vmem:[%s703 + $0x18] sm:$0xf]
        %v711 = vld [vmem:[%s703 + $0x1c] sm:$0xf]
        %v725 = vunpack.c.l.b16 %v690
        %v726 = vunpack.c.l.b16 %v691
        %v727 = vunpack.c.l.b16 %v692
        %v728 = vunpack.c.l.b16 %v693
        %v729 = vunpack.c.l.b16 %v694
        %v730 = vunpack.c.l.b16 %v695
        %v731 = vunpack.c.l.b16 %v696
        %v732 = vunpack.c.l.b16 %v697
        %v733 = vunpack.c.l.b16 %v698
        %v734 = vunpack.c.l.b16 %v699
        %v735 = vunpack.c.l.b16 %v700
        %v736 = vunpack.c.l.b16 %v701
        %v737 = vunpack.c.l.b16 %v702
        %v738 = vpack.c.b16 %v726, %v725
        %v739 = vpack.c.b16 %v728, %v727
        %v740 = vpack.c.b16 %v730, %v729
        %v741 = vpack.c.b16 %v732, %v731
        %v742 = vpack.c.b16 %v734, %v733
        %v743 = vpack.c.b16 %v736, %v735
        %v744 = vpack.c.b16 %v737, %v737
        %v753 = vunpack.c.l.b16 %v704
        %v754 = vunpack.c.l.b16 %v705
        %v755 = vunpack.c.l.b16 %v706
        %v756 = vunpack.c.l.b16 %v707
        %v757 = vunpack.c.l.b16 %v708
        %v758 = vunpack.c.l.b16 %v709
        %v759 = vunpack.c.l.b16 %v710
        %v760 = vunpack.c.l.b16 %v711
        %v761 = vpack.c.b16 %v754, %v753
        %v762 = vpack.c.b16 %v756, %v755
        %v763 = vpack.c.b16 %v758, %v757
        %v764 = vpack.c.b16 %v760, %v759
        %v770 = vsel %vm296, %v738, 0
        %v773 = vsel %vm296, %v739, 0
        %v776 = vsel %vm296, %v740, 0
        %v779 = vsel %vm296, %v741, 0
        %v782 = vsel %vm296, %v742, 0
        %v785 = vsel %vm296, %v743, 0
        %v788 = vsel %vm296, %v744, 0
        %790 = vmatprep.subr.bf16.mxu0 0
        %791 = vmatpush1.bf16.msra.mxu0 %v761
        %792 = vmatprep.subr.bf16.mxu0 0
        %793 = vmatpush1.bf16.msra.mxu0 %v762
        %794 = vmatprep.subr.bf16.mxu0 0
        %795 = vmatpush1.bf16.msra.mxu0 %v763
        %796 = vmatprep.subr.bf16.mxu0 0
        %797 = vmatpush1.bf16.msra.mxu0 %v764
        %798 = vmatprep.subr.bf16.mxu0 0
        %799 = vmatpush1.bf16.msra.mxu0 0
        %800 = vmatprep.subr.bf16.mxu0 0
        %801 = vmatpush1.bf16.msra.mxu0 0
        %802 = vmatprep.subr.bf16.mxu0 0
        %803 = vmatpush1.bf16.msra.mxu0 0
        %804 = vmatprep.subr.bf16.mxu0 0
        %805 = vmatpush1.bf16.msra.mxu0 0
        %806 = vmatprep.subr.bf16.mxu0 0
        %807 = vmatpush1.bf16.msra.mxu0 0
        %808 = vmatprep.subr.bf16.mxu0 0
        %809 = vmatpush1.bf16.msra.mxu0 0
        %810 = vmatprep.subr.bf16.mxu0 0
        %811 = vmatpush1.bf16.msra.mxu0 0
        %812 = vmatprep.subr.bf16.mxu0 0
        %813 = vmatpush1.bf16.msra.mxu0 0
        %814 = vmatprep.subr.bf16.mxu0 0
        %815 = vmatpush1.bf16.msra.mxu0 0
        %816 = vmatprep.subr.bf16.mxu0 0
        %817 = vmatpush1.bf16.msra.mxu0 0
        %818 = vmatprep.subr.bf16.mxu0 0
        %819 = vmatpush1.bf16.msra.mxu0 0
        %820 = vmatprep.subr.bf16.mxu0 0
        %821 = vmatpush1.bf16.msra.mxu0 0
        %822 = vmatprep.mubr.bf16.mxu0 0
        %823 = vmatmul.mubr.bf16.gmra.mrb[0].mxu0 %v770
        %v824 = vpop.f32.mrb[0].mxu0
        %v825 = vadd.f32 0.0, %v824
        %v826 = vpop.f32.mrb[0].mxu0
        %v827 = vpop.f32.mrb[0].mxu0
        %v828 = vadd.f32 0.0, %v827
        %v829 = vpop.f32.mrb[0].mxu0
        %830 = vmatprep.mubr.bf16.mxu0 0
        %831 = vmatmul.mubr.bf16.gmra.mrb[0].mxu0 %v773
        %v832 = vpop.f32.mrb[0].mxu0
        %v833 = vadd.f32 0.0, %v832
        %v834 = vpop.f32.mrb[0].mxu0
        %v835 = vpop.f32.mrb[0].mxu0
        %v836 = vadd.f32 0.0, %v835
        %v837 = vpop.f32.mrb[0].mxu0
        %838 = vmatprep.mubr.bf16.mxu0 0
        %839 = vmatmul.mubr.bf16.gmra.mrb[0].mxu0 %v776
        %v840 = vpop.f32.mrb[0].mxu0
        %v841 = vadd.f32 0.0, %v840
        %v842 = vpop.f32.mrb[0].mxu0
        %v843 = vpop.f32.mrb[0].mxu0
        %v844 = vadd.f32 0.0, %v843
        %v845 = vpop.f32.mrb[0].mxu0
        %846 = vmatprep.mubr.bf16.mxu0 0
        %847 = vmatmul.mubr.bf16.gmra.mrb[0].mxu0 %v779
        %v848 = vpop.f32.mrb[0].mxu0
        %v849 = vadd.f32 0.0, %v848
        %v850 = vpop.f32.mrb[0].mxu0
        %v851 = vpop.f32.mrb[0].mxu0
        %v852 = vadd.f32 0.0, %v851
        %v853 = vpop.f32.mrb[0].mxu0
        %854 = vmatprep.mubr.bf16.mxu0 0
        %855 = vmatmul.mubr.bf16.gmra.mrb[0].mxu0 %v782
        %v856 = vpop.f32.mrb[0].mxu0
        %v857 = vadd.f32 0.0, %v856
        %v858 = vpop.f32.mrb[0].mxu0
        %v859 = vpop.f32.mrb[0].mxu0
        %v860 = vadd.f32 0.0, %v859
        %v861 = vpop.f32.mrb[0].mxu0
        %862 = vmatprep.mubr.bf16.mxu0 0
        %863 = vmatmul.mubr.bf16.gmra.mrb[0].mxu0 %v785
        %v864 = vpop.f32.mrb[0].mxu0
        %v865 = vadd.f32 0.0, %v864
        %v866 = vpop.f32.mrb[0].mxu0
        %v867 = vpop.f32.mrb[0].mxu0
        %v868 = vadd.f32 0.0, %v867
        %v869 = vpop.f32.mrb[0].mxu0
        %870 = vmatprep.mubr.bf16.mxu0 0
        %871 = vmatmul.mubr.bf16.gmra.mrb[0].mxu0 %v788
        %v872 = vpop.f32.mrb[0].mxu0
        %v873 = vadd.f32 0.0, %v872
        %v874 = vpop.f32.mrb[0].mxu0
        %v875 = vpop.f32.mrb[0].mxu0
        %v876 = vpop.f32.mrb[0].mxu0
        %877 = vdwg.mxu0
        %v878 = vadd.f32 %v636, %v825
        %v879 = vadd.f32 %v639, %v828
        %v880 = vadd.f32 %v644, %v833
        %v881 = vadd.f32 %v647, %v836
        %v882 = vadd.f32 %v652, %v841
        %v883 = vadd.f32 %v655, %v844
        %v884 = vadd.f32 %v660, %v849
        %v885 = vadd.f32 %v663, %v852
        %v886 = vadd.f32 %v668, %v857
        %v887 = vadd.f32 %v671, %v860
        %v888 = vadd.f32 %v676, %v865
        %v889 = vadd.f32 %v679, %v868
        %v890 = vadd.f32 %v684, %v873
        %s891 = scalar_lea.vmem %s272, 156
        %v892 = vld [vmem:[%s891] sm:$0xf]
        %v893 = vld [vmem:[%s891 + $0x4] sm:$0xf]
        %v894 = vld [vmem:[%s891 + $0x8] sm:$0xf]
        %v895 = vld [vmem:[%s891 + $0xc] sm:$0xf]
        %v896 = vld [vmem:[%s891 + $0x10] sm:$0xf]
        %v897 = vld [vmem:[%s891 + $0x14] sm:$0xf]
        %v898 = vld [vmem:[%s891 + $0x18] sm:$0xf]
        %v899 = vld [vmem:[%s891 + $0x1c] sm:$0xf]
        %v900 = vld [vmem:[%s891 + $0x20] sm:$0xf]
        %v901 = vld [vmem:[%s891 + $0x24] sm:$0xf]
        %v902 = vld [vmem:[%s891 + $0x28] sm:$0xf]
        %v903 = vld [vmem:[%s891 + $0x2c] sm:$0xf]
        %v904 = vld [vmem:[%s891 + $0x30] sm:$0x3]
        %s905 = scalar_lea.vmem %s277, 96
        %v906 = vld [vmem:[%s905] sm:$0xf]
        %v907 = vld [vmem:[%s905 + $0x4] sm:$0xf]
        %v908 = vld [vmem:[%s905 + $0x8] sm:$0xf]
        %v909 = vld [vmem:[%s905 + $0xc] sm:$0xf]
        %v910 = vld [vmem:[%s905 + $0x10] sm:$0xf]
        %v911 = vld [vmem:[%s905 + $0x14] sm:$0xf]
        %v912 = vld [vmem:[%s905 + $0x18] sm:$0xf]
        %v913 = vld [vmem:[%s905 + $0x1c] sm:$0xf]
        %v927 = vunpack.c.l.b16 %v892
        %v928 = vunpack.c.l.b16 %v893
        %v929 = vunpack.c.l.b16 %v894
        %v930 = vunpack.c.l.b16 %v895
        %v931 = vunpack.c.l.b16 %v896
        %v932 = vunpack.c.l.b16 %v897
        %v933 = vunpack.c.l.b16 %v898
        %v934 = vunpack.c.l.b16 %v899
        %v935 = vunpack.c.l.b16 %v900
        %v936 = vunpack.c.l.b16 %v901
        %v937 = vunpack.c.l.b16 %v902
        %v938 = vunpack.c.l.b16 %v903
        %v939 = vunpack.c.l.b16 %v904
        %v940 = vpack.c.b16 %v928, %v927
        %v941 = vpack.c.b16 %v930, %v929
        %v942 = vpack.c.b16 %v932, %v931
        %v943 = vpack.c.b16 %v934, %v933
        %v944 = vpack.c.b16 %v936, %v935
        %v945 = vpack.c.b16 %v938, %v937
        %v946 = vpack.c.b16 %v939, %v939
        %v955 = vunpack.c.l.b16 %v906
        %v956 = vunpack.c.l.b16 %v907
        %v957 = vunpack.c.l.b16 %v908
        %v958 = vunpack.c.l.b16 %v909
        %v959 = vunpack.c.l.b16 %v910
        %v960 = vunpack.c.l.b16 %v911
        %v961 = vunpack.c.l.b16 %v912
        %v962 = vunpack.c.l.b16 %v913
        %v963 = vpack.c.b16 %v956, %v955
        %v964 = vpack.c.b16 %v958, %v957
        %v965 = vpack.c.b16 %v960, %v959
        %v966 = vpack.c.b16 %v962, %v961
        %v972 = vsel %vm296, %v940, 0
        %v975 = vsel %vm296, %v941, 0
        %v978 = vsel %vm296, %v942, 0
        %v981 = vsel %vm296, %v943, 0
        %v984 = vsel %vm296, %v944, 0
        %v987 = vsel %vm296, %v945, 0
        %v990 = vsel %vm296, %v946, 0
        %992 = vmatprep.subr.bf16.mxu0 0
        %993 = vmatpush1.bf16.msra.mxu0 %v963
        %994 = vmatprep.subr.bf16.mxu0 0
        %995 = vmatpush1.bf16.msra.mxu0 %v964
        %996 = vmatprep.subr.bf16.mxu0 0
        %997 = vmatpush1.bf16.msra.mxu0 %v965
        %998 = vmatprep.subr.bf16.mxu0 0
        %999 = vmatpush1.bf16.msra.mxu0 %v966
        %1000 = vmatprep.subr.bf16.mxu0 0
        %1001 = vmatpush1.bf16.msra.mxu0 0
        %1002 = vmatprep.subr.bf16.mxu0 0
        %1003 = vmatpush1.bf16.msra.mxu0 0
        %1004 = vmatprep.subr.bf16.mxu0 0
        %1005 = vmatpush1.bf16.msra.mxu0 0
        %1006 = vmatprep.subr.bf16.mxu0 0
        %1007 = vmatpush1.bf16.msra.mxu0 0
        %1008 = vmatprep.subr.bf16.mxu0 0
        %1009 = vmatpush1.bf16.msra.mxu0 0
        %1010 = vmatprep.subr.bf16.mxu0 0
        %1011 = vmatpush1.bf16.msra.mxu0 0
        %1012 = vmatprep.subr.bf16.mxu0 0
        %1013 = vmatpush1.bf16.msra.mxu0 0
        %1014 = vmatprep.subr.bf16.mxu0 0
        %1015 = vmatpush1.bf16.msra.mxu0 0
        %1016 = vmatprep.subr.bf16.mxu0 0
        %1017 = vmatpush1.bf16.msra.mxu0 0
        %1018 = vmatprep.subr.bf16.mxu0 0
        %1019 = vmatpush1.bf16.msra.mxu0 0
        %1020 = vmatprep.subr.bf16.mxu0 0
        %1021 = vmatpush1.bf16.msra.mxu0 0
        %1022 = vmatprep.subr.bf16.mxu0 0
        %1023 = vmatpush1.bf16.msra.mxu0 0
        %1024 = vmatprep.mubr.bf16.mxu0 0
        %1025 = vmatmul.mubr.bf16.gmra.mrb[0].mxu0 %v972
        %v1026 = vpop.f32.mrb[0].mxu0
        %v1027 = vadd.f32 0.0, %v1026
        %v1028 = vpop.f32.mrb[0].mxu0
        %v1029 = vpop.f32.mrb[0].mxu0
        %v1030 = vadd.f32 0.0, %v1029
        %v1031 = vpop.f32.mrb[0].mxu0
        %1032 = vmatprep.mubr.bf16.mxu0 0
        %1033 = vmatmul.mubr.bf16.gmra.mrb[0].mxu0 %v975
        %v1034 = vpop.f32.mrb[0].mxu0
        %v1035 = vadd.f32 0.0, %v1034
        %v1036 = vpop.f32.mrb[0].mxu0
        %v1037 = vpop.f32.mrb[0].mxu0
        %v1038 = vadd.f32 0.0, %v1037
        %v1039 = vpop.f32.mrb[0].mxu0
        %1040 = vmatprep.mubr.bf16.mxu0 0
        %1041 = vmatmul.mubr.bf16.gmra.mrb[0].mxu0 %v978
        %v1042 = vpop.f32.mrb[0].mxu0
        %v1043 = vadd.f32 0.0, %v1042
        %v1044 = vpop.f32.mrb[0].mxu0
        %v1045 = vpop.f32.mrb[0].mxu0
        %v1046 = vadd.f32 0.0, %v1045
        %v1047 = vpop.f32.mrb[0].mxu0
        %1048 = vmatprep.mubr.bf16.mxu0 0
        %1049 = vmatmul.mubr.bf16.gmra.mrb[0].mxu0 %v981
        %v1050 = vpop.f32.mrb[0].mxu0
        %v1051 = vadd.f32 0.0, %v1050
        %v1052 = vpop.f32.mrb[0].mxu0
        %v1053 = vpop.f32.mrb[0].mxu0
        %v1054 = vadd.f32 0.0, %v1053
        %v1055 = vpop.f32.mrb[0].mxu0
        %1056 = vmatprep.mubr.bf16.mxu0 0
        %1057 = vmatmul.mubr.bf16.gmra.mrb[0].mxu0 %v984
        %v1058 = vpop.f32.mrb[0].mxu0
        %v1059 = vadd.f32 0.0, %v1058
        %v1060 = vpop.f32.mrb[0].mxu0
        %v1061 = vpop.f32.mrb[0].mxu0
        %v1062 = vadd.f32 0.0, %v1061
        %v1063 = vpop.f32.mrb[0].mxu0
        %1064 = vmatprep.mubr.bf16.mxu0 0
        %1065 = vmatmul.mubr.bf16.gmra.mrb[0].mxu0 %v987
        %v1066 = vpop.f32.mrb[0].mxu0
        %v1067 = vadd.f32 0.0, %v1066
        %v1068 = vpop.f32.mrb[0].mxu0
        %v1069 = vpop.f32.mrb[0].mxu0
        %v1070 = vadd.f32 0.0, %v1069
        %v1071 = vpop.f32.mrb[0].mxu0
        %1072 = vmatprep.mubr.bf16.mxu0 0
        %1073 = vmatmul.mubr.bf16.gmra.mrb[0].mxu0 %v990
        %v1074 = vpop.f32.mrb[0].mxu0
        %v1075 = vadd.f32 0.0, %v1074
        %v1076 = vpop.f32.mrb[0].mxu0
        %v1077 = vpop.f32.mrb[0].mxu0
        %v1078 = vpop.f32.mrb[0].mxu0
        %1079 = vdwg.mxu0
        %v1080 = vadd.f32 %v878, %v1027
        %v1081 = vadd.f32 %v879, %v1030
        %v1082 = vadd.f32 %v880, %v1035
        %v1083 = vadd.f32 %v881, %v1038
        %v1084 = vadd.f32 %v882, %v1043
        %v1085 = vadd.f32 %v883, %v1046
        %v1086 = vadd.f32 %v884, %v1051
        %v1087 = vadd.f32 %v885, %v1054
        %v1088 = vadd.f32 %v886, %v1059
        %v1089 = vadd.f32 %v887, %v1062
        %v1090 = vadd.f32 %v888, %v1067
        %v1091 = vadd.f32 %v889, %v1070
        %v1092 = vadd.f32 %v890, %v1075
        %s1093 = scalar_lea.vmem %s272, 208
        %v1094 = vld [vmem:[%s1093] sm:$0xf]
        %v1095 = vld [vmem:[%s1093 + $0x4] sm:$0xf]
        %v1096 = vld [vmem:[%s1093 + $0x8] sm:$0xf]
        %v1097 = vld [vmem:[%s1093 + $0xc] sm:$0xf]
        %v1098 = vld [vmem:[%s1093 + $0x10] sm:$0xf]
        %v1099 = vld [vmem:[%s1093 + $0x14] sm:$0xf]
        %v1100 = vld [vmem:[%s1093 + $0x18] sm:$0xf]
        %v1101 = vld [vmem:[%s1093 + $0x1c] sm:$0xf]
        %v1102 = vld [vmem:[%s1093 + $0x20] sm:$0xf]
        %v1103 = vld [vmem:[%s1093 + $0x24] sm:$0xf]
        %v1104 = vld [vmem:[%s1093 + $0x28] sm:$0xf]
        %v1105 = vld [vmem:[%s1093 + $0x2c] sm:$0xf]
        %v1106 = vld [vmem:[%s1093 + $0x30] sm:$0x3]
        %s1107 = scalar_lea.vmem %s277, 128
        %v1108 = vld [vmem:[%s1107] sm:$0xf]
        %v1109 = vld [vmem:[%s1107 + $0x4] sm:$0xf]
        %v1110 = vld [vmem:[%s1107 + $0x8] sm:$0xf]
        %v1111 = vld [vmem:[%s1107 + $0xc] sm:$0xf]
        %v1112 = vld [vmem:[%s1107 + $0x10] sm:$0xf]
        %v1113 = vld [vmem:[%s1107 + $0x14] sm:$0xf]
        %v1114 = vld [vmem:[%s1107 + $0x18] sm:$0xf]
        %v1115 = vld [vmem:[%s1107 + $0x1c] sm:$0xf]
        %v1129 = vunpack.c.l.b16 %v1094
        %v1130 = vunpack.c.l.b16 %v1095
        %v1131 = vunpack.c.l.b16 %v1096
        %v1132 = vunpack.c.l.b16 %v1097
        %v1133 = vunpack.c.l.b16 %v1098
        %v1134 = vunpack.c.l.b16 %v1099
        %v1135 = vunpack.c.l.b16 %v1100
        %v1136 = vunpack.c.l.b16 %v1101
        %v1137 = vunpack.c.l.b16 %v1102
        %v1138 = vunpack.c.l.b16 %v1103
        %v1139 = vunpack.c.l.b16 %v1104
        %v1140 = vunpack.c.l.b16 %v1105
        %v1141 = vunpack.c.l.b16 %v1106
        %v1142 = vpack.c.b16 %v1130, %v1129
        %v1143 = vpack.c.b16 %v1132, %v1131
        %v1144 = vpack.c.b16 %v1134, %v1133
        %v1145 = vpack.c.b16 %v1136, %v1135
        %v1146 = vpack.c.b16 %v1138, %v1137
        %v1147 = vpack.c.b16 %v1140, %v1139
        %v1148 = vpack.c.b16 %v1141, %v1141
        %v1157 = vunpack.c.l.b16 %v1108
        %v1158 = vunpack.c.l.b16 %v1109
        %v1159 = vunpack.c.l.b16 %v1110
        %v1160 = vunpack.c.l.b16 %v1111
        %v1161 = vunpack.c.l.b16 %v1112
        %v1162 = vunpack.c.l.b16 %v1113
        %v1163 = vunpack.c.l.b16 %v1114
        %v1164 = vunpack.c.l.b16 %v1115
        %v1165 = vpack.c.b16 %v1158, %v1157
        %v1166 = vpack.c.b16 %v1160, %v1159
        %v1167 = vpack.c.b16 %v1162, %v1161
        %v1168 = vpack.c.b16 %v1164, %v1163
        %v1174 = vsel %vm296, %v1142, 0
        %v1177 = vsel %vm296, %v1143, 0
        %v1180 = vsel %vm296, %v1144, 0
        %v1183 = vsel %vm296, %v1145, 0
        %v1186 = vsel %vm296, %v1146, 0
        %v1189 = vsel %vm296, %v1147, 0
        %v1192 = vsel %vm296, %v1148, 0
        %1194 = vmatprep.subr.bf16.mxu0 0
        %1195 = vmatpush1.bf16.msra.mxu0 %v1165
        %1196 = vmatprep.subr.bf16.mxu0 0
        %1197 = vmatpush1.bf16.msra.mxu0 %v1166
        %1198 = vmatprep.subr.bf16.mxu0 0
        %1199 = vmatpush1.bf16.msra.mxu0 %v1167
        %1200 = vmatprep.subr.bf16.mxu0 0
        %1201 = vmatpush1.bf16.msra.mxu0 %v1168
        %1202 = vmatprep.subr.bf16.mxu0 0
        %1203 = vmatpush1.bf16.msra.mxu0 0
        %1204 = vmatprep.subr.bf16.mxu0 0
        %1205 = vmatpush1.bf16.msra.mxu0 0
        %1206 = vmatprep.subr.bf16.mxu0 0
        %1207 = vmatpush1.bf16.msra.mxu0 0
        %1208 = vmatprep.subr.bf16.mxu0 0
        %1209 = vmatpush1.bf16.msra.mxu0 0
        %1210 = vmatprep.subr.bf16.mxu0 0
        %1211 = vmatpush1.bf16.msra.mxu0 0
        %1212 = vmatprep.subr.bf16.mxu0 0
        %1213 = vmatpush1.bf16.msra.mxu0 0
        %1214 = vmatprep.subr.bf16.mxu0 0
        %1215 = vmatpush1.bf16.msra.mxu0 0
        %1216 = vmatprep.subr.bf16.mxu0 0
        %1217 = vmatpush1.bf16.msra.mxu0 0
        %1218 = vmatprep.subr.bf16.mxu0 0
        %1219 = vmatpush1.bf16.msra.mxu0 0
        %1220 = vmatprep.subr.bf16.mxu0 0
        %1221 = vmatpush1.bf16.msra.mxu0 0
        %1222 = vmatprep.subr.bf16.mxu0 0
        %1223 = vmatpush1.bf16.msra.mxu0 0
        %1224 = vmatprep.subr.bf16.mxu0 0
        %1225 = vmatpush1.bf16.msra.mxu0 0
        %1226 = vmatprep.mubr.bf16.mxu0 0
        %1227 = vmatmul.mubr.bf16.gmra.mrb[0].mxu0 %v1174
        %v1228 = vpop.f32.mrb[0].mxu0
        %v1229 = vadd.f32 0.0, %v1228
        %v1230 = vpop.f32.mrb[0].mxu0
        %v1231 = vpop.f32.mrb[0].mxu0
        %v1232 = vadd.f32 0.0, %v1231
        %v1233 = vpop.f32.mrb[0].mxu0
        %1234 = vmatprep.mubr.bf16.mxu0 0
        %1235 = vmatmul.mubr.bf16.gmra.mrb[0].mxu0 %v1177
        %v1236 = vpop.f32.mrb[0].mxu0
        %v1237 = vadd.f32 0.0, %v1236
        %v1238 = vpop.f32.mrb[0].mxu0
        %v1239 = vpop.f32.mrb[0].mxu0
        %v1240 = vadd.f32 0.0, %v1239
        %v1241 = vpop.f32.mrb[0].mxu0
        %1242 = vmatprep.mubr.bf16.mxu0 0
        %1243 = vmatmul.mubr.bf16.gmra.mrb[0].mxu0 %v1180
        %v1244 = vpop.f32.mrb[0].mxu0
        %v1245 = vadd.f32 0.0, %v1244
        %v1246 = vpop.f32.mrb[0].mxu0
        %v1247 = vpop.f32.mrb[0].mxu0
        %v1248 = vadd.f32 0.0, %v1247
        %v1249 = vpop.f32.mrb[0].mxu0
        %1250 = vmatprep.mubr.bf16.mxu0 0
        %1251 = vmatmul.mubr.bf16.gmra.mrb[0].mxu0 %v1183
        %v1252 = vpop.f32.mrb[0].mxu0
        %v1253 = vadd.f32 0.0, %v1252
        %v1254 = vpop.f32.mrb[0].mxu0
        %v1255 = vpop.f32.mrb[0].mxu0
        %v1256 = vadd.f32 0.0, %v1255
        %v1257 = vpop.f32.mrb[0].mxu0
        %1258 = vmatprep.mubr.bf16.mxu0 0
        %1259 = vmatmul.mubr.bf16.gmra.mrb[0].mxu0 %v1186
        %v1260 = vpop.f32.mrb[0].mxu0
        %v1261 = vadd.f32 0.0, %v1260
        %v1262 = vpop.f32.mrb[0].mxu0
        %v1263 = vpop.f32.mrb[0].mxu0
        %v1264 = vadd.f32 0.0, %v1263
        %v1265 = vpop.f32.mrb[0].mxu0
        %1266 = vmatprep.mubr.bf16.mxu0 0
        %1267 = vmatmul.mubr.bf16.gmra.mrb[0].mxu0 %v1189
        %v1268 = vpop.f32.mrb[0].mxu0
        %v1269 = vadd.f32 0.0, %v1268
        %v1270 = vpop.f32.mrb[0].mxu0
        %v1271 = vpop.f32.mrb[0].mxu0
        %v1272 = vadd.f32 0.0, %v1271
        %v1273 = vpop.f32.mrb[0].mxu0
        %1274 = vmatprep.mubr.bf16.mxu0 0
        %1275 = vmatmul.mubr.bf16.gmra.mrb[0].mxu0 %v1192
        %v1276 = vpop.f32.mrb[0].mxu0
        %v1277 = vadd.f32 0.0, %v1276
        %v1278 = vpop.f32.mrb[0].mxu0
        %v1279 = vpop.f32.mrb[0].mxu0
        %v1280 = vpop.f32.mrb[0].mxu0
        %1281 = vdwg.mxu0
        %v1282 = vadd.f32 %v1080, %v1229
        %v1283 = vadd.f32 %v1081, %v1232
        %v1284 = vadd.f32 %v1082, %v1237
        %v1285 = vadd.f32 %v1083, %v1240
        %v1286 = vadd.f32 %v1084, %v1245
        %v1287 = vadd.f32 %v1085, %v1248
        %v1288 = vadd.f32 %v1086, %v1253
        %v1289 = vadd.f32 %v1087, %v1256
        %v1290 = vadd.f32 %v1088, %v1261
        %v1291 = vadd.f32 %v1089, %v1264
        %v1292 = vadd.f32 %v1090, %v1269
        %v1293 = vadd.f32 %v1091, %v1272
        %v1294 = vadd.f32 %v1092, %v1277
        %s1295 = scalar_lea.vmem %s272, 260
        %v1296 = vld [vmem:[%s1295] sm:$0xf]
        %v1297 = vld [vmem:[%s1295 + $0x4] sm:$0xf]
        %v1298 = vld [vmem:[%s1295 + $0x8] sm:$0xf]
        %v1299 = vld [vmem:[%s1295 + $0xc] sm:$0xf]
        %v1300 = vld [vmem:[%s1295 + $0x10] sm:$0xf]
        %v1301 = vld [vmem:[%s1295 + $0x14] sm:$0xf]
        %v1302 = vld [vmem:[%s1295 + $0x18] sm:$0xf]
        %v1303 = vld [vmem:[%s1295 + $0x1c] sm:$0xf]
        %v1304 = vld [vmem:[%s1295 + $0x20] sm:$0xf]
        %v1305 = vld [vmem:[%s1295 + $0x24] sm:$0xf]
        %v1306 = vld [vmem:[%s1295 + $0x28] sm:$0xf]
        %v1307 = vld [vmem:[%s1295 + $0x2c] sm:$0xf]
        %v1308 = vld [vmem:[%s1295 + $0x30] sm:$0x3]
        %s1309 = scalar_lea.vmem %s277, 160
        %v1310 = vld [vmem:[%s1309] sm:$0xf]
        %v1311 = vld [vmem:[%s1309 + $0x4] sm:$0xf]
        %v1312 = vld [vmem:[%s1309 + $0x8] sm:$0xf]
        %v1313 = vld [vmem:[%s1309 + $0xc] sm:$0xf]
        %v1314 = vld [vmem:[%s1309 + $0x10] sm:$0xf]
        %v1315 = vld [vmem:[%s1309 + $0x14] sm:$0xf]
        %v1316 = vld [vmem:[%s1309 + $0x18] sm:$0xf]
        %v1317 = vld [vmem:[%s1309 + $0x1c] sm:$0xf]
        %v1331 = vunpack.c.l.b16 %v1296
        %v1332 = vunpack.c.l.b16 %v1297
        %v1333 = vunpack.c.l.b16 %v1298
        %v1334 = vunpack.c.l.b16 %v1299
        %v1335 = vunpack.c.l.b16 %v1300
        %v1336 = vunpack.c.l.b16 %v1301
        %v1337 = vunpack.c.l.b16 %v1302
        %v1338 = vunpack.c.l.b16 %v1303
        %v1339 = vunpack.c.l.b16 %v1304
        %v1340 = vunpack.c.l.b16 %v1305
        %v1341 = vunpack.c.l.b16 %v1306
        %v1342 = vunpack.c.l.b16 %v1307
        %v1343 = vunpack.c.l.b16 %v1308
        %v1344 = vpack.c.b16 %v1332, %v1331
        %v1345 = vpack.c.b16 %v1334, %v1333
        %v1346 = vpack.c.b16 %v1336, %v1335
        %v1347 = vpack.c.b16 %v1338, %v1337
        %v1348 = vpack.c.b16 %v1340, %v1339
        %v1349 = vpack.c.b16 %v1342, %v1341
        %v1350 = vpack.c.b16 %v1343, %v1343
        %v1359 = vunpack.c.l.b16 %v1310
        %v1360 = vunpack.c.l.b16 %v1311
        %v1361 = vunpack.c.l.b16 %v1312
        %v1362 = vunpack.c.l.b16 %v1313
        %v1363 = vunpack.c.l.b16 %v1314
        %v1364 = vunpack.c.l.b16 %v1315
        %v1365 = vunpack.c.l.b16 %v1316
        %v1366 = vunpack.c.l.b16 %v1317
        %v1367 = vpack.c.b16 %v1360, %v1359
        %v1368 = vpack.c.b16 %v1362, %v1361
        %v1369 = vpack.c.b16 %v1364, %v1363
        %v1370 = vpack.c.b16 %v1366, %v1365
        %v1376 = vsel %vm296, %v1344, 0
        %v1379 = vsel %vm296, %v1345, 0
        %v1382 = vsel %vm296, %v1346, 0
        %v1385 = vsel %vm296, %v1347, 0
        %v1388 = vsel %vm296, %v1348, 0
        %v1391 = vsel %vm296, %v1349, 0
        %v1394 = vsel %vm296, %v1350, 0
        %1396 = vmatprep.subr.bf16.mxu0 0
        %1397 = vmatpush1.bf16.msra.mxu0 %v1367
        %1398 = vmatprep.subr.bf16.mxu0 0
        %1399 = vmatpush1.bf16.msra.mxu0 %v1368
        %1400 = vmatprep.subr.bf16.mxu0 0
        %1401 = vmatpush1.bf16.msra.mxu0 %v1369
        %1402 = vmatprep.subr.bf16.mxu0 0
        %1403 = vmatpush1.bf16.msra.mxu0 %v1370
        %1404 = vmatprep.subr.bf16.mxu0 0
        %1405 = vmatpush1.bf16.msra.mxu0 0
        %1406 = vmatprep.subr.bf16.mxu0 0
        %1407 = vmatpush1.bf16.msra.mxu0 0
        %1408 = vmatprep.subr.bf16.mxu0 0
        %1409 = vmatpush1.bf16.msra.mxu0 0
        %1410 = vmatprep.subr.bf16.mxu0 0
        %1411 = vmatpush1.bf16.msra.mxu0 0
        %1412 = vmatprep.subr.bf16.mxu0 0
        %1413 = vmatpush1.bf16.msra.mxu0 0
        %1414 = vmatprep.subr.bf16.mxu0 0
        %1415 = vmatpush1.bf16.msra.mxu0 0
        %1416 = vmatprep.subr.bf16.mxu0 0
        %1417 = vmatpush1.bf16.msra.mxu0 0
        %1418 = vmatprep.subr.bf16.mxu0 0
        %1419 = vmatpush1.bf16.msra.mxu0 0
        %1420 = vmatprep.subr.bf16.mxu0 0
        %1421 = vmatpush1.bf16.msra.mxu0 0
        %1422 = vmatprep.subr.bf16.mxu0 0
        %1423 = vmatpush1.bf16.msra.mxu0 0
        %1424 = vmatprep.subr.bf16.mxu0 0
        %1425 = vmatpush1.bf16.msra.mxu0 0
        %1426 = vmatprep.subr.bf16.mxu0 0
        %1427 = vmatpush1.bf16.msra.mxu0 0
        %1428 = vmatprep.mubr.bf16.mxu0 0
        %1429 = vmatmul.mubr.bf16.gmra.mrb[0].mxu0 %v1376
        %v1430 = vpop.f32.mrb[0].mxu0
        %v1431 = vadd.f32 0.0, %v1430
        %v1432 = vpop.f32.mrb[0].mxu0
        %v1433 = vpop.f32.mrb[0].mxu0
        %v1434 = vadd.f32 0.0, %v1433
        %v1435 = vpop.f32.mrb[0].mxu0
        %1436 = vmatprep.mubr.bf16.mxu0 0
        %1437 = vmatmul.mubr.bf16.gmra.mrb[0].mxu0 %v1379
        %v1438 = vpop.f32.mrb[0].mxu0
        %v1439 = vadd.f32 0.0, %v1438
        %v1440 = vpop.f32.mrb[0].mxu0
        %v1441 = vpop.f32.mrb[0].mxu0
        %v1442 = vadd.f32 0.0, %v1441
        %v1443 = vpop.f32.mrb[0].mxu0
        %1444 = vmatprep.mubr.bf16.mxu0 0
        %1445 = vmatmul.mubr.bf16.gmra.mrb[0].mxu0 %v1382
        %v1446 = vpop.f32.mrb[0].mxu0
        %v1447 = vadd.f32 0.0, %v1446
        %v1448 = vpop.f32.mrb[0].mxu0
        %v1449 = vpop.f32.mrb[0].mxu0
        %v1450 = vadd.f32 0.0, %v1449
        %v1451 = vpop.f32.mrb[0].mxu0
        %1452 = vmatprep.mubr.bf16.mxu0 0
        %1453 = vmatmul.mubr.bf16.gmra.mrb[0].mxu0 %v1385
        %v1454 = vpop.f32.mrb[0].mxu0
        %v1455 = vadd.f32 0.0, %v1454
        %v1456 = vpop.f32.mrb[0].mxu0
        %v1457 = vpop.f32.mrb[0].mxu0
        %v1458 = vadd.f32 0.0, %v1457
        %v1459 = vpop.f32.mrb[0].mxu0
        %1460 = vmatprep.mubr.bf16.mxu0 0
        %1461 = vmatmul.mubr.bf16.gmra.mrb[0].mxu0 %v1388
        %v1462 = vpop.f32.mrb[0].mxu0
        %v1463 = vadd.f32 0.0, %v1462
        %v1464 = vpop.f32.mrb[0].mxu0
        %v1465 = vpop.f32.mrb[0].mxu0
        %v1466 = vadd.f32 0.0, %v1465
        %v1467 = vpop.f32.mrb[0].mxu0
        %1468 = vmatprep.mubr.bf16.mxu0 0
        %1469 = vmatmul.mubr.bf16.gmra.mrb[0].mxu0 %v1391
        %v1470 = vpop.f32.mrb[0].mxu0
        %v1471 = vadd.f32 0.0, %v1470
        %v1472 = vpop.f32.mrb[0].mxu0
        %v1473 = vpop.f32.mrb[0].mxu0
        %v1474 = vadd.f32 0.0, %v1473
        %v1475 = vpop.f32.mrb[0].mxu0
        %1476 = vmatprep.mubr.bf16.mxu0 0
        %1477 = vmatmul.mubr.bf16.gmra.mrb[0].mxu0 %v1394
        %v1478 = vpop.f32.mrb[0].mxu0
        %v1479 = vadd.f32 0.0, %v1478
        %v1480 = vpop.f32.mrb[0].mxu0
        %v1481 = vpop.f32.mrb[0].mxu0
        %v1482 = vpop.f32.mrb[0].mxu0
        %1483 = vdwg.mxu0
        %v1484 = vadd.f32 %v1282, %v1431
        %v1485 = vadd.f32 %v1283, %v1434
        %v1486 = vadd.f32 %v1284, %v1439
        %v1487 = vadd.f32 %v1285, %v1442
        %v1488 = vadd.f32 %v1286, %v1447
        %v1489 = vadd.f32 %v1287, %v1450
        %v1490 = vadd.f32 %v1288, %v1455
        %v1491 = vadd.f32 %v1289, %v1458
        %v1492 = vadd.f32 %v1290, %v1463
        %v1493 = vadd.f32 %v1291, %v1466
        %v1494 = vadd.f32 %v1292, %v1471
        %v1495 = vadd.f32 %v1293, %v1474
        %v1496 = vadd.f32 %v1294, %v1479
        %s1497 = scalar_lea.vmem %s272, 312
        %v1498 = vld [vmem:[%s1497] sm:$0xf]
        %v1499 = vld [vmem:[%s1497 + $0x4] sm:$0xf]
        %v1500 = vld [vmem:[%s1497 + $0x8] sm:$0xf]
        %v1501 = vld [vmem:[%s1497 + $0xc] sm:$0xf]
        %v1502 = vld [vmem:[%s1497 + $0x10] sm:$0xf]
        %v1503 = vld [vmem:[%s1497 + $0x14] sm:$0xf]
        %v1504 = vld [vmem:[%s1497 + $0x18] sm:$0xf]
        %v1505 = vld [vmem:[%s1497 + $0x1c] sm:$0xf]
        %v1506 = vld [vmem:[%s1497 + $0x20] sm:$0xf]
        %v1507 = vld [vmem:[%s1497 + $0x24] sm:$0xf]
        %v1508 = vld [vmem:[%s1497 + $0x28] sm:$0xf]
        %v1509 = vld [vmem:[%s1497 + $0x2c] sm:$0xf]
        %v1510 = vld [vmem:[%s1497 + $0x30] sm:$0x3]
        %s1511 = scalar_lea.vmem %s277, 192
        %v1512 = vld [vmem:[%s1511] sm:$0xf]
        %v1513 = vld [vmem:[%s1511 + $0x4] sm:$0xf]
        %v1514 = vld [vmem:[%s1511 + $0x8] sm:$0xf]
        %v1515 = vld [vmem:[%s1511 + $0xc] sm:$0xf]
        %v1516 = vld [vmem:[%s1511 + $0x10] sm:$0xf]
        %v1517 = vld [vmem:[%s1511 + $0x14] sm:$0xf]
        %v1518 = vld [vmem:[%s1511 + $0x18] sm:$0xf]
        %v1519 = vld [vmem:[%s1511 + $0x1c] sm:$0xf]
        %v1533 = vunpack.c.l.b16 %v1498
        %v1534 = vunpack.c.l.b16 %v1499
        %v1535 = vunpack.c.l.b16 %v1500
        %v1536 = vunpack.c.l.b16 %v1501
        %v1537 = vunpack.c.l.b16 %v1502
        %v1538 = vunpack.c.l.b16 %v1503
        %v1539 = vunpack.c.l.b16 %v1504
        %v1540 = vunpack.c.l.b16 %v1505
        %v1541 = vunpack.c.l.b16 %v1506
        %v1542 = vunpack.c.l.b16 %v1507
        %v1543 = vunpack.c.l.b16 %v1508
        %v1544 = vunpack.c.l.b16 %v1509
        %v1545 = vunpack.c.l.b16 %v1510
        %v1546 = vpack.c.b16 %v1534, %v1533
        %v1547 = vpack.c.b16 %v1536, %v1535
        %v1548 = vpack.c.b16 %v1538, %v1537
        %v1549 = vpack.c.b16 %v1540, %v1539
        %v1550 = vpack.c.b16 %v1542, %v1541
        %v1551 = vpack.c.b16 %v1544, %v1543
        %v1552 = vpack.c.b16 %v1545, %v1545
        %v1561 = vunpack.c.l.b16 %v1512
        %v1562 = vunpack.c.l.b16 %v1513
        %v1563 = vunpack.c.l.b16 %v1514
        %v1564 = vunpack.c.l.b16 %v1515
        %v1565 = vunpack.c.l.b16 %v1516
        %v1566 = vunpack.c.l.b16 %v1517
        %v1567 = vunpack.c.l.b16 %v1518
        %v1568 = vunpack.c.l.b16 %v1519
        %v1569 = vpack.c.b16 %v1562, %v1561
        %v1570 = vpack.c.b16 %v1564, %v1563
        %v1571 = vpack.c.b16 %v1566, %v1565
        %v1572 = vpack.c.b16 %v1568, %v1567
        %v1578 = vsel %vm296, %v1546, 0
        %v1581 = vsel %vm296, %v1547, 0
        %v1584 = vsel %vm296, %v1548, 0
        %v1587 = vsel %vm296, %v1549, 0
        %v1590 = vsel %vm296, %v1550, 0
        %v1593 = vsel %vm296, %v1551, 0
        %v1596 = vsel %vm296, %v1552, 0
        %1598 = vmatprep.subr.bf16.mxu0 0
        %1599 = vmatpush1.bf16.msra.mxu0 %v1569
        %1600 = vmatprep.subr.bf16.mxu0 0
        %1601 = vmatpush1.bf16.msra.mxu0 %v1570
        %1602 = vmatprep.subr.bf16.mxu0 0
        %1603 = vmatpush1.bf16.msra.mxu0 %v1571
        %1604 = vmatprep.subr.bf16.mxu0 0
        %1605 = vmatpush1.bf16.msra.mxu0 %v1572
        %1606 = vmatprep.subr.bf16.mxu0 0
        %1607 = vmatpush1.bf16.msra.mxu0 0
        %1608 = vmatprep.subr.bf16.mxu0 0
        %1609 = vmatpush1.bf16.msra.mxu0 0
        %1610 = vmatprep.subr.bf16.mxu0 0
        %1611 = vmatpush1.bf16.msra.mxu0 0
        %1612 = vmatprep.subr.bf16.mxu0 0
        %1613 = vmatpush1.bf16.msra.mxu0 0
        %1614 = vmatprep.subr.bf16.mxu0 0
        %1615 = vmatpush1.bf16.msra.mxu0 0
        %1616 = vmatprep.subr.bf16.mxu0 0
        %1617 = vmatpush1.bf16.msra.mxu0 0
        %1618 = vmatprep.subr.bf16.mxu0 0
        %1619 = vmatpush1.bf16.msra.mxu0 0
        %1620 = vmatprep.subr.bf16.mxu0 0
        %1621 = vmatpush1.bf16.msra.mxu0 0
        %1622 = vmatprep.subr.bf16.mxu0 0
        %1623 = vmatpush1.bf16.msra.mxu0 0
        %1624 = vmatprep.subr.bf16.mxu0 0
        %1625 = vmatpush1.bf16.msra.mxu0 0
        %1626 = vmatprep.subr.bf16.mxu0 0
        %1627 = vmatpush1.bf16.msra.mxu0 0
        %1628 = vmatprep.subr.bf16.mxu0 0
        %1629 = vmatpush1.bf16.msra.mxu0 0
        %1630 = vmatprep.mubr.bf16.mxu0 0
        %1631 = vmatmul.mubr.bf16.gmra.mrb[0].mxu0 %v1578
        %v1632 = vpop.f32.mrb[0].mxu0
        %v1633 = vadd.f32 0.0, %v1632
        %v1634 = vpop.f32.mrb[0].mxu0
        %v1635 = vpop.f32.mrb[0].mxu0
        %v1636 = vadd.f32 0.0, %v1635
        %v1637 = vpop.f32.mrb[0].mxu0
        %1638 = vmatprep.mubr.bf16.mxu0 0
        %1639 = vmatmul.mubr.bf16.gmra.mrb[0].mxu0 %v1581
        %v1640 = vpop.f32.mrb[0].mxu0
        %v1641 = vadd.f32 0.0, %v1640
        %v1642 = vpop.f32.mrb[0].mxu0
        %v1643 = vpop.f32.mrb[0].mxu0
        %v1644 = vadd.f32 0.0, %v1643
        %v1645 = vpop.f32.mrb[0].mxu0
        %1646 = vmatprep.mubr.bf16.mxu0 0
        %1647 = vmatmul.mubr.bf16.gmra.mrb[0].mxu0 %v1584
        %v1648 = vpop.f32.mrb[0].mxu0
        %v1649 = vadd.f32 0.0, %v1648
        %v1650 = vpop.f32.mrb[0].mxu0
        %v1651 = vpop.f32.mrb[0].mxu0
        %v1652 = vadd.f32 0.0, %v1651
        %v1653 = vpop.f32.mrb[0].mxu0
        %1654 = vmatprep.mubr.bf16.mxu0 0
        %1655 = vmatmul.mubr.bf16.gmra.mrb[0].mxu0 %v1587
        %v1656 = vpop.f32.mrb[0].mxu0
        %v1657 = vadd.f32 0.0, %v1656
        %v1658 = vpop.f32.mrb[0].mxu0
        %v1659 = vpop.f32.mrb[0].mxu0
        %v1660 = vadd.f32 0.0, %v1659
        %v1661 = vpop.f32.mrb[0].mxu0
        %1662 = vmatprep.mubr.bf16.mxu0 0
        %1663 = vmatmul.mubr.bf16.gmra.mrb[0].mxu0 %v1590
        %v1664 = vpop.f32.mrb[0].mxu0
        %v1665 = vadd.f32 0.0, %v1664
        %v1666 = vpop.f32.mrb[0].mxu0
        %v1667 = vpop.f32.mrb[0].mxu0
        %v1668 = vadd.f32 0.0, %v1667
        %v1669 = vpop.f32.mrb[0].mxu0
        %1670 = vmatprep.mubr.bf16.mxu0 0
        %1671 = vmatmul.mubr.bf16.gmra.mrb[0].mxu0 %v1593
        %v1672 = vpop.f32.mrb[0].mxu0
        %v1673 = vadd.f32 0.0, %v1672
        %v1674 = vpop.f32.mrb[0].mxu0
        %v1675 = vpop.f32.mrb[0].mxu0
        %v1676 = vadd.f32 0.0, %v1675
        %v1677 = vpop.f32.mrb[0].mxu0
        %1678 = vmatprep.mubr.bf16.mxu0 0
        %1679 = vmatmul.mubr.bf16.gmra.mrb[0].mxu0 %v1596
        %v1680 = vpop.f32.mrb[0].mxu0
        %v1681 = vadd.f32 0.0, %v1680
        %v1682 = vpop.f32.mrb[0].mxu0
        %v1683 = vpop.f32.mrb[0].mxu0
        %v1684 = vpop.f32.mrb[0].mxu0
        %1685 = vdwg.mxu0
        %v1686 = vadd.f32 %v1484, %v1633
        %v1687 = vadd.f32 %v1485, %v1636
        %v1688 = vadd.f32 %v1486, %v1641
        %v1689 = vadd.f32 %v1487, %v1644
        %v1690 = vadd.f32 %v1488, %v1649
        %v1691 = vadd.f32 %v1489, %v1652
        %v1692 = vadd.f32 %v1490, %v1657
        %v1693 = vadd.f32 %v1491, %v1660
        %v1694 = vadd.f32 %v1492, %v1665
        %v1695 = vadd.f32 %v1493, %v1668
        %v1696 = vadd.f32 %v1494, %v1673
        %v1697 = vadd.f32 %v1495, %v1676
        %v1698 = vadd.f32 %v1496, %v1681
        %s1699 = scalar_lea.vmem %s272, 364
        %v1700 = vld [vmem:[%s1699] sm:$0xf]
        %v1701 = vld [vmem:[%s1699 + $0x4] sm:$0xf]
        %v1702 = vld [vmem:[%s1699 + $0x8] sm:$0xf]
        %v1703 = vld [vmem:[%s1699 + $0xc] sm:$0xf]
        %v1704 = vld [vmem:[%s1699 + $0x10] sm:$0xf]
        %v1705 = vld [vmem:[%s1699 + $0x14] sm:$0xf]
        %v1706 = vld [vmem:[%s1699 + $0x18] sm:$0xf]
        %v1707 = vld [vmem:[%s1699 + $0x1c] sm:$0xf]
        %v1708 = vld [vmem:[%s1699 + $0x20] sm:$0xf]
        %v1709 = vld [vmem:[%s1699 + $0x24] sm:$0xf]
        %v1710 = vld [vmem:[%s1699 + $0x28] sm:$0xf]
        %v1711 = vld [vmem:[%s1699 + $0x2c] sm:$0xf]
        %v1712 = vld [vmem:[%s1699 + $0x30] sm:$0x3]
        %s1713 = scalar_lea.vmem %s277, 224
        %v1714 = vld [vmem:[%s1713] sm:$0xf]
        %v1715 = vld [vmem:[%s1713 + $0x4] sm:$0xf]
        %v1716 = vld [vmem:[%s1713 + $0x8] sm:$0xf]
        %v1717 = vld [vmem:[%s1713 + $0xc] sm:$0xf]
        %v1718 = vld [vmem:[%s1713 + $0x10] sm:$0xf]
        %v1719 = vld [vmem:[%s1713 + $0x14] sm:$0xf]
        %v1720 = vld [vmem:[%s1713 + $0x18] sm:$0xf]
        %v1721 = vld [vmem:[%s1713 + $0x1c] sm:$0xf]
        %v1735 = vunpack.c.l.b16 %v1700
        %v1736 = vunpack.c.l.b16 %v1701
        %v1737 = vunpack.c.l.b16 %v1702
        %v1738 = vunpack.c.l.b16 %v1703
        %v1739 = vunpack.c.l.b16 %v1704
        %v1740 = vunpack.c.l.b16 %v1705
        %v1741 = vunpack.c.l.b16 %v1706
        %v1742 = vunpack.c.l.b16 %v1707
        %v1743 = vunpack.c.l.b16 %v1708
        %v1744 = vunpack.c.l.b16 %v1709
        %v1745 = vunpack.c.l.b16 %v1710
        %v1746 = vunpack.c.l.b16 %v1711
        %v1747 = vunpack.c.l.b16 %v1712
        %v1748 = vpack.c.b16 %v1736, %v1735
        %v1749 = vpack.c.b16 %v1738, %v1737
        %v1750 = vpack.c.b16 %v1740, %v1739
        %v1751 = vpack.c.b16 %v1742, %v1741
        %v1752 = vpack.c.b16 %v1744, %v1743
        %v1753 = vpack.c.b16 %v1746, %v1745
        %v1754 = vpack.c.b16 %v1747, %v1747
        %v1763 = vunpack.c.l.b16 %v1714
        %v1764 = vunpack.c.l.b16 %v1715
        %v1765 = vunpack.c.l.b16 %v1716
        %v1766 = vunpack.c.l.b16 %v1717
        %v1767 = vunpack.c.l.b16 %v1718
        %v1768 = vunpack.c.l.b16 %v1719
        %v1769 = vunpack.c.l.b16 %v1720
        %v1770 = vunpack.c.l.b16 %v1721
        %v1771 = vpack.c.b16 %v1764, %v1763
        %v1772 = vpack.c.b16 %v1766, %v1765
        %v1773 = vpack.c.b16 %v1768, %v1767
        %v1774 = vpack.c.b16 %v1770, %v1769
        %v1780 = vsel %vm296, %v1748, 0
        %v1783 = vsel %vm296, %v1749, 0
        %v1786 = vsel %vm296, %v1750, 0
        %v1789 = vsel %vm296, %v1751, 0
        %v1792 = vsel %vm296, %v1752, 0
        %v1795 = vsel %vm296, %v1753, 0
        %v1798 = vsel %vm296, %v1754, 0
        %1800 = vmatprep.subr.bf16.mxu0 0
        %1801 = vmatpush1.bf16.msra.mxu0 %v1771
        %1802 = vmatprep.subr.bf16.mxu0 0
        %1803 = vmatpush1.bf16.msra.mxu0 %v1772
        %1804 = vmatprep.subr.bf16.mxu0 0
        %1805 = vmatpush1.bf16.msra.mxu0 %v1773
        %1806 = vmatprep.subr.bf16.mxu0 0
        %1807 = vmatpush1.bf16.msra.mxu0 %v1774
        %1808 = vmatprep.subr.bf16.mxu0 0
        %1809 = vmatpush1.bf16.msra.mxu0 0
        %1810 = vmatprep.subr.bf16.mxu0 0
        %1811 = vmatpush1.bf16.msra.mxu0 0
        %1812 = vmatprep.subr.bf16.mxu0 0
        %1813 = vmatpush1.bf16.msra.mxu0 0
        %1814 = vmatprep.subr.bf16.mxu0 0
        %1815 = vmatpush1.bf16.msra.mxu0 0
        %1816 = vmatprep.subr.bf16.mxu0 0
        %1817 = vmatpush1.bf16.msra.mxu0 0
        %1818 = vmatprep.subr.bf16.mxu0 0
        %1819 = vmatpush1.bf16.msra.mxu0 0
        %1820 = vmatprep.subr.bf16.mxu0 0
        %1821 = vmatpush1.bf16.msra.mxu0 0
        %1822 = vmatprep.subr.bf16.mxu0 0
        %1823 = vmatpush1.bf16.msra.mxu0 0
        %1824 = vmatprep.subr.bf16.mxu0 0
        %1825 = vmatpush1.bf16.msra.mxu0 0
        %1826 = vmatprep.subr.bf16.mxu0 0
        %1827 = vmatpush1.bf16.msra.mxu0 0
        %1828 = vmatprep.subr.bf16.mxu0 0
        %1829 = vmatpush1.bf16.msra.mxu0 0
        %1830 = vmatprep.subr.bf16.mxu0 0
        %1831 = vmatpush1.bf16.msra.mxu0 0
        %1832 = vmatprep.mubr.bf16.mxu0 0
        %1833 = vmatmul.mubr.bf16.gmra.mrb[0].mxu0 %v1780
        %v1834 = vpop.f32.mrb[0].mxu0
        %v1835 = vadd.f32 0.0, %v1834
        %v1836 = vpop.f32.mrb[0].mxu0
        %v1837 = vpop.f32.mrb[0].mxu0
        %v1838 = vadd.f32 0.0, %v1837
        %v1839 = vpop.f32.mrb[0].mxu0
        %1840 = vmatprep.mubr.bf16.mxu0 0
        %1841 = vmatmul.mubr.bf16.gmra.mrb[0].mxu0 %v1783
        %v1842 = vpop.f32.mrb[0].mxu0
        %v1843 = vadd.f32 0.0, %v1842
        %v1844 = vpop.f32.mrb[0].mxu0
        %v1845 = vpop.f32.mrb[0].mxu0
        %v1846 = vadd.f32 0.0, %v1845
        %v1847 = vpop.f32.mrb[0].mxu0
        %1848 = vmatprep.mubr.bf16.mxu0 0
        %1849 = vmatmul.mubr.bf16.gmra.mrb[0].mxu0 %v1786
        %v1850 = vpop.f32.mrb[0].mxu0
        %v1851 = vadd.f32 0.0, %v1850
        %v1852 = vpop.f32.mrb[0].mxu0
        %v1853 = vpop.f32.mrb[0].mxu0
        %v1854 = vadd.f32 0.0, %v1853
        %v1855 = vpop.f32.mrb[0].mxu0
        %1856 = vmatprep.mubr.bf16.mxu0 0
        %1857 = vmatmul.mubr.bf16.gmra.mrb[0].mxu0 %v1789
        %v1858 = vpop.f32.mrb[0].mxu0
        %v1859 = vadd.f32 0.0, %v1858
        %v1860 = vpop.f32.mrb[0].mxu0
        %v1861 = vpop.f32.mrb[0].mxu0
        %v1862 = vadd.f32 0.0, %v1861
        %v1863 = vpop.f32.mrb[0].mxu0
        %1864 = vmatprep.mubr.bf16.mxu0 0
        %1865 = vmatmul.mubr.bf16.gmra.mrb[0].mxu0 %v1792
        %v1866 = vpop.f32.mrb[0].mxu0
        %v1867 = vadd.f32 0.0, %v1866
        %v1868 = vpop.f32.mrb[0].mxu0
        %v1869 = vpop.f32.mrb[0].mxu0
        %v1870 = vadd.f32 0.0, %v1869
        %v1871 = vpop.f32.mrb[0].mxu0
        %1872 = vmatprep.mubr.bf16.mxu0 0
        %1873 = vmatmul.mubr.bf16.gmra.mrb[0].mxu0 %v1795
        %v1874 = vpop.f32.mrb[0].mxu0
        %v1875 = vadd.f32 0.0, %v1874
        %v1876 = vpop.f32.mrb[0].mxu0
        %v1877 = vpop.f32.mrb[0].mxu0
        %v1878 = vadd.f32 0.0, %v1877
        %v1879 = vpop.f32.mrb[0].mxu0
        %1880 = vmatprep.mubr.bf16.mxu0 0
        %1881 = vmatmul.mubr.bf16.gmra.mrb[0].mxu0 %v1798
        %v1882 = vpop.f32.mrb[0].mxu0
        %v1883 = vadd.f32 0.0, %v1882
        %v1884 = vpop.f32.mrb[0].mxu0
        %v1885 = vpop.f32.mrb[0].mxu0
        %v1886 = vpop.f32.mrb[0].mxu0
        %1887 = vdwg.mxu0
        %v1888 = vadd.f32 %v1686, %v1835
        %v1889 = vadd.f32 %v1687, %v1838
        %v1890 = vadd.f32 %v1688, %v1843
        %v1891 = vadd.f32 %v1689, %v1846
        %v1892 = vadd.f32 %v1690, %v1851
        %v1893 = vadd.f32 %v1691, %v1854
        %v1894 = vadd.f32 %v1692, %v1859
        %v1895 = vadd.f32 %v1693, %v1862
        %v1896 = vadd.f32 %v1694, %v1867
        %v1897 = vadd.f32 %v1695, %v1870
        %v1898 = vadd.f32 %v1696, %v1875
        %v1899 = vadd.f32 %v1697, %v1878
        %v1900 = vadd.f32 %v1698, %v1883
        %s1901 = scalar_lea.vmem %s272, 416
        %v1902 = vld [vmem:[%s1901] sm:$0xf]
        %v1903 = vld [vmem:[%s1901 + $0x4] sm:$0xf]
        %v1904 = vld [vmem:[%s1901 + $0x8] sm:$0xf]
        %v1905 = vld [vmem:[%s1901 + $0xc] sm:$0xf]
        %v1906 = vld [vmem:[%s1901 + $0x10] sm:$0xf]
        %v1907 = vld [vmem:[%s1901 + $0x14] sm:$0xf]
        %v1908 = vld [vmem:[%s1901 + $0x18] sm:$0xf]
        %v1909 = vld [vmem:[%s1901 + $0x1c] sm:$0xf]
        %v1910 = vld [vmem:[%s1901 + $0x20] sm:$0xf]
        %v1911 = vld [vmem:[%s1901 + $0x24] sm:$0xf]
        %v1912 = vld [vmem:[%s1901 + $0x28] sm:$0xf]
        %v1913 = vld [vmem:[%s1901 + $0x2c] sm:$0xf]
        %v1914 = vld [vmem:[%s1901 + $0x30] sm:$0x3]
        %s1915 = scalar_lea.vmem %s277, 256
        %v1916 = vld [vmem:[%s1915] sm:$0xf]
        %v1917 = vld [vmem:[%s1915 + $0x4] sm:$0xf]
        %v1918 = vld [vmem:[%s1915 + $0x8] sm:$0xf]
        %v1919 = vld [vmem:[%s1915 + $0xc] sm:$0xf]
        %v1920 = vld [vmem:[%s1915 + $0x10] sm:$0xf]
        %v1921 = vld [vmem:[%s1915 + $0x14] sm:$0xf]
        %v1922 = vld [vmem:[%s1915 + $0x18] sm:$0xf]
        %v1923 = vld [vmem:[%s1915 + $0x1c] sm:$0xf]
        %v1937 = vunpack.c.l.b16 %v1902
        %v1938 = vunpack.c.l.b16 %v1903
        %v1939 = vunpack.c.l.b16 %v1904
        %v1940 = vunpack.c.l.b16 %v1905
        %v1941 = vunpack.c.l.b16 %v1906
        %v1942 = vunpack.c.l.b16 %v1907
        %v1943 = vunpack.c.l.b16 %v1908
        %v1944 = vunpack.c.l.b16 %v1909
        %v1945 = vunpack.c.l.b16 %v1910
        %v1946 = vunpack.c.l.b16 %v1911
        %v1947 = vunpack.c.l.b16 %v1912
        %v1948 = vunpack.c.l.b16 %v1913
        %v1949 = vunpack.c.l.b16 %v1914
        %v1950 = vpack.c.b16 %v1938, %v1937
        %v1951 = vpack.c.b16 %v1940, %v1939
        %v1952 = vpack.c.b16 %v1942, %v1941
        %v1953 = vpack.c.b16 %v1944, %v1943
        %v1954 = vpack.c.b16 %v1946, %v1945
        %v1955 = vpack.c.b16 %v1948, %v1947
        %v1956 = vpack.c.b16 %v1949, %v1949
        %v1965 = vunpack.c.l.b16 %v1916
        %v1966 = vunpack.c.l.b16 %v1917
        %v1967 = vunpack.c.l.b16 %v1918
        %v1968 = vunpack.c.l.b16 %v1919
        %v1969 = vunpack.c.l.b16 %v1920
        %v1970 = vunpack.c.l.b16 %v1921
        %v1971 = vunpack.c.l.b16 %v1922
        %v1972 = vunpack.c.l.b16 %v1923
        %v1973 = vpack.c.b16 %v1966, %v1965
        %v1974 = vpack.c.b16 %v1968, %v1967
        %v1975 = vpack.c.b16 %v1970, %v1969
        %v1976 = vpack.c.b16 %v1972, %v1971
        %v1982 = vsel %vm296, %v1950, 0
        %v1985 = vsel %vm296, %v1951, 0
        %v1988 = vsel %vm296, %v1952, 0
        %v1991 = vsel %vm296, %v1953, 0
        %v1994 = vsel %vm296, %v1954, 0
        %v1997 = vsel %vm296, %v1955, 0
        %v2000 = vsel %vm296, %v1956, 0
        %2002 = vmatprep.subr.bf16.mxu0 0
        %2003 = vmatpush1.bf16.msra.mxu0 %v1973
        %2004 = vmatprep.subr.bf16.mxu0 0
        %2005 = vmatpush1.bf16.msra.mxu0 %v1974
        %2006 = vmatprep.subr.bf16.mxu0 0
        %2007 = vmatpush1.bf16.msra.mxu0 %v1975
        %2008 = vmatprep.subr.bf16.mxu0 0
        %2009 = vmatpush1.bf16.msra.mxu0 %v1976
        %2010 = vmatprep.subr.bf16.mxu0 0
        %2011 = vmatpush1.bf16.msra.mxu0 0
        %2012 = vmatprep.subr.bf16.mxu0 0
        %2013 = vmatpush1.bf16.msra.mxu0 0
        %2014 = vmatprep.subr.bf16.mxu0 0
        %2015 = vmatpush1.bf16.msra.mxu0 0
        %2016 = vmatprep.subr.bf16.mxu0 0
        %2017 = vmatpush1.bf16.msra.mxu0 0
        %2018 = vmatprep.subr.bf16.mxu0 0
        %2019 = vmatpush1.bf16.msra.mxu0 0
        %2020 = vmatprep.subr.bf16.mxu0 0
        %2021 = vmatpush1.bf16.msra.mxu0 0
        %2022 = vmatprep.subr.bf16.mxu0 0
        %2023 = vmatpush1.bf16.msra.mxu0 0
        %2024 = vmatprep.subr.bf16.mxu0 0
        %2025 = vmatpush1.bf16.msra.mxu0 0
        %2026 = vmatprep.subr.bf16.mxu0 0
        %2027 = vmatpush1.bf16.msra.mxu0 0
        %2028 = vmatprep.subr.bf16.mxu0 0
        %2029 = vmatpush1.bf16.msra.mxu0 0
        %2030 = vmatprep.subr.bf16.mxu0 0
        %2031 = vmatpush1.bf16.msra.mxu0 0
        %2032 = vmatprep.subr.bf16.mxu0 0
        %2033 = vmatpush1.bf16.msra.mxu0 0
        %2034 = vmatprep.mubr.bf16.mxu0 0
        %2035 = vmatmul.mubr.bf16.gmra.mrb[0].mxu0 %v1982
        %v2036 = vpop.f32.mrb[0].mxu0
        %v2037 = vadd.f32 0.0, %v2036
        %v2038 = vpop.f32.mrb[0].mxu0
        %v2039 = vpop.f32.mrb[0].mxu0
        %v2040 = vadd.f32 0.0, %v2039
        %v2041 = vpop.f32.mrb[0].mxu0
        %2042 = vmatprep.mubr.bf16.mxu0 0
        %2043 = vmatmul.mubr.bf16.gmra.mrb[0].mxu0 %v1985
        %v2044 = vpop.f32.mrb[0].mxu0
        %v2045 = vadd.f32 0.0, %v2044
        %v2046 = vpop.f32.mrb[0].mxu0
        %v2047 = vpop.f32.mrb[0].mxu0
        %v2048 = vadd.f32 0.0, %v2047
        %v2049 = vpop.f32.mrb[0].mxu0
        %2050 = vmatprep.mubr.bf16.mxu0 0
        %2051 = vmatmul.mubr.bf16.gmra.mrb[0].mxu0 %v1988
        %v2052 = vpop.f32.mrb[0].mxu0
        %v2053 = vadd.f32 0.0, %v2052
        %v2054 = vpop.f32.mrb[0].mxu0
        %v2055 = vpop.f32.mrb[0].mxu0
        %v2056 = vadd.f32 0.0, %v2055
        %v2057 = vpop.f32.mrb[0].mxu0
        %2058 = vmatprep.mubr.bf16.mxu0 0
        %2059 = vmatmul.mubr.bf16.gmra.mrb[0].mxu0 %v1991
        %v2060 = vpop.f32.mrb[0].mxu0
        %v2061 = vadd.f32 0.0, %v2060
        %v2062 = vpop.f32.mrb[0].mxu0
        %v2063 = vpop.f32.mrb[0].mxu0
        %v2064 = vadd.f32 0.0, %v2063
        %v2065 = vpop.f32.mrb[0].mxu0
        %2066 = vmatprep.mubr.bf16.mxu0 0
        %2067 = vmatmul.mubr.bf16.gmra.mrb[0].mxu0 %v1994
        %v2068 = vpop.f32.mrb[0].mxu0
        %v2069 = vadd.f32 0.0, %v2068
        %v2070 = vpop.f32.mrb[0].mxu0
        %v2071 = vpop.f32.mrb[0].mxu0
        %v2072 = vadd.f32 0.0, %v2071
        %v2073 = vpop.f32.mrb[0].mxu0
        %2074 = vmatprep.mubr.bf16.mxu0 0
        %2075 = vmatmul.mubr.bf16.gmra.mrb[0].mxu0 %v1997
        %v2076 = vpop.f32.mrb[0].mxu0
        %v2077 = vadd.f32 0.0, %v2076
        %v2078 = vpop.f32.mrb[0].mxu0
        %v2079 = vpop.f32.mrb[0].mxu0
        %v2080 = vadd.f32 0.0, %v2079
        %v2081 = vpop.f32.mrb[0].mxu0
        %2082 = vmatprep.mubr.bf16.mxu0 0
        %2083 = vmatmul.mubr.bf16.gmra.mrb[0].mxu0 %v2000
        %v2084 = vpop.f32.mrb[0].mxu0
        %v2085 = vadd.f32 0.0, %v2084
        %v2086 = vpop.f32.mrb[0].mxu0
        %v2087 = vpop.f32.mrb[0].mxu0
        %v2088 = vpop.f32.mrb[0].mxu0
        %2089 = vdwg.mxu0
        %v2090 = vadd.f32 %v1888, %v2037
        %v2091 = vadd.f32 %v1889, %v2040
        %v2092 = vadd.f32 %v1890, %v2045
        %v2093 = vadd.f32 %v1891, %v2048
        %v2094 = vadd.f32 %v1892, %v2053
        %v2095 = vadd.f32 %v1893, %v2056
        %v2096 = vadd.f32 %v1894, %v2061
        %v2097 = vadd.f32 %v1895, %v2064
        %v2098 = vadd.f32 %v1896, %v2069
        %v2099 = vadd.f32 %v1897, %v2072
        %v2100 = vadd.f32 %v1898, %v2077
        %v2101 = vadd.f32 %v1899, %v2080
        %v2102 = vadd.f32 %v1900, %v2085
        %v2103 = vld [vmem:[%s280] sm:$0x1]
        %v2105 = vlaneseq
        %v2106 = vshrl.u32 %v2105, 7
        %v2107 = vsub.s32 0, %v2106
        %v2108 = vrot.slane %v2103, %v2107
        %v2110 = vadd.f32 %v2090, %v2108
        %v2111 = vadd.f32 %v2091, %v2108
        %v2112 = vadd.f32 %v2092, %v2108
        %v2113 = vadd.f32 %v2093, %v2108
        %v2114 = vadd.f32 %v2094, %v2108
        %v2115 = vadd.f32 %v2095, %v2108
        %v2116 = vadd.f32 %v2096, %v2108
        %v2117 = vadd.f32 %v2097, %v2108
        %v2118 = vadd.f32 %v2098, %v2108
        %v2119 = vadd.f32 %v2099, %v2108
        %v2120 = vadd.f32 %v2100, %v2108
        %v2121 = vadd.f32 %v2101, %v2108
        %v2122 = vadd.f32 %v2102, %v2108
        %v2123 = vmax.f32 %v2110, 0.0
        %v2124 = vmax.f32 %v2111, 0.0
        %v2125 = vmax.f32 %v2112, 0.0
        %v2126 = vmax.f32 %v2113, 0.0
        %v2127 = vmax.f32 %v2114, 0.0
        %v2128 = vmax.f32 %v2115, 0.0
        %v2129 = vmax.f32 %v2116, 0.0
        %v2130 = vmax.f32 %v2117, 0.0
        %v2131 = vmax.f32 %v2118, 0.0
        %v2132 = vmax.f32 %v2119, 0.0
        %v2133 = vmax.f32 %v2120, 0.0
        %v2134 = vmax.f32 %v2121, 0.0
        %v2135 = vmax.f32 %v2122, 0.0
        %v2136 = vld [vmem:[%s0] sm:$0xff]
        %v2137 = vld [vmem:[%s0 + $0x8] sm:$0xff]
        %v2138 = vld [vmem:[%s0 + $0x10] sm:$0xff]
        %v2139 = vld [vmem:[%s0 + $0x18] sm:$0xff]
        %v2140 = vld [vmem:[%s0 + $0x20] sm:$0xff]
        %v2141 = vld [vmem:[%s0 + $0x28] sm:$0xff]
        %v2142 = vld [vmem:[%s0 + $0x30] sm:$0xff]
        %v2143 = vld [vmem:[%s0 + $0x38] sm:$0xff]
        %v2144 = vld [vmem:[%s0 + $0x40] sm:$0xff]
        %v2145 = vld [vmem:[%s0 + $0x48] sm:$0xff]
        %v2146 = vld [vmem:[%s0 + $0x50] sm:$0xff]
        %v2147 = vld [vmem:[%s0 + $0x58] sm:$0xff]
        %v2148 = vld [vmem:[%s0 + $0x60] sm:$0xf]
        %2150 = vset.pattern.permute.xlu0 0
        %2151 = vperm.xlu0 %2150, %v2136
        %v2152 = vpop.permute.xlu0 %2151
        %2155 = vset.pattern.permute.xlu0 0
        %2156 = vperm.xlu0 %2155, %v2137
        %v2157 = vpop.permute.xlu0 %2156
        %2160 = vset.pattern.permute.xlu0 0
        %2161 = vperm.xlu0 %2160, %v2138
        %v2162 = vpop.permute.xlu0 %2161
        %2165 = vset.pattern.permute.xlu0 0
        %2166 = vperm.xlu0 %2165, %v2139
        %v2167 = vpop.permute.xlu0 %2166
        %2170 = vset.pattern.permute.xlu0 0
        %2171 = vperm.xlu0 %2170, %v2140
        %v2172 = vpop.permute.xlu0 %2171
        %2175 = vset.pattern.permute.xlu0 0
        %2176 = vperm.xlu0 %2175, %v2141
        %v2177 = vpop.permute.xlu0 %2176
        %2180 = vset.pattern.permute.xlu0 0
        %2181 = vperm.xlu0 %2180, %v2142
        %v2182 = vpop.permute.xlu0 %2181
        %2185 = vset.pattern.permute.xlu0 0
        %2186 = vperm.xlu0 %2185, %v2143
        %v2187 = vpop.permute.xlu0 %2186
        %2190 = vset.pattern.permute.xlu0 0
        %2191 = vperm.xlu0 %2190, %v2144
        %v2192 = vpop.permute.xlu0 %2191
        %2195 = vset.pattern.permute.xlu0 0
        %2196 = vperm.xlu0 %2195, %v2145
        %v2197 = vpop.permute.xlu0 %2196
        %2200 = vset.pattern.permute.xlu0 0
        %2201 = vperm.xlu0 %2200, %v2146
        %v2202 = vpop.permute.xlu0 %2201
        %2205 = vset.pattern.permute.xlu0 0
        %2206 = vperm.xlu0 %2205, %v2147
        %v2207 = vpop.permute.xlu0 %2206
        %2210 = vset.pattern.permute.xlu0 0
        %2211 = vperm.xlu0 %2210, %v2148
        %v2212 = vpop.permute.xlu0 %2211
        %v2214 = vmul.f32 %v2123, %v2152
        %v2215 = vmul.f32 %v2124, %v2157
        %v2216 = vmul.f32 %v2125, %v2162
        %v2217 = vmul.f32 %v2126, %v2167
        %v2218 = vmul.f32 %v2127, %v2172
        %v2219 = vmul.f32 %v2128, %v2177
        %v2220 = vmul.f32 %v2129, %v2182
        %v2221 = vmul.f32 %v2130, %v2187
        %v2222 = vmul.f32 %v2131, %v2192
        %v2223 = vmul.f32 %v2132, %v2197
        %v2224 = vmul.f32 %v2133, %v2202
        %v2225 = vmul.f32 %v2134, %v2207
        %v2226 = vmul.f32 %v2135, %v2212
        %2227 = vst.msk [vmem:[#allocation2 + $0x10] sm:$0xff] %vm296, %v2214
        %2228 = vst.msk [vmem:[#allocation2 + $0x18] sm:$0xff] %vm296, %v2215
        %2229 = vst.msk [vmem:[#allocation2 + $0x20] sm:$0xff] %vm296, %v2216
        %2230 = vst.msk [vmem:[#allocation2 + $0x28] sm:$0xff] %vm296, %v2217
        %2231 = vst.msk [vmem:[#allocation2 + $0x30] sm:$0xff] %vm296, %v2218
        %2232 = vst.msk [vmem:[#allocation2 + $0x38] sm:$0xff] %vm296, %v2219
        %2233 = vst.msk [vmem:[#allocation2 + $0x40] sm:$0xff] %vm296, %v2220
        %2234 = vst.msk [vmem:[#allocation2 + $0x48] sm:$0xff] %vm296, %v2221
        %2235 = vst.msk [vmem:[#allocation2 + $0x50] sm:$0xff] %vm296, %v2222
        %2236 = vst.msk [vmem:[#allocation2 + $0x58] sm:$0xff] %vm296, %v2223
        %2237 = vst.msk [vmem:[#allocation2 + $0x60] sm:$0xff] %vm296, %v2224
        %2238 = vst.msk [vmem:[#allocation2 + $0x68] sm:$0xff] %vm296, %v2225
        %vm2239 = vcmask 519168
        %2240 = vst.msk [vmem:[#allocation2 + $0x70] sm:$0xf] %vm2239, %v2226
      $region44: #{_lambda_.1} parent=39 // pred_fallthru
        _
      %p2241 = scmp.gt.s32.totalorder %s21, 0
      %p2242 = scmp.lt.s32.totalorder %s21, 9
      %p2243 = pnand %p2241, %p2242
      %p2244 = pneg %p2243
      // Predicated region
      $region45: #{_lambda_.1} parent=39 // pred_check
        _
      $region46: #{_lambda_.1} parent=39 // pred_check_branch
        %2246 = sbr.rel (%p2243) target = $region48
      $region47: #{_lambda_.1} parent=39 // pred_region
        %v2247 = vld [vmem:[#allocation2 + $0x5] sm:$0xff]
        %v2248 = vld [vmem:[#allocation2 + $0xd] sm:$0xff]
        %v2249 = vld [vmem:[#allocation2 + $0x15] sm:$0xff]
        %v2250 = vld [vmem:[#allocation2 + $0x1d] sm:$0xff]
        %v2251 = vld [vmem:[#allocation2 + $0x25] sm:$0xff]
        %v2252 = vld [vmem:[#allocation2 + $0x2d] sm:$0xff]
        %v2253 = vld [vmem:[#allocation2 + $0x35] sm:$0xff]
        %v2254 = vld [vmem:[#allocation2 + $0x3d] sm:$0xff]
        %v2255 = vld [vmem:[#allocation2 + $0x45] sm:$0xff]
        %v2256 = vld [vmem:[#allocation2 + $0x4d] sm:$0xff]
        %v2257 = vld [vmem:[#allocation2 + $0x55] sm:$0xff]
        %v2258 = vld [vmem:[#allocation2 + $0x5d] sm:$0xff]
        %v2259 = vld [vmem:[#allocation2 + $0x65] sm:$0xf]
        %v2260 = vpack.c.bf16 %v2248, %v2247
        %v2261 = vpack.c.bf16 %v2250, %v2249
        %v2262 = vpack.c.bf16 %v2252, %v2251
        %v2263 = vpack.c.bf16 %v2254, %v2253
        %v2264 = vpack.c.bf16 %v2256, %v2255
        %v2265 = vpack.c.bf16 %v2258, %v2257
        %v2266 = vpack.c.bf16 %v2259, %v2259
        %v2267 = vld [vmem:[%s277] sm:$0xf]
        %v2268 = vld [vmem:[%s277 + $0x4] sm:$0xf]
        %v2269 = vld [vmem:[%s277 + $0x8] sm:$0xf]
        %v2270 = vld [vmem:[%s277 + $0xc] sm:$0xf]
        %v2271 = vld [vmem:[%s277 + $0x10] sm:$0xf]
        %v2272 = vld [vmem:[%s277 + $0x14] sm:$0xf]
        %v2273 = vld [vmem:[%s277 + $0x18] sm:$0xf]
        %v2274 = vld [vmem:[%s277 + $0x1c] sm:$0xf]
        %v2275 = vld [vmem:[#allocation2 + $0x6] sm:$0xff]
        %v2276 = vld [vmem:[#allocation2 + $0xe] sm:$0xff]
        %v2277 = vld [vmem:[#allocation2 + $0x16] sm:$0xff]
        %v2278 = vld [vmem:[#allocation2 + $0x1e] sm:$0xff]
        %v2279 = vld [vmem:[#allocation2 + $0x26] sm:$0xff]
        %v2280 = vld [vmem:[#allocation2 + $0x2e] sm:$0xff]
        %v2281 = vld [vmem:[#allocation2 + $0x36] sm:$0xff]
        %v2282 = vld [vmem:[#allocation2 + $0x3e] sm:$0xff]
        %v2283 = vld [vmem:[#allocation2 + $0x46] sm:$0xff]
        %v2284 = vld [vmem:[#allocation2 + $0x4e] sm:$0xff]
        %v2285 = vld [vmem:[#allocation2 + $0x56] sm:$0xff]
        %v2286 = vld [vmem:[#allocation2 + $0x5e] sm:$0xff]
        %v2287 = vld [vmem:[#allocation2 + $0x66] sm:$0xf]
        %v2288 = vpack.c.bf16 %v2276, %v2275
        %v2289 = vpack.c.bf16 %v2278, %v2277
        %v2290 = vpack.c.bf16 %v2280, %v2279
        %v2291 = vpack.c.bf16 %v2282, %v2281
        %v2292 = vpack.c.bf16 %v2284, %v2283
        %v2293 = vpack.c.bf16 %v2286, %v2285
        %v2294 = vpack.c.bf16 %v2287, %v2287
        %s2295 = scalar_lea.vmem %s277, 32
        %v2296 = vld [vmem:[%s2295] sm:$0xf]
        %v2297 = vld [vmem:[%s2295 + $0x4] sm:$0xf]
        %v2298 = vld [vmem:[%s2295 + $0x8] sm:$0xf]
        %v2299 = vld [vmem:[%s2295 + $0xc] sm:$0xf]
        %v2300 = vld [vmem:[%s2295 + $0x10] sm:$0xf]
        %v2301 = vld [vmem:[%s2295 + $0x14] sm:$0xf]
        %v2302 = vld [vmem:[%s2295 + $0x18] sm:$0xf]
        %v2303 = vld [vmem:[%s2295 + $0x1c] sm:$0xf]
        %v2312 = vunpack.c.l.b16 %v2296
        %v2313 = vunpack.c.l.b16 %v2297
        %v2314 = vunpack.c.l.b16 %v2298
        %v2315 = vunpack.c.l.b16 %v2299
        %v2316 = vunpack.c.l.b16 %v2300
        %v2317 = vunpack.c.l.b16 %v2301
        %v2318 = vunpack.c.l.b16 %v2302
        %v2319 = vunpack.c.l.b16 %v2303
        %v2320 = vpack.c.b16 %v2313, %v2312
        %v2321 = vpack.c.b16 %v2315, %v2314
        %v2322 = vpack.c.b16 %v2317, %v2316
        %v2323 = vpack.c.b16 %v2319, %v2318
        %vm2328 = vcmask 523264
        %v2330 = vsel %vm2328, %v2288, 0
        %v2333 = vsel %vm2328, %v2289, 0
        %v2336 = vsel %vm2328, %v2290, 0
        %v2339 = vsel %vm2328, %v2291, 0
        %v2342 = vsel %vm2328, %v2292, 0
        %v2345 = vsel %vm2328, %v2293, 0
        %v2348 = vsel %vm2328, %v2294, 0
        %2350 = vmatprep.subr.bf16.mxu0 0
        %2351 = vmatpush1.bf16.msra.mxu0 %v2320
        %2352 = vmatprep.subr.bf16.mxu0 0
        %2353 = vmatpush1.bf16.msra.mxu0 %v2321
        %2354 = vmatprep.subr.bf16.mxu0 0
        %2355 = vmatpush1.bf16.msra.mxu0 %v2322
        %2356 = vmatprep.subr.bf16.mxu0 0
        %2357 = vmatpush1.bf16.msra.mxu0 %v2323
        %2358 = vmatprep.subr.bf16.mxu0 0
        %2359 = vmatpush1.bf16.msra.mxu0 0
        %2360 = vmatprep.subr.bf16.mxu0 0
        %2361 = vmatpush1.bf16.msra.mxu0 0
        %2362 = vmatprep.subr.bf16.mxu0 0
        %2363 = vmatpush1.bf16.msra.mxu0 0
        %2364 = vmatprep.subr.bf16.mxu0 0
        %2365 = vmatpush1.bf16.msra.mxu0 0
        %2366 = vmatprep.subr.bf16.mxu0 0
        %2367 = vmatpush1.bf16.msra.mxu0 0
        %2368 = vmatprep.subr.bf16.mxu0 0
        %2369 = vmatpush1.bf16.msra.mxu0 0
        %2370 = vmatprep.subr.bf16.mxu0 0
        %2371 = vmatpush1.bf16.msra.mxu0 0
        %2372 = vmatprep.subr.bf16.mxu0 0
        %2373 = vmatpush1.bf16.msra.mxu0 0
        %2374 = vmatprep.subr.bf16.mxu0 0
        %2375 = vmatpush1.bf16.msra.mxu0 0
        %2376 = vmatprep.subr.bf16.mxu0 0
        %2377 = vmatpush1.bf16.msra.mxu0 0
        %2378 = vmatprep.subr.bf16.mxu0 0
        %2379 = vmatpush1.bf16.msra.mxu0 0
        %2380 = vmatprep.subr.bf16.mxu0 0
        %2381 = vmatpush1.bf16.msra.mxu0 0
        %2382 = vmatprep.mubr.bf16.mxu0 0
        %2383 = vmatmul.mubr.bf16.gmra.mrb[0].mxu0 %v2330
        %v2384 = vpop.f32.mrb[0].mxu0
        %v2385 = vadd.f32 0.0, %v2384
        %v2386 = vpop.f32.mrb[0].mxu0
        %v2387 = vpop.f32.mrb[0].mxu0
        %v2388 = vadd.f32 0.0, %v2387
        %v2389 = vpop.f32.mrb[0].mxu0
        %2390 = vmatprep.mubr.bf16.mxu0 0
        %2391 = vmatmul.mubr.bf16.gmra.mrb[0].mxu0 %v2333
        %v2392 = vpop.f32.mrb[0].mxu0
        %v2393 = vadd.f32 0.0, %v2392
        %v2394 = vpop.f32.mrb[0].mxu0
        %v2395 = vpop.f32.mrb[0].mxu0
        %v2396 = vadd.f32 0.0, %v2395
        %v2397 = vpop.f32.mrb[0].mxu0
        %2398 = vmatprep.mubr.bf16.mxu0 0
        %2399 = vmatmul.mubr.bf16.gmra.mrb[0].mxu0 %v2336
        %v2400 = vpop.f32.mrb[0].mxu0
        %v2401 = vadd.f32 0.0, %v2400
        %v2402 = vpop.f32.mrb[0].mxu0
        %v2403 = vpop.f32.mrb[0].mxu0
        %v2404 = vadd.f32 0.0, %v2403
        %v2405 = vpop.f32.mrb[0].mxu0
        %2406 = vmatprep.mubr.bf16.mxu0 0
        %2407 = vmatmul.mubr.bf16.gmra.mrb[0].mxu0 %v2339
        %v2408 = vpop.f32.mrb[0].mxu0
        %v2409 = vadd.f32 0.0, %v2408
        %v2410 = vpop.f32.mrb[0].mxu0
        %v2411 = vpop.f32.mrb[0].mxu0
        %v2412 = vadd.f32 0.0, %v2411
        %v2413 = vpop.f32.mrb[0].mxu0
        %2414 = vmatprep.mubr.bf16.mxu0 0
        %2415 = vmatmul.mubr.bf16.gmra.mrb[0].mxu0 %v2342
        %v2416 = vpop.f32.mrb[0].mxu0
        %v2417 = vadd.f32 0.0, %v2416
        %v2418 = vpop.f32.mrb[0].mxu0
        %v2419 = vpop.f32.mrb[0].mxu0
        %v2420 = vadd.f32 0.0, %v2419
        %v2421 = vpop.f32.mrb[0].mxu0
        %2422 = vmatprep.mubr.bf16.mxu0 0
        %2423 = vmatmul.mubr.bf16.gmra.mrb[0].mxu0 %v2345
        %v2424 = vpop.f32.mrb[0].mxu0
        %v2425 = vadd.f32 0.0, %v2424
        %v2426 = vpop.f32.mrb[0].mxu0
        %v2427 = vpop.f32.mrb[0].mxu0
        %v2428 = vadd.f32 0.0, %v2427
        %v2429 = vpop.f32.mrb[0].mxu0
        %2430 = vmatprep.mubr.bf16.mxu0 0
        %2431 = vmatmul.mubr.bf16.gmra.mrb[0].mxu0 %v2348
        %v2432 = vpop.f32.mrb[0].mxu0
        %v2433 = vadd.f32 0.0, %v2432
        %v2434 = vpop.f32.mrb[0].mxu0
        %v2435 = vpop.f32.mrb[0].mxu0
        %v2436 = vpop.f32.mrb[0].mxu0
        %2437 = vdwg.mxu0
        %v2446 = vunpack.c.l.b16 %v2267
        %v2447 = vunpack.c.l.b16 %v2268
        %v2448 = vunpack.c.l.b16 %v2269
        %v2449 = vunpack.c.l.b16 %v2270
        %v2450 = vunpack.c.l.b16 %v2271
        %v2451 = vunpack.c.l.b16 %v2272
        %v2452 = vunpack.c.l.b16 %v2273
        %v2453 = vunpack.c.l.b16 %v2274
        %v2454 = vpack.c.b16 %v2447, %v2446
        %v2455 = vpack.c.b16 %v2449, %v2448
        %v2456 = vpack.c.b16 %v2451, %v2450
        %v2457 = vpack.c.b16 %v2453, %v2452
        %v2463 = vsel %vm2328, %v2260, 0
        %v2466 = vsel %vm2328, %v2261, 0
        %v2469 = vsel %vm2328, %v2262, 0
        %v2472 = vsel %vm2328, %v2263, 0
        %v2475 = vsel %vm2328, %v2264, 0
        %v2478 = vsel %vm2328, %v2265, 0
        %v2481 = vsel %vm2328, %v2266, 0
        %2483 = vmatprep.subr.bf16.mxu0 0
        %2484 = vmatpush1.bf16.msra.mxu0 %v2454
        %2485 = vmatprep.subr.bf16.mxu0 0
        %2486 = vmatpush1.bf16.msra.mxu0 %v2455
        %2487 = vmatprep.subr.bf16.mxu0 0
        %2488 = vmatpush1.bf16.msra.mxu0 %v2456
        %2489 = vmatprep.subr.bf16.mxu0 0
        %2490 = vmatpush1.bf16.msra.mxu0 %v2457
        %2491 = vmatprep.subr.bf16.mxu0 0
        %2492 = vmatpush1.bf16.msra.mxu0 0
        %2493 = vmatprep.subr.bf16.mxu0 0
        %2494 = vmatpush1.bf16.msra.mxu0 0
        %2495 = vmatprep.subr.bf16.mxu0 0
        %2496 = vmatpush1.bf16.msra.mxu0 0
        %2497 = vmatprep.subr.bf16.mxu0 0
        %2498 = vmatpush1.bf16.msra.mxu0 0
        %2499 = vmatprep.subr.bf16.mxu0 0
        %2500 = vmatpush1.bf16.msra.mxu0 0
        %2501 = vmatprep.subr.bf16.mxu0 0
        %2502 = vmatpush1.bf16.msra.mxu0 0
        %2503 = vmatprep.subr.bf16.mxu0 0
        %2504 = vmatpush1.bf16.msra.mxu0 0
        %2505 = vmatprep.subr.bf16.mxu0 0
        %2506 = vmatpush1.bf16.msra.mxu0 0
        %2507 = vmatprep.subr.bf16.mxu0 0
        %2508 = vmatpush1.bf16.msra.mxu0 0
        %2509 = vmatprep.subr.bf16.mxu0 0
        %2510 = vmatpush1.bf16.msra.mxu0 0
        %2511 = vmatprep.subr.bf16.mxu0 0
        %2512 = vmatpush1.bf16.msra.mxu0 0
        %2513 = vmatprep.subr.bf16.mxu0 0
        %2514 = vmatpush1.bf16.msra.mxu0 0
        %2515 = vmatprep.mubr.bf16.mxu0 0
        %2516 = vmatmul.mubr.bf16.gmra.mrb[0].mxu0 %v2463
        %v2517 = vpop.f32.mrb[0].mxu0
        %v2518 = vadd.f32 %v2385, %v2517
        %v2519 = vpop.f32.mrb[0].mxu0
        %v2520 = vpop.f32.mrb[0].mxu0
        %v2521 = vadd.f32 %v2388, %v2520
        %v2522 = vpop.f32.mrb[0].mxu0
        %2523 = vmatprep.mubr.bf16.mxu0 0
        %2524 = vmatmul.mubr.bf16.gmra.mrb[0].mxu0 %v2466
        %v2525 = vpop.f32.mrb[0].mxu0
        %v2526 = vadd.f32 %v2393, %v2525
        %v2527 = vpop.f32.mrb[0].mxu0
        %v2528 = vpop.f32.mrb[0].mxu0
        %v2529 = vadd.f32 %v2396, %v2528
        %v2530 = vpop.f32.mrb[0].mxu0
        %2531 = vmatprep.mubr.bf16.mxu0 0
        %2532 = vmatmul.mubr.bf16.gmra.mrb[0].mxu0 %v2469
        %v2533 = vpop.f32.mrb[0].mxu0
        %v2534 = vadd.f32 %v2401, %v2533
        %v2535 = vpop.f32.mrb[0].mxu0
        %v2536 = vpop.f32.mrb[0].mxu0
        %v2537 = vadd.f32 %v2404, %v2536
        %v2538 = vpop.f32.mrb[0].mxu0
        %2539 = vmatprep.mubr.bf16.mxu0 0
        %2540 = vmatmul.mubr.bf16.gmra.mrb[0].mxu0 %v2472
        %v2541 = vpop.f32.mrb[0].mxu0
        %v2542 = vadd.f32 %v2409, %v2541
        %v2543 = vpop.f32.mrb[0].mxu0
        %v2544 = vpop.f32.mrb[0].mxu0
        %v2545 = vadd.f32 %v2412, %v2544
        %v2546 = vpop.f32.mrb[0].mxu0
        %2547 = vmatprep.mubr.bf16.mxu0 0
        %2548 = vmatmul.mubr.bf16.gmra.mrb[0].mxu0 %v2475
        %v2549 = vpop.f32.mrb[0].mxu0
        %v2550 = vadd.f32 %v2417, %v2549
        %v2551 = vpop.f32.mrb[0].mxu0
        %v2552 = vpop.f32.mrb[0].mxu0
        %v2553 = vadd.f32 %v2420, %v2552
        %v2554 = vpop.f32.mrb[0].mxu0
        %2555 = vmatprep.mubr.bf16.mxu0 0
        %2556 = vmatmul.mubr.bf16.gmra.mrb[0].mxu0 %v2478
        %v2557 = vpop.f32.mrb[0].mxu0
        %v2558 = vadd.f32 %v2425, %v2557
        %v2559 = vpop.f32.mrb[0].mxu0
        %v2560 = vpop.f32.mrb[0].mxu0
        %v2561 = vadd.f32 %v2428, %v2560
        %v2562 = vpop.f32.mrb[0].mxu0
        %2563 = vmatprep.mubr.bf16.mxu0 0
        %2564 = vmatmul.mubr.bf16.gmra.mrb[0].mxu0 %v2481
        %v2565 = vpop.f32.mrb[0].mxu0
        %v2566 = vadd.f32 %v2433, %v2565
        %v2567 = vpop.f32.mrb[0].mxu0
        %v2568 = vpop.f32.mrb[0].mxu0
        %v2569 = vpop.f32.mrb[0].mxu0
        %2570 = vdwg.mxu0
        %v2571 = vld [vmem:[#allocation2 + $0x7] sm:$0xff]
        %v2572 = vld [vmem:[#allocation2 + $0xf] sm:$0xff]
        %v2573 = vld [vmem:[#allocation2 + $0x17] sm:$0xff]
        %v2574 = vld [vmem:[#allocation2 + $0x1f] sm:$0xff]
        %v2575 = vld [vmem:[#allocation2 + $0x27] sm:$0xff]
        %v2576 = vld [vmem:[#allocation2 + $0x2f] sm:$0xff]
        %v2577 = vld [vmem:[#allocation2 + $0x37] sm:$0xff]
        %v2578 = vld [vmem:[#allocation2 + $0x3f] sm:$0xff]
        %v2579 = vld [vmem:[#allocation2 + $0x47] sm:$0xff]
        %v2580 = vld [vmem:[#allocation2 + $0x4f] sm:$0xff]
        %v2581 = vld [vmem:[#allocation2 + $0x57] sm:$0xff]
        %v2582 = vld [vmem:[#allocation2 + $0x5f] sm:$0xff]
        %v2583 = vld [vmem:[#allocation2 + $0x67] sm:$0xf]
        %v2584 = vpack.c.bf16 %v2572, %v2571
        %v2585 = vpack.c.bf16 %v2574, %v2573
        %v2586 = vpack.c.bf16 %v2576, %v2575
        %v2587 = vpack.c.bf16 %v2578, %v2577
        %v2588 = vpack.c.bf16 %v2580, %v2579
        %v2589 = vpack.c.bf16 %v2582, %v2581
        %v2590 = vpack.c.bf16 %v2583, %v2583
        %s2591 = scalar_lea.vmem %s277, 64
        %v2592 = vld [vmem:[%s2591] sm:$0xf]
        %v2593 = vld [vmem:[%s2591 + $0x4] sm:$0xf]
        %v2594 = vld [vmem:[%s2591 + $0x8] sm:$0xf]
        %v2595 = vld [vmem:[%s2591 + $0xc] sm:$0xf]
        %v2596 = vld [vmem:[%s2591 + $0x10] sm:$0xf]
        %v2597 = vld [vmem:[%s2591 + $0x14] sm:$0xf]
        %v2598 = vld [vmem:[%s2591 + $0x18] sm:$0xf]
        %v2599 = vld [vmem:[%s2591 + $0x1c] sm:$0xf]
        %v2608 = vunpack.c.l.b16 %v2592
        %v2609 = vunpack.c.l.b16 %v2593
        %v2610 = vunpack.c.l.b16 %v2594
        %v2611 = vunpack.c.l.b16 %v2595
        %v2612 = vunpack.c.l.b16 %v2596
        %v2613 = vunpack.c.l.b16 %v2597
        %v2614 = vunpack.c.l.b16 %v2598
        %v2615 = vunpack.c.l.b16 %v2599
        %v2616 = vpack.c.b16 %v2609, %v2608
        %v2617 = vpack.c.b16 %v2611, %v2610
        %v2618 = vpack.c.b16 %v2613, %v2612
        %v2619 = vpack.c.b16 %v2615, %v2614
        %v2625 = vsel %vm2328, %v2584, 0
        %v2628 = vsel %vm2328, %v2585, 0
        %v2631 = vsel %vm2328, %v2586, 0
        %v2634 = vsel %vm2328, %v2587, 0
        %v2637 = vsel %vm2328, %v2588, 0
        %v2640 = vsel %vm2328, %v2589, 0
        %v2643 = vsel %vm2328, %v2590, 0
        %2645 = vmatprep.subr.bf16.mxu0 0
        %2646 = vmatpush1.bf16.msra.mxu0 %v2616
        %2647 = vmatprep.subr.bf16.mxu0 0
        %2648 = vmatpush1.bf16.msra.mxu0 %v2617
        %2649 = vmatprep.subr.bf16.mxu0 0
        %2650 = vmatpush1.bf16.msra.mxu0 %v2618
        %2651 = vmatprep.subr.bf16.mxu0 0
        %2652 = vmatpush1.bf16.msra.mxu0 %v2619
        %2653 = vmatprep.subr.bf16.mxu0 0
        %2654 = vmatpush1.bf16.msra.mxu0 0
        %2655 = vmatprep.subr.bf16.mxu0 0
        %2656 = vmatpush1.bf16.msra.mxu0 0
        %2657 = vmatprep.subr.bf16.mxu0 0
        %2658 = vmatpush1.bf16.msra.mxu0 0
        %2659 = vmatprep.subr.bf16.mxu0 0
        %2660 = vmatpush1.bf16.msra.mxu0 0
        %2661 = vmatprep.subr.bf16.mxu0 0
        %2662 = vmatpush1.bf16.msra.mxu0 0
        %2663 = vmatprep.subr.bf16.mxu0 0
        %2664 = vmatpush1.bf16.msra.mxu0 0
        %2665 = vmatprep.subr.bf16.mxu0 0
        %2666 = vmatpush1.bf16.msra.mxu0 0
        %2667 = vmatprep.subr.bf16.mxu0 0
        %2668 = vmatpush1.bf16.msra.mxu0 0
        %2669 = vmatprep.subr.bf16.mxu0 0
        %2670 = vmatpush1.bf16.msra.mxu0 0
        %2671 = vmatprep.subr.bf16.mxu0 0
        %2672 = vmatpush1.bf16.msra.mxu0 0
        %2673 = vmatprep.subr.bf16.mxu0 0
        %2674 = vmatpush1.bf16.msra.mxu0 0
        %2675 = vmatprep.subr.bf16.mxu0 0
        %2676 = vmatpush1.bf16.msra.mxu0 0
        %2677 = vmatprep.mubr.bf16.mxu0 0
        %2678 = vmatmul.mubr.bf16.gmra.mrb[0].mxu0 %v2625
        %v2679 = vpop.f32.mrb[0].mxu0
        %v2680 = vadd.f32 0.0, %v2679
        %v2681 = vpop.f32.mrb[0].mxu0
        %v2682 = vpop.f32.mrb[0].mxu0
        %v2683 = vadd.f32 0.0, %v2682
        %v2684 = vpop.f32.mrb[0].mxu0
        %2685 = vmatprep.mubr.bf16.mxu0 0
        %2686 = vmatmul.mubr.bf16.gmra.mrb[0].mxu0 %v2628
        %v2687 = vpop.f32.mrb[0].mxu0
        %v2688 = vadd.f32 0.0, %v2687
        %v2689 = vpop.f32.mrb[0].mxu0
        %v2690 = vpop.f32.mrb[0].mxu0
        %v2691 = vadd.f32 0.0, %v2690
        %v2692 = vpop.f32.mrb[0].mxu0
        %2693 = vmatprep.mubr.bf16.mxu0 0
        %2694 = vmatmul.mubr.bf16.gmra.mrb[0].mxu0 %v2631
        %v2695 = vpop.f32.mrb[0].mxu0
        %v2696 = vadd.f32 0.0, %v2695
        %v2697 = vpop.f32.mrb[0].mxu0
        %v2698 = vpop.f32.mrb[0].mxu0
        %v2699 = vadd.f32 0.0, %v2698
        %v2700 = vpop.f32.mrb[0].mxu0
        %2701 = vmatprep.mubr.bf16.mxu0 0
        %2702 = vmatmul.mubr.bf16.gmra.mrb[0].mxu0 %v2634
        %v2703 = vpop.f32.mrb[0].mxu0
        %v2704 = vadd.f32 0.0, %v2703
        %v2705 = vpop.f32.mrb[0].mxu0
        %v2706 = vpop.f32.mrb[0].mxu0
        %v2707 = vadd.f32 0.0, %v2706
        %v2708 = vpop.f32.mrb[0].mxu0
        %2709 = vmatprep.mubr.bf16.mxu0 0
        %2710 = vmatmul.mubr.bf16.gmra.mrb[0].mxu0 %v2637
        %v2711 = vpop.f32.mrb[0].mxu0
        %v2712 = vadd.f32 0.0, %v2711
        %v2713 = vpop.f32.mrb[0].mxu0
        %v2714 = vpop.f32.mrb[0].mxu0
        %v2715 = vadd.f32 0.0, %v2714
        %v2716 = vpop.f32.mrb[0].mxu0
        %2717 = vmatprep.mubr.bf16.mxu0 0
        %2718 = vmatmul.mubr.bf16.gmra.mrb[0].mxu0 %v2640
        %v2719 = vpop.f32.mrb[0].mxu0
        %v2720 = vadd.f32 0.0, %v2719
        %v2721 = vpop.f32.mrb[0].mxu0
        %v2722 = vpop.f32.mrb[0].mxu0
        %v2723 = vadd.f32 0.0, %v2722
        %v2724 = vpop.f32.mrb[0].mxu0
        %2725 = vmatprep.mubr.bf16.mxu0 0
        %2726 = vmatmul.mubr.bf16.gmra.mrb[0].mxu0 %v2643
        %v2727 = vpop.f32.mrb[0].mxu0
        %v2728 = vadd.f32 0.0, %v2727
        %v2729 = vpop.f32.mrb[0].mxu0
        %v2730 = vpop.f32.mrb[0].mxu0
        %v2731 = vpop.f32.mrb[0].mxu0
        %2732 = vdwg.mxu0
        %v2733 = vadd.f32 %v2518, %v2680
        %v2734 = vadd.f32 %v2521, %v2683
        %v2735 = vadd.f32 %v2526, %v2688
        %v2736 = vadd.f32 %v2529, %v2691
        %v2737 = vadd.f32 %v2534, %v2696
        %v2738 = vadd.f32 %v2537, %v2699
        %v2739 = vadd.f32 %v2542, %v2704
        %v2740 = vadd.f32 %v2545, %v2707
        %v2741 = vadd.f32 %v2550, %v2712
        %v2742 = vadd.f32 %v2553, %v2715
        %v2743 = vadd.f32 %v2558, %v2720
        %v2744 = vadd.f32 %v2561, %v2723
        %v2745 = vadd.f32 %v2566, %v2728
        %v2746 = vld [vmem:[#allocation2 + $0xf] sm:$0xff]
        %v2747 = vld [vmem:[#allocation2 + $0x17] sm:$0xff]
        %v2748 = vld [vmem:[#allocation2 + $0x1f] sm:$0xff]
        %v2749 = vld [vmem:[#allocation2 + $0x27] sm:$0xff]
        %v2750 = vld [vmem:[#allocation2 + $0x2f] sm:$0xff]
        %v2751 = vld [vmem:[#allocation2 + $0x37] sm:$0xff]
        %v2752 = vld [vmem:[#allocation2 + $0x3f] sm:$0xff]
        %v2753 = vld [vmem:[#allocation2 + $0x47] sm:$0xff]
        %v2754 = vld [vmem:[#allocation2 + $0x4f] sm:$0xff]
        %v2755 = vld [vmem:[#allocation2 + $0x57] sm:$0xff]
        %v2756 = vld [vmem:[#allocation2 + $0x5f] sm:$0xff]
        %v2757 = vld [vmem:[#allocation2 + $0x67] sm:$0xff]
        %v2758 = vld [vmem:[#allocation2 + $0x6f] sm:$0xf]
        %v2759 = vpack.c.bf16 %v2747, %v2746
        %v2760 = vpack.c.bf16 %v2749, %v2748
        %v2761 = vpack.c.bf16 %v2751, %v2750
        %v2762 = vpack.c.bf16 %v2753, %v2752
        %v2763 = vpack.c.bf16 %v2755, %v2754
        %v2764 = vpack.c.bf16 %v2757, %v2756
        %v2765 = vpack.c.bf16 %v2758, %v2758
        %s2766 = scalar_lea.vmem %s277, 96
        %v2767 = vld [vmem:[%s2766] sm:$0xf]
        %v2768 = vld [vmem:[%s2766 + $0x4] sm:$0xf]
        %v2769 = vld [vmem:[%s2766 + $0x8] sm:$0xf]
        %v2770 = vld [vmem:[%s2766 + $0xc] sm:$0xf]
        %v2771 = vld [vmem:[%s2766 + $0x10] sm:$0xf]
        %v2772 = vld [vmem:[%s2766 + $0x14] sm:$0xf]
        %v2773 = vld [vmem:[%s2766 + $0x18] sm:$0xf]
        %v2774 = vld [vmem:[%s2766 + $0x1c] sm:$0xf]
        %v2783 = vunpack.c.l.b16 %v2767
        %v2784 = vunpack.c.l.b16 %v2768
        %v2785 = vunpack.c.l.b16 %v2769
        %v2786 = vunpack.c.l.b16 %v2770
        %v2787 = vunpack.c.l.b16 %v2771
        %v2788 = vunpack.c.l.b16 %v2772
        %v2789 = vunpack.c.l.b16 %v2773
        %v2790 = vunpack.c.l.b16 %v2774
        %v2791 = vpack.c.b16 %v2784, %v2783
        %v2792 = vpack.c.b16 %v2786, %v2785
        %v2793 = vpack.c.b16 %v2788, %v2787
        %v2794 = vpack.c.b16 %v2790, %v2789
        %v2800 = vsel %vm2328, %v2759, 0
        %v2803 = vsel %vm2328, %v2760, 0
        %v2806 = vsel %vm2328, %v2761, 0
        %v2809 = vsel %vm2328, %v2762, 0
        %v2812 = vsel %vm2328, %v2763, 0
        %v2815 = vsel %vm2328, %v2764, 0
        %v2818 = vsel %vm2328, %v2765, 0
        %2820 = vmatprep.subr.bf16.mxu0 0
        %2821 = vmatpush1.bf16.msra.mxu0 %v2791
        %2822 = vmatprep.subr.bf16.mxu0 0
        %2823 = vmatpush1.bf16.msra.mxu0 %v2792
        %2824 = vmatprep.subr.bf16.mxu0 0
        %2825 = vmatpush1.bf16.msra.mxu0 %v2793
        %2826 = vmatprep.subr.bf16.mxu0 0
        %2827 = vmatpush1.bf16.msra.mxu0 %v2794
        %2828 = vmatprep.subr.bf16.mxu0 0
        %2829 = vmatpush1.bf16.msra.mxu0 0
        %2830 = vmatprep.subr.bf16.mxu0 0
        %2831 = vmatpush1.bf16.msra.mxu0 0
        %2832 = vmatprep.subr.bf16.mxu0 0
        %2833 = vmatpush1.bf16.msra.mxu0 0
        %2834 = vmatprep.subr.bf16.mxu0 0
        %2835 = vmatpush1.bf16.msra.mxu0 0
        %2836 = vmatprep.subr.bf16.mxu0 0
        %2837 = vmatpush1.bf16.msra.mxu0 0
        %2838 = vmatprep.subr.bf16.mxu0 0
        %2839 = vmatpush1.bf16.msra.mxu0 0
        %2840 = vmatprep.subr.bf16.mxu0 0
        %2841 = vmatpush1.bf16.msra.mxu0 0
        %2842 = vmatprep.subr.bf16.mxu0 0
        %2843 = vmatpush1.bf16.msra.mxu0 0
        %2844 = vmatprep.subr.bf16.mxu0 0
        %2845 = vmatpush1.bf16.msra.mxu0 0
        %2846 = vmatprep.subr.bf16.mxu0 0
        %2847 = vmatpush1.bf16.msra.mxu0 0
        %2848 = vmatprep.subr.bf16.mxu0 0
        %2849 = vmatpush1.bf16.msra.mxu0 0
        %2850 = vmatprep.subr.bf16.mxu0 0
        %2851 = vmatpush1.bf16.msra.mxu0 0
        %2852 = vmatprep.mubr.bf16.mxu0 0
        %2853 = vmatmul.mubr.bf16.gmra.mrb[0].mxu0 %v2800
        %v2854 = vpop.f32.mrb[0].mxu0
        %v2855 = vadd.f32 0.0, %v2854
        %v2856 = vpop.f32.mrb[0].mxu0
        %v2857 = vpop.f32.mrb[0].mxu0
        %v2858 = vadd.f32 0.0, %v2857
        %v2859 = vpop.f32.mrb[0].mxu0
        %2860 = vmatprep.mubr.bf16.mxu0 0
        %2861 = vmatmul.mubr.bf16.gmra.mrb[0].mxu0 %v2803
        %v2862 = vpop.f32.mrb[0].mxu0
        %v2863 = vadd.f32 0.0, %v2862
        %v2864 = vpop.f32.mrb[0].mxu0
        %v2865 = vpop.f32.mrb[0].mxu0
        %v2866 = vadd.f32 0.0, %v2865
        %v2867 = vpop.f32.mrb[0].mxu0
        %2868 = vmatprep.mubr.bf16.mxu0 0
        %2869 = vmatmul.mubr.bf16.gmra.mrb[0].mxu0 %v2806
        %v2870 = vpop.f32.mrb[0].mxu0
        %v2871 = vadd.f32 0.0, %v2870
        %v2872 = vpop.f32.mrb[0].mxu0
        %v2873 = vpop.f32.mrb[0].mxu0
        %v2874 = vadd.f32 0.0, %v2873
        %v2875 = vpop.f32.mrb[0].mxu0
        %2876 = vmatprep.mubr.bf16.mxu0 0
        %2877 = vmatmul.mubr.bf16.gmra.mrb[0].mxu0 %v2809
        %v2878 = vpop.f32.mrb[0].mxu0
        %v2879 = vadd.f32 0.0, %v2878
        %v2880 = vpop.f32.mrb[0].mxu0
        %v2881 = vpop.f32.mrb[0].mxu0
        %v2882 = vadd.f32 0.0, %v2881
        %v2883 = vpop.f32.mrb[0].mxu0
        %2884 = vmatprep.mubr.bf16.mxu0 0
        %2885 = vmatmul.mubr.bf16.gmra.mrb[0].mxu0 %v2812
        %v2886 = vpop.f32.mrb[0].mxu0
        %v2887 = vadd.f32 0.0, %v2886
        %v2888 = vpop.f32.mrb[0].mxu0
        %v2889 = vpop.f32.mrb[0].mxu0
        %v2890 = vadd.f32 0.0, %v2889
        %v2891 = vpop.f32.mrb[0].mxu0
        %2892 = vmatprep.mubr.bf16.mxu0 0
        %2893 = vmatmul.mubr.bf16.gmra.mrb[0].mxu0 %v2815
        %v2894 = vpop.f32.mrb[0].mxu0
        %v2895 = vadd.f32 0.0, %v2894
        %v2896 = vpop.f32.mrb[0].mxu0
        %v2897 = vpop.f32.mrb[0].mxu0
        %v2898 = vadd.f32 0.0, %v2897
        %v2899 = vpop.f32.mrb[0].mxu0
        %2900 = vmatprep.mubr.bf16.mxu0 0
        %2901 = vmatmul.mubr.bf16.gmra.mrb[0].mxu0 %v2818
        %v2902 = vpop.f32.mrb[0].mxu0
        %v2903 = vadd.f32 0.0, %v2902
        %v2904 = vpop.f32.mrb[0].mxu0
        %v2905 = vpop.f32.mrb[0].mxu0
        %v2906 = vpop.f32.mrb[0].mxu0
        %2907 = vdwg.mxu0
        %v2908 = vadd.f32 %v2733, %v2855
        %v2909 = vadd.f32 %v2734, %v2858
        %v2910 = vadd.f32 %v2735, %v2863
        %v2911 = vadd.f32 %v2736, %v2866
        %v2912 = vadd.f32 %v2737, %v2871
        %v2913 = vadd.f32 %v2738, %v2874
        %v2914 = vadd.f32 %v2739, %v2879
        %v2915 = vadd.f32 %v2740, %v2882
        %v2916 = vadd.f32 %v2741, %v2887
        %v2917 = vadd.f32 %v2742, %v2890
        %v2918 = vadd.f32 %v2743, %v2895
        %v2919 = vadd.f32 %v2744, %v2898
        %v2920 = vadd.f32 %v2745, %v2903
        %v2921 = vld [vmem:[#allocation2 + $0x10] sm:$0xff]
        %v2922 = vld [vmem:[#allocation2 + $0x18] sm:$0xff]
        %v2923 = vld [vmem:[#allocation2 + $0x20] sm:$0xff]
        %v2924 = vld [vmem:[#allocation2 + $0x28] sm:$0xff]
        %v2925 = vld [vmem:[#allocation2 + $0x30] sm:$0xff]
        %v2926 = vld [vmem:[#allocation2 + $0x38] sm:$0xff]
        %v2927 = vld [vmem:[#allocation2 + $0x40] sm:$0xff]
        %v2928 = vld [vmem:[#allocation2 + $0x48] sm:$0xff]
        %v2929 = vld [vmem:[#allocation2 + $0x50] sm:$0xff]
        %v2930 = vld [vmem:[#allocation2 + $0x58] sm:$0xff]
        %v2931 = vld [vmem:[#allocation2 + $0x60] sm:$0xff]
        %v2932 = vld [vmem:[#allocation2 + $0x68] sm:$0xff]
        %v2933 = vld [vmem:[#allocation2 + $0x70] sm:$0xf]
        %v2934 = vpack.c.bf16 %v2922, %v2921
        %v2935 = vpack.c.bf16 %v2924, %v2923
        %v2936 = vpack.c.bf16 %v2926, %v2925
        %v2937 = vpack.c.bf16 %v2928, %v2927
        %v2938 = vpack.c.bf16 %v2930, %v2929
        %v2939 = vpack.c.bf16 %v2932, %v2931
        %v2940 = vpack.c.bf16 %v2933, %v2933
        %s2941 = scalar_lea.vmem %s277, 128
        %v2942 = vld [vmem:[%s2941] sm:$0xf]
        %v2943 = vld [vmem:[%s2941 + $0x4] sm:$0xf]
        %v2944 = vld [vmem:[%s2941 + $0x8] sm:$0xf]
        %v2945 = vld [vmem:[%s2941 + $0xc] sm:$0xf]
        %v2946 = vld [vmem:[%s2941 + $0x10] sm:$0xf]
        %v2947 = vld [vmem:[%s2941 + $0x14] sm:$0xf]
        %v2948 = vld [vmem:[%s2941 + $0x18] sm:$0xf]
        %v2949 = vld [vmem:[%s2941 + $0x1c] sm:$0xf]
        %v2958 = vunpack.c.l.b16 %v2942
        %v2959 = vunpack.c.l.b16 %v2943
        %v2960 = vunpack.c.l.b16 %v2944
        %v2961 = vunpack.c.l.b16 %v2945
        %v2962 = vunpack.c.l.b16 %v2946
        %v2963 = vunpack.c.l.b16 %v2947
        %v2964 = vunpack.c.l.b16 %v2948
        %v2965 = vunpack.c.l.b16 %v2949
        %v2966 = vpack.c.b16 %v2959, %v2958
        %v2967 = vpack.c.b16 %v2961, %v2960
        %v2968 = vpack.c.b16 %v2963, %v2962
        %v2969 = vpack.c.b16 %v2965, %v2964
        %v2975 = vsel %vm2328, %v2934, 0
        %v2978 = vsel %vm2328, %v2935, 0
        %v2981 = vsel %vm2328, %v2936, 0
        %v2984 = vsel %vm2328, %v2937, 0
        %v2987 = vsel %vm2328, %v2938, 0
        %v2990 = vsel %vm2328, %v2939, 0
        %v2993 = vsel %vm2328, %v2940, 0
        %2995 = vmatprep.subr.bf16.mxu0 0
        %2996 = vmatpush1.bf16.msra.mxu0 %v2966
        %2997 = vmatprep.subr.bf16.mxu0 0
        %2998 = vmatpush1.bf16.msra.mxu0 %v2967
        %2999 = vmatprep.subr.bf16.mxu0 0
        %3000 = vmatpush1.bf16.msra.mxu0 %v2968
        %3001 = vmatprep.subr.bf16.mxu0 0
        %3002 = vmatpush1.bf16.msra.mxu0 %v2969
        %3003 = vmatprep.subr.bf16.mxu0 0
        %3004 = vmatpush1.bf16.msra.mxu0 0
        %3005 = vmatprep.subr.bf16.mxu0 0
        %3006 = vmatpush1.bf16.msra.mxu0 0
        %3007 = vmatprep.subr.bf16.mxu0 0
        %3008 = vmatpush1.bf16.msra.mxu0 0
        %3009 = vmatprep.subr.bf16.mxu0 0
        %3010 = vmatpush1.bf16.msra.mxu0 0
        %3011 = vmatprep.subr.bf16.mxu0 0
        %3012 = vmatpush1.bf16.msra.mxu0 0
        %3013 = vmatprep.subr.bf16.mxu0 0
        %3014 = vmatpush1.bf16.msra.mxu0 0
        %3015 = vmatprep.subr.bf16.mxu0 0
        %3016 = vmatpush1.bf16.msra.mxu0 0
        %3017 = vmatprep.subr.bf16.mxu0 0
        %3018 = vmatpush1.bf16.msra.mxu0 0
        %3019 = vmatprep.subr.bf16.mxu0 0
        %3020 = vmatpush1.bf16.msra.mxu0 0
        %3021 = vmatprep.subr.bf16.mxu0 0
        %3022 = vmatpush1.bf16.msra.mxu0 0
        %3023 = vmatprep.subr.bf16.mxu0 0
        %3024 = vmatpush1.bf16.msra.mxu0 0
        %3025 = vmatprep.subr.bf16.mxu0 0
        %3026 = vmatpush1.bf16.msra.mxu0 0
        %3027 = vmatprep.mubr.bf16.mxu0 0
        %3028 = vmatmul.mubr.bf16.gmra.mrb[0].mxu0 %v2975
        %v3029 = vpop.f32.mrb[0].mxu0
        %v3030 = vadd.f32 0.0, %v3029
        %v3031 = vpop.f32.mrb[0].mxu0
        %v3032 = vpop.f32.mrb[0].mxu0
        %v3033 = vadd.f32 0.0, %v3032
        %v3034 = vpop.f32.mrb[0].mxu0
        %3035 = vmatprep.mubr.bf16.mxu0 0
        %3036 = vmatmul.mubr.bf16.gmra.mrb[0].mxu0 %v2978
        %v3037 = vpop.f32.mrb[0].mxu0
        %v3038 = vadd.f32 0.0, %v3037
        %v3039 = vpop.f32.mrb[0].mxu0
        %v3040 = vpop.f32.mrb[0].mxu0
        %v3041 = vadd.f32 0.0, %v3040
        %v3042 = vpop.f32.mrb[0].mxu0
        %3043 = vmatprep.mubr.bf16.mxu0 0
        %3044 = vmatmul.mubr.bf16.gmra.mrb[0].mxu0 %v2981
        %v3045 = vpop.f32.mrb[0].mxu0
        %v3046 = vadd.f32 0.0, %v3045
        %v3047 = vpop.f32.mrb[0].mxu0
        %v3048 = vpop.f32.mrb[0].mxu0
        %v3049 = vadd.f32 0.0, %v3048
        %v3050 = vpop.f32.mrb[0].mxu0
        %3051 = vmatprep.mubr.bf16.mxu0 0
        %3052 = vmatmul.mubr.bf16.gmra.mrb[0].mxu0 %v2984
        %v3053 = vpop.f32.mrb[0].mxu0
        %v3054 = vadd.f32 0.0, %v3053
        %v3055 = vpop.f32.mrb[0].mxu0
        %v3056 = vpop.f32.mrb[0].mxu0
        %v3057 = vadd.f32 0.0, %v3056
        %v3058 = vpop.f32.mrb[0].mxu0
        %3059 = vmatprep.mubr.bf16.mxu0 0
        %3060 = vmatmul.mubr.bf16.gmra.mrb[0].mxu0 %v2987
        %v3061 = vpop.f32.mrb[0].mxu0
        %v3062 = vadd.f32 0.0, %v3061
        %v3063 = vpop.f32.mrb[0].mxu0
        %v3064 = vpop.f32.mrb[0].mxu0
        %v3065 = vadd.f32 0.0, %v3064
        %v3066 = vpop.f32.mrb[0].mxu0
        %3067 = vmatprep.mubr.bf16.mxu0 0
        %3068 = vmatmul.mubr.bf16.gmra.mrb[0].mxu0 %v2990
        %v3069 = vpop.f32.mrb[0].mxu0
        %v3070 = vadd.f32 0.0, %v3069
        %v3071 = vpop.f32.mrb[0].mxu0
        %v3072 = vpop.f32.mrb[0].mxu0
        %v3073 = vadd.f32 0.0, %v3072
        %v3074 = vpop.f32.mrb[0].mxu0
        %3075 = vmatprep.mubr.bf16.mxu0 0
        %3076 = vmatmul.mubr.bf16.gmra.mrb[0].mxu0 %v2993
        %v3077 = vpop.f32.mrb[0].mxu0
        %v3078 = vadd.f32 0.0, %v3077
        %v3079 = vpop.f32.mrb[0].mxu0
        %v3080 = vpop.f32.mrb[0].mxu0
        %v3081 = vpop.f32.mrb[0].mxu0
        %3082 = vdwg.mxu0
        %v3083 = vadd.f32 %v2908, %v3030
        %v3084 = vadd.f32 %v2909, %v3033
        %v3085 = vadd.f32 %v2910, %v3038
        %v3086 = vadd.f32 %v2911, %v3041
        %v3087 = vadd.f32 %v2912, %v3046
        %v3088 = vadd.f32 %v2913, %v3049
        %v3089 = vadd.f32 %v2914, %v3054
        %v3090 = vadd.f32 %v2915, %v3057
        %v3091 = vadd.f32 %v2916, %v3062
        %v3092 = vadd.f32 %v2917, %v3065
        %v3093 = vadd.f32 %v2918, %v3070
        %v3094 = vadd.f32 %v2919, %v3073
        %v3095 = vadd.f32 %v2920, %v3078
        %v3096 = vld [vmem:[#allocation2 + $0x11] sm:$0xff]
        %v3097 = vld [vmem:[#allocation2 + $0x19] sm:$0xff]
        %v3098 = vld [vmem:[#allocation2 + $0x21] sm:$0xff]
        %v3099 = vld [vmem:[#allocation2 + $0x29] sm:$0xff]
        %v3100 = vld [vmem:[#allocation2 + $0x31] sm:$0xff]
        %v3101 = vld [vmem:[#allocation2 + $0x39] sm:$0xff]
        %v3102 = vld [vmem:[#allocation2 + $0x41] sm:$0xff]
        %v3103 = vld [vmem:[#allocation2 + $0x49] sm:$0xff]
        %v3104 = vld [vmem:[#allocation2 + $0x51] sm:$0xff]
        %v3105 = vld [vmem:[#allocation2 + $0x59] sm:$0xff]
        %v3106 = vld [vmem:[#allocation2 + $0x61] sm:$0xff]
        %v3107 = vld [vmem:[#allocation2 + $0x69] sm:$0xff]
        %v3108 = vld [vmem:[#allocation2 + $0x71] sm:$0xf]
        %v3109 = vpack.c.bf16 %v3097, %v3096
        %v3110 = vpack.c.bf16 %v3099, %v3098
        %v3111 = vpack.c.bf16 %v3101, %v3100
        %v3112 = vpack.c.bf16 %v3103, %v3102
        %v3113 = vpack.c.bf16 %v3105, %v3104
        %v3114 = vpack.c.bf16 %v3107, %v3106
        %v3115 = vpack.c.bf16 %v3108, %v3108
        %s3116 = scalar_lea.vmem %s277, 160
        %v3117 = vld [vmem:[%s3116] sm:$0xf]
        %v3118 = vld [vmem:[%s3116 + $0x4] sm:$0xf]
        %v3119 = vld [vmem:[%s3116 + $0x8] sm:$0xf]
        %v3120 = vld [vmem:[%s3116 + $0xc] sm:$0xf]
        %v3121 = vld [vmem:[%s3116 + $0x10] sm:$0xf]
        %v3122 = vld [vmem:[%s3116 + $0x14] sm:$0xf]
        %v3123 = vld [vmem:[%s3116 + $0x18] sm:$0xf]
        %v3124 = vld [vmem:[%s3116 + $0x1c] sm:$0xf]
        %v3133 = vunpack.c.l.b16 %v3117
        %v3134 = vunpack.c.l.b16 %v3118
        %v3135 = vunpack.c.l.b16 %v3119
        %v3136 = vunpack.c.l.b16 %v3120
        %v3137 = vunpack.c.l.b16 %v3121
        %v3138 = vunpack.c.l.b16 %v3122
        %v3139 = vunpack.c.l.b16 %v3123
        %v3140 = vunpack.c.l.b16 %v3124
        %v3141 = vpack.c.b16 %v3134, %v3133
        %v3142 = vpack.c.b16 %v3136, %v3135
        %v3143 = vpack.c.b16 %v3138, %v3137
        %v3144 = vpack.c.b16 %v3140, %v3139
        %v3150 = vsel %vm2328, %v3109, 0
        %v3153 = vsel %vm2328, %v3110, 0
        %v3156 = vsel %vm2328, %v3111, 0
        %v3159 = vsel %vm2328, %v3112, 0
        %v3162 = vsel %vm2328, %v3113, 0
        %v3165 = vsel %vm2328, %v3114, 0
        %v3168 = vsel %vm2328, %v3115, 0
        %3170 = vmatprep.subr.bf16.mxu0 0
        %3171 = vmatpush1.bf16.msra.mxu0 %v3141
        %3172 = vmatprep.subr.bf16.mxu0 0
        %3173 = vmatpush1.bf16.msra.mxu0 %v3142
        %3174 = vmatprep.subr.bf16.mxu0 0
        %3175 = vmatpush1.bf16.msra.mxu0 %v3143
        %3176 = vmatprep.subr.bf16.mxu0 0
        %3177 = vmatpush1.bf16.msra.mxu0 %v3144
        %3178 = vmatprep.subr.bf16.mxu0 0
        %3179 = vmatpush1.bf16.msra.mxu0 0
        %3180 = vmatprep.subr.bf16.mxu0 0
        %3181 = vmatpush1.bf16.msra.mxu0 0
        %3182 = vmatprep.subr.bf16.mxu0 0
        %3183 = vmatpush1.bf16.msra.mxu0 0
        %3184 = vmatprep.subr.bf16.mxu0 0
        %3185 = vmatpush1.bf16.msra.mxu0 0
        %3186 = vmatprep.subr.bf16.mxu0 0
        %3187 = vmatpush1.bf16.msra.mxu0 0
        %3188 = vmatprep.subr.bf16.mxu0 0
        %3189 = vmatpush1.bf16.msra.mxu0 0
        %3190 = vmatprep.subr.bf16.mxu0 0
        %3191 = vmatpush1.bf16.msra.mxu0 0
        %3192 = vmatprep.subr.bf16.mxu0 0
        %3193 = vmatpush1.bf16.msra.mxu0 0
        %3194 = vmatprep.subr.bf16.mxu0 0
        %3195 = vmatpush1.bf16.msra.mxu0 0
        %3196 = vmatprep.subr.bf16.mxu0 0
        %3197 = vmatpush1.bf16.msra.mxu0 0
        %3198 = vmatprep.subr.bf16.mxu0 0
        %3199 = vmatpush1.bf16.msra.mxu0 0
        %3200 = vmatprep.subr.bf16.mxu0 0
        %3201 = vmatpush1.bf16.msra.mxu0 0
        %3202 = vmatprep.mubr.bf16.mxu0 0
        %3203 = vmatmul.mubr.bf16.gmra.mrb[0].mxu0 %v3150
        %v3204 = vpop.f32.mrb[0].mxu0
        %v3205 = vadd.f32 0.0, %v3204
        %v3206 = vpop.f32.mrb[0].mxu0
        %v3207 = vpop.f32.mrb[0].mxu0
        %v3208 = vadd.f32 0.0, %v3207
        %v3209 = vpop.f32.mrb[0].mxu0
        %3210 = vmatprep.mubr.bf16.mxu0 0
        %3211 = vmatmul.mubr.bf16.gmra.mrb[0].mxu0 %v3153
        %v3212 = vpop.f32.mrb[0].mxu0
        %v3213 = vadd.f32 0.0, %v3212
        %v3214 = vpop.f32.mrb[0].mxu0
        %v3215 = vpop.f32.mrb[0].mxu0
        %v3216 = vadd.f32 0.0, %v3215
        %v3217 = vpop.f32.mrb[0].mxu0
        %3218 = vmatprep.mubr.bf16.mxu0 0
        %3219 = vmatmul.mubr.bf16.gmra.mrb[0].mxu0 %v3156
        %v3220 = vpop.f32.mrb[0].mxu0
        %v3221 = vadd.f32 0.0, %v3220
        %v3222 = vpop.f32.mrb[0].mxu0
        %v3223 = vpop.f32.mrb[0].mxu0
        %v3224 = vadd.f32 0.0, %v3223
        %v3225 = vpop.f32.mrb[0].mxu0
        %3226 = vmatprep.mubr.bf16.mxu0 0
        %3227 = vmatmul.mubr.bf16.gmra.mrb[0].mxu0 %v3159
        %v3228 = vpop.f32.mrb[0].mxu0
        %v3229 = vadd.f32 0.0, %v3228
        %v3230 = vpop.f32.mrb[0].mxu0
        %v3231 = vpop.f32.mrb[0].mxu0
        %v3232 = vadd.f32 0.0, %v3231
        %v3233 = vpop.f32.mrb[0].mxu0
        %3234 = vmatprep.mubr.bf16.mxu0 0
        %3235 = vmatmul.mubr.bf16.gmra.mrb[0].mxu0 %v3162
        %v3236 = vpop.f32.mrb[0].mxu0
        %v3237 = vadd.f32 0.0, %v3236
        %v3238 = vpop.f32.mrb[0].mxu0
        %v3239 = vpop.f32.mrb[0].mxu0
        %v3240 = vadd.f32 0.0, %v3239
        %v3241 = vpop.f32.mrb[0].mxu0
        %3242 = vmatprep.mubr.bf16.mxu0 0
        %3243 = vmatmul.mubr.bf16.gmra.mrb[0].mxu0 %v3165
        %v3244 = vpop.f32.mrb[0].mxu0
        %v3245 = vadd.f32 0.0, %v3244
        %v3246 = vpop.f32.mrb[0].mxu0
        %v3247 = vpop.f32.mrb[0].mxu0
        %v3248 = vadd.f32 0.0, %v3247
        %v3249 = vpop.f32.mrb[0].mxu0
        %3250 = vmatprep.mubr.bf16.mxu0 0
        %3251 = vmatmul.mubr.bf16.gmra.mrb[0].mxu0 %v3168
        %v3252 = vpop.f32.mrb[0].mxu0
        %v3253 = vadd.f32 0.0, %v3252
        %v3254 = vpop.f32.mrb[0].mxu0
        %v3255 = vpop.f32.mrb[0].mxu0
        %v3256 = vpop.f32.mrb[0].mxu0
        %3257 = vdwg.mxu0
        %v3258 = vadd.f32 %v3083, %v3205
        %v3259 = vadd.f32 %v3084, %v3208
        %v3260 = vadd.f32 %v3085, %v3213
        %v3261 = vadd.f32 %v3086, %v3216
        %v3262 = vadd.f32 %v3087, %v3221
        %v3263 = vadd.f32 %v3088, %v3224
        %v3264 = vadd.f32 %v3089, %v3229
        %v3265 = vadd.f32 %v3090, %v3232
        %v3266 = vadd.f32 %v3091, %v3237
        %v3267 = vadd.f32 %v3092, %v3240
        %v3268 = vadd.f32 %v3093, %v3245
        %v3269 = vadd.f32 %v3094, %v3248
        %v3270 = vadd.f32 %v3095, %v3253
        %v3271 = vld [vmem:[#allocation2 + $0x19] sm:$0xff]
        %v3272 = vld [vmem:[#allocation2 + $0x21] sm:$0xff]
        %v3273 = vld [vmem:[#allocation2 + $0x29] sm:$0xff]
        %v3274 = vld [vmem:[#allocation2 + $0x31] sm:$0xff]
        %v3275 = vld [vmem:[#allocation2 + $0x39] sm:$0xff]
        %v3276 = vld [vmem:[#allocation2 + $0x41] sm:$0xff]
        %v3277 = vld [vmem:[#allocation2 + $0x49] sm:$0xff]
        %v3278 = vld [vmem:[#allocation2 + $0x51] sm:$0xff]
        %v3279 = vld [vmem:[#allocation2 + $0x59] sm:$0xff]
        %v3280 = vld [vmem:[#allocation2 + $0x61] sm:$0xff]
        %v3281 = vld [vmem:[#allocation2 + $0x69] sm:$0xff]
        %v3282 = vld [vmem:[#allocation2 + $0x71] sm:$0xff]
        %v3283 = vld [vmem:[#allocation2 + $0x79] sm:$0xf]
        %v3284 = vpack.c.bf16 %v3272, %v3271
        %v3285 = vpack.c.bf16 %v3274, %v3273
        %v3286 = vpack.c.bf16 %v3276, %v3275
        %v3287 = vpack.c.bf16 %v3278, %v3277
        %v3288 = vpack.c.bf16 %v3280, %v3279
        %v3289 = vpack.c.bf16 %v3282, %v3281
        %v3290 = vpack.c.bf16 %v3283, %v3283
        %s3291 = scalar_lea.vmem %s277, 192
        %v3292 = vld [vmem:[%s3291] sm:$0xf]
        %v3293 = vld [vmem:[%s3291 + $0x4] sm:$0xf]
        %v3294 = vld [vmem:[%s3291 + $0x8] sm:$0xf]
        %v3295 = vld [vmem:[%s3291 + $0xc] sm:$0xf]
        %v3296 = vld [vmem:[%s3291 + $0x10] sm:$0xf]
        %v3297 = vld [vmem:[%s3291 + $0x14] sm:$0xf]
        %v3298 = vld [vmem:[%s3291 + $0x18] sm:$0xf]
        %v3299 = vld [vmem:[%s3291 + $0x1c] sm:$0xf]
        %v3308 = vunpack.c.l.b16 %v3292
        %v3309 = vunpack.c.l.b16 %v3293
        %v3310 = vunpack.c.l.b16 %v3294
        %v3311 = vunpack.c.l.b16 %v3295
        %v3312 = vunpack.c.l.b16 %v3296
        %v3313 = vunpack.c.l.b16 %v3297
        %v3314 = vunpack.c.l.b16 %v3298
        %v3315 = vunpack.c.l.b16 %v3299
        %v3316 = vpack.c.b16 %v3309, %v3308
        %v3317 = vpack.c.b16 %v3311, %v3310
        %v3318 = vpack.c.b16 %v3313, %v3312
        %v3319 = vpack.c.b16 %v3315, %v3314
        %v3325 = vsel %vm2328, %v3284, 0
        %v3328 = vsel %vm2328, %v3285, 0
        %v3331 = vsel %vm2328, %v3286, 0
        %v3334 = vsel %vm2328, %v3287, 0
        %v3337 = vsel %vm2328, %v3288, 0
        %v3340 = vsel %vm2328, %v3289, 0
        %v3343 = vsel %vm2328, %v3290, 0
        %3345 = vmatprep.subr.bf16.mxu0 0
        %3346 = vmatpush1.bf16.msra.mxu0 %v3316
        %3347 = vmatprep.subr.bf16.mxu0 0
        %3348 = vmatpush1.bf16.msra.mxu0 %v3317
        %3349 = vmatprep.subr.bf16.mxu0 0
        %3350 = vmatpush1.bf16.msra.mxu0 %v3318
        %3351 = vmatprep.subr.bf16.mxu0 0
        %3352 = vmatpush1.bf16.msra.mxu0 %v3319
        %3353 = vmatprep.subr.bf16.mxu0 0
        %3354 = vmatpush1.bf16.msra.mxu0 0
        %3355 = vmatprep.subr.bf16.mxu0 0
        %3356 = vmatpush1.bf16.msra.mxu0 0
        %3357 = vmatprep.subr.bf16.mxu0 0
        %3358 = vmatpush1.bf16.msra.mxu0 0
        %3359 = vmatprep.subr.bf16.mxu0 0
        %3360 = vmatpush1.bf16.msra.mxu0 0
        %3361 = vmatprep.subr.bf16.mxu0 0
        %3362 = vmatpush1.bf16.msra.mxu0 0
        %3363 = vmatprep.subr.bf16.mxu0 0
        %3364 = vmatpush1.bf16.msra.mxu0 0
        %3365 = vmatprep.subr.bf16.mxu0 0
        %3366 = vmatpush1.bf16.msra.mxu0 0
        %3367 = vmatprep.subr.bf16.mxu0 0
        %3368 = vmatpush1.bf16.msra.mxu0 0
        %3369 = vmatprep.subr.bf16.mxu0 0
        %3370 = vmatpush1.bf16.msra.mxu0 0
        %3371 = vmatprep.subr.bf16.mxu0 0
        %3372 = vmatpush1.bf16.msra.mxu0 0
        %3373 = vmatprep.subr.bf16.mxu0 0
        %3374 = vmatpush1.bf16.msra.mxu0 0
        %3375 = vmatprep.subr.bf16.mxu0 0
        %3376 = vmatpush1.bf16.msra.mxu0 0
        %3377 = vmatprep.mubr.bf16.mxu0 0
        %3378 = vmatmul.mubr.bf16.gmra.mrb[0].mxu0 %v3325
        %v3379 = vpop.f32.mrb[0].mxu0
        %v3380 = vadd.f32 0.0, %v3379
        %v3381 = vpop.f32.mrb[0].mxu0
        %v3382 = vpop.f32.mrb[0].mxu0
        %v3383 = vadd.f32 0.0, %v3382
        %v3384 = vpop.f32.mrb[0].mxu0
        %3385 = vmatprep.mubr.bf16.mxu0 0
        %3386 = vmatmul.mubr.bf16.gmra.mrb[0].mxu0 %v3328
        %v3387 = vpop.f32.mrb[0].mxu0
        %v3388 = vadd.f32 0.0, %v3387
        %v3389 = vpop.f32.mrb[0].mxu0
        %v3390 = vpop.f32.mrb[0].mxu0
        %v3391 = vadd.f32 0.0, %v3390
        %v3392 = vpop.f32.mrb[0].mxu0
        %3393 = vmatprep.mubr.bf16.mxu0 0
        %3394 = vmatmul.mubr.bf16.gmra.mrb[0].mxu0 %v3331
        %v3395 = vpop.f32.mrb[0].mxu0
        %v3396 = vadd.f32 0.0, %v3395
        %v3397 = vpop.f32.mrb[0].mxu0
        %v3398 = vpop.f32.mrb[0].mxu0
        %v3399 = vadd.f32 0.0, %v3398
        %v3400 = vpop.f32.mrb[0].mxu0
        %3401 = vmatprep.mubr.bf16.mxu0 0
        %3402 = vmatmul.mubr.bf16.gmra.mrb[0].mxu0 %v3334
        %v3403 = vpop.f32.mrb[0].mxu0
        %v3404 = vadd.f32 0.0, %v3403
        %v3405 = vpop.f32.mrb[0].mxu0
        %v3406 = vpop.f32.mrb[0].mxu0
        %v3407 = vadd.f32 0.0, %v3406
        %v3408 = vpop.f32.mrb[0].mxu0
        %3409 = vmatprep.mubr.bf16.mxu0 0
        %3410 = vmatmul.mubr.bf16.gmra.mrb[0].mxu0 %v3337
        %v3411 = vpop.f32.mrb[0].mxu0
        %v3412 = vadd.f32 0.0, %v3411
        %v3413 = vpop.f32.mrb[0].mxu0
        %v3414 = vpop.f32.mrb[0].mxu0
        %v3415 = vadd.f32 0.0, %v3414
        %v3416 = vpop.f32.mrb[0].mxu0
        %3417 = vmatprep.mubr.bf16.mxu0 0
        %3418 = vmatmul.mubr.bf16.gmra.mrb[0].mxu0 %v3340
        %v3419 = vpop.f32.mrb[0].mxu0
        %v3420 = vadd.f32 0.0, %v3419
        %v3421 = vpop.f32.mrb[0].mxu0
        %v3422 = vpop.f32.mrb[0].mxu0
        %v3423 = vadd.f32 0.0, %v3422
        %v3424 = vpop.f32.mrb[0].mxu0
        %3425 = vmatprep.mubr.bf16.mxu0 0
        %3426 = vmatmul.mubr.bf16.gmra.mrb[0].mxu0 %v3343
        %v3427 = vpop.f32.mrb[0].mxu0
        %v3428 = vadd.f32 0.0, %v3427
        %v3429 = vpop.f32.mrb[0].mxu0
        %v3430 = vpop.f32.mrb[0].mxu0
        %v3431 = vpop.f32.mrb[0].mxu0
        %3432 = vdwg.mxu0
        %v3433 = vadd.f32 %v3258, %v3380
        %v3434 = vadd.f32 %v3259, %v3383
        %v3435 = vadd.f32 %v3260, %v3388
        %v3436 = vadd.f32 %v3261, %v3391
        %v3437 = vadd.f32 %v3262, %v3396
        %v3438 = vadd.f32 %v3263, %v3399
        %v3439 = vadd.f32 %v3264, %v3404
        %v3440 = vadd.f32 %v3265, %v3407
        %v3441 = vadd.f32 %v3266, %v3412
        %v3442 = vadd.f32 %v3267, %v3415
        %v3443 = vadd.f32 %v3268, %v3420
        %v3444 = vadd.f32 %v3269, %v3423
        %v3445 = vadd.f32 %v3270, %v3428
        %v3446 = vld [vmem:[#allocation2 + $0x1a] sm:$0xff]
        %v3447 = vld [vmem:[#allocation2 + $0x22] sm:$0xff]
        %v3448 = vld [vmem:[#allocation2 + $0x2a] sm:$0xff]
        %v3449 = vld [vmem:[#allocation2 + $0x32] sm:$0xff]
        %v3450 = vld [vmem:[#allocation2 + $0x3a] sm:$0xff]
        %v3451 = vld [vmem:[#allocation2 + $0x42] sm:$0xff]
        %v3452 = vld [vmem:[#allocation2 + $0x4a] sm:$0xff]
        %v3453 = vld [vmem:[#allocation2 + $0x52] sm:$0xff]
        %v3454 = vld [vmem:[#allocation2 + $0x5a] sm:$0xff]
        %v3455 = vld [vmem:[#allocation2 + $0x62] sm:$0xff]
        %v3456 = vld [vmem:[#allocation2 + $0x6a] sm:$0xff]
        %v3457 = vld [vmem:[#allocation2 + $0x72] sm:$0xff]
        %v3458 = vld [vmem:[#allocation2 + $0x7a] sm:$0xf]
        %v3459 = vpack.c.bf16 %v3447, %v3446
        %v3460 = vpack.c.bf16 %v3449, %v3448
        %v3461 = vpack.c.bf16 %v3451, %v3450
        %v3462 = vpack.c.bf16 %v3453, %v3452
        %v3463 = vpack.c.bf16 %v3455, %v3454
        %v3464 = vpack.c.bf16 %v3457, %v3456
        %v3465 = vpack.c.bf16 %v3458, %v3458
        %s3466 = scalar_lea.vmem %s277, 224
        %v3467 = vld [vmem:[%s3466] sm:$0xf]
        %v3468 = vld [vmem:[%s3466 + $0x4] sm:$0xf]
        %v3469 = vld [vmem:[%s3466 + $0x8] sm:$0xf]
        %v3470 = vld [vmem:[%s3466 + $0xc] sm:$0xf]
        %v3471 = vld [vmem:[%s3466 + $0x10] sm:$0xf]
        %v3472 = vld [vmem:[%s3466 + $0x14] sm:$0xf]
        %v3473 = vld [vmem:[%s3466 + $0x18] sm:$0xf]
        %v3474 = vld [vmem:[%s3466 + $0x1c] sm:$0xf]
        %v3483 = vunpack.c.l.b16 %v3467
        %v3484 = vunpack.c.l.b16 %v3468
        %v3485 = vunpack.c.l.b16 %v3469
        %v3486 = vunpack.c.l.b16 %v3470
        %v3487 = vunpack.c.l.b16 %v3471
        %v3488 = vunpack.c.l.b16 %v3472
        %v3489 = vunpack.c.l.b16 %v3473
        %v3490 = vunpack.c.l.b16 %v3474
        %v3491 = vpack.c.b16 %v3484, %v3483
        %v3492 = vpack.c.b16 %v3486, %v3485
        %v3493 = vpack.c.b16 %v3488, %v3487
        %v3494 = vpack.c.b16 %v3490, %v3489
        %v3500 = vsel %vm2328, %v3459, 0
        %v3503 = vsel %vm2328, %v3460, 0
        %v3506 = vsel %vm2328, %v3461, 0
        %v3509 = vsel %vm2328, %v3462, 0
        %v3512 = vsel %vm2328, %v3463, 0
        %v3515 = vsel %vm2328, %v3464, 0
        %v3518 = vsel %vm2328, %v3465, 0
        %3520 = vmatprep.subr.bf16.mxu0 0
        %3521 = vmatpush1.bf16.msra.mxu0 %v3491
        %3522 = vmatprep.subr.bf16.mxu0 0
        %3523 = vmatpush1.bf16.msra.mxu0 %v3492
        %3524 = vmatprep.subr.bf16.mxu0 0
        %3525 = vmatpush1.bf16.msra.mxu0 %v3493
        %3526 = vmatprep.subr.bf16.mxu0 0
        %3527 = vmatpush1.bf16.msra.mxu0 %v3494
        %3528 = vmatprep.subr.bf16.mxu0 0
        %3529 = vmatpush1.bf16.msra.mxu0 0
        %3530 = vmatprep.subr.bf16.mxu0 0
        %3531 = vmatpush1.bf16.msra.mxu0 0
        %3532 = vmatprep.subr.bf16.mxu0 0
        %3533 = vmatpush1.bf16.msra.mxu0 0
        %3534 = vmatprep.subr.bf16.mxu0 0
        %3535 = vmatpush1.bf16.msra.mxu0 0
        %3536 = vmatprep.subr.bf16.mxu0 0
        %3537 = vmatpush1.bf16.msra.mxu0 0
        %3538 = vmatprep.subr.bf16.mxu0 0
        %3539 = vmatpush1.bf16.msra.mxu0 0
        %3540 = vmatprep.subr.bf16.mxu0 0
        %3541 = vmatpush1.bf16.msra.mxu0 0
        %3542 = vmatprep.subr.bf16.mxu0 0
        %3543 = vmatpush1.bf16.msra.mxu0 0
        %3544 = vmatprep.subr.bf16.mxu0 0
        %3545 = vmatpush1.bf16.msra.mxu0 0
        %3546 = vmatprep.subr.bf16.mxu0 0
        %3547 = vmatpush1.bf16.msra.mxu0 0
        %3548 = vmatprep.subr.bf16.mxu0 0
        %3549 = vmatpush1.bf16.msra.mxu0 0
        %3550 = vmatprep.subr.bf16.mxu0 0
        %3551 = vmatpush1.bf16.msra.mxu0 0
        %3552 = vmatprep.mubr.bf16.mxu0 0
        %3553 = vmatmul.mubr.bf16.gmra.mrb[0].mxu0 %v3500
        %v3554 = vpop.f32.mrb[0].mxu0
        %v3555 = vadd.f32 0.0, %v3554
        %v3556 = vpop.f32.mrb[0].mxu0
        %v3557 = vpop.f32.mrb[0].mxu0
        %v3558 = vadd.f32 0.0, %v3557
        %v3559 = vpop.f32.mrb[0].mxu0
        %3560 = vmatprep.mubr.bf16.mxu0 0
        %3561 = vmatmul.mubr.bf16.gmra.mrb[0].mxu0 %v3503
        %v3562 = vpop.f32.mrb[0].mxu0
        %v3563 = vadd.f32 0.0, %v3562
        %v3564 = vpop.f32.mrb[0].mxu0
        %v3565 = vpop.f32.mrb[0].mxu0
        %v3566 = vadd.f32 0.0, %v3565
        %v3567 = vpop.f32.mrb[0].mxu0
        %3568 = vmatprep.mubr.bf16.mxu0 0
        %3569 = vmatmul.mubr.bf16.gmra.mrb[0].mxu0 %v3506
        %v3570 = vpop.f32.mrb[0].mxu0
        %v3571 = vadd.f32 0.0, %v3570
        %v3572 = vpop.f32.mrb[0].mxu0
        %v3573 = vpop.f32.mrb[0].mxu0
        %v3574 = vadd.f32 0.0, %v3573
        %v3575 = vpop.f32.mrb[0].mxu0
        %3576 = vmatprep.mubr.bf16.mxu0 0
        %3577 = vmatmul.mubr.bf16.gmra.mrb[0].mxu0 %v3509
        %v3578 = vpop.f32.mrb[0].mxu0
        %v3579 = vadd.f32 0.0, %v3578
        %v3580 = vpop.f32.mrb[0].mxu0
        %v3581 = vpop.f32.mrb[0].mxu0
        %v3582 = vadd.f32 0.0, %v3581
        %v3583 = vpop.f32.mrb[0].mxu0
        %3584 = vmatprep.mubr.bf16.mxu0 0
        %3585 = vmatmul.mubr.bf16.gmra.mrb[0].mxu0 %v3512
        %v3586 = vpop.f32.mrb[0].mxu0
        %v3587 = vadd.f32 0.0, %v3586
        %v3588 = vpop.f32.mrb[0].mxu0
        %v3589 = vpop.f32.mrb[0].mxu0
        %v3590 = vadd.f32 0.0, %v3589
        %v3591 = vpop.f32.mrb[0].mxu0
        %3592 = vmatprep.mubr.bf16.mxu0 0
        %3593 = vmatmul.mubr.bf16.gmra.mrb[0].mxu0 %v3515
        %v3594 = vpop.f32.mrb[0].mxu0
        %v3595 = vadd.f32 0.0, %v3594
        %v3596 = vpop.f32.mrb[0].mxu0
        %v3597 = vpop.f32.mrb[0].mxu0
        %v3598 = vadd.f32 0.0, %v3597
        %v3599 = vpop.f32.mrb[0].mxu0
        %3600 = vmatprep.mubr.bf16.mxu0 0
        %3601 = vmatmul.mubr.bf16.gmra.mrb[0].mxu0 %v3518
        %v3602 = vpop.f32.mrb[0].mxu0
        %v3603 = vadd.f32 0.0, %v3602
        %v3604 = vpop.f32.mrb[0].mxu0
        %v3605 = vpop.f32.mrb[0].mxu0
        %v3606 = vpop.f32.mrb[0].mxu0
        %3607 = vdwg.mxu0
        %v3608 = vadd.f32 %v3433, %v3555
        %v3609 = vadd.f32 %v3434, %v3558
        %v3610 = vadd.f32 %v3435, %v3563
        %v3611 = vadd.f32 %v3436, %v3566
        %v3612 = vadd.f32 %v3437, %v3571
        %v3613 = vadd.f32 %v3438, %v3574
        %v3614 = vadd.f32 %v3439, %v3579
        %v3615 = vadd.f32 %v3440, %v3582
        %v3616 = vadd.f32 %v3441, %v3587
        %v3617 = vadd.f32 %v3442, %v3590
        %v3618 = vadd.f32 %v3443, %v3595
        %v3619 = vadd.f32 %v3444, %v3598
        %v3620 = vadd.f32 %v3445, %v3603
        %v3621 = vld [vmem:[#allocation2 + $0x1b] sm:$0xff]
        %v3622 = vld [vmem:[#allocation2 + $0x23] sm:$0xff]
        %v3623 = vld [vmem:[#allocation2 + $0x2b] sm:$0xff]
        %v3624 = vld [vmem:[#allocation2 + $0x33] sm:$0xff]
        %v3625 = vld [vmem:[#allocation2 + $0x3b] sm:$0xff]
        %v3626 = vld [vmem:[#allocation2 + $0x43] sm:$0xff]
        %v3627 = vld [vmem:[#allocation2 + $0x4b] sm:$0xff]
        %v3628 = vld [vmem:[#allocation2 + $0x53] sm:$0xff]
        %v3629 = vld [vmem:[#allocation2 + $0x5b] sm:$0xff]
        %v3630 = vld [vmem:[#allocation2 + $0x63] sm:$0xff]
        %v3631 = vld [vmem:[#allocation2 + $0x6b] sm:$0xff]
        %v3632 = vld [vmem:[#allocation2 + $0x73] sm:$0xff]
        %v3633 = vld [vmem:[#allocation2 + $0x7b] sm:$0xf]
        %v3634 = vpack.c.bf16 %v3622, %v3621
        %v3635 = vpack.c.bf16 %v3624, %v3623
        %v3636 = vpack.c.bf16 %v3626, %v3625
        %v3637 = vpack.c.bf16 %v3628, %v3627
        %v3638 = vpack.c.bf16 %v3630, %v3629
        %v3639 = vpack.c.bf16 %v3632, %v3631
        %v3640 = vpack.c.bf16 %v3633, %v3633
        %s3641 = scalar_lea.vmem %s277, 256
        %v3642 = vld [vmem:[%s3641] sm:$0xf]
        %v3643 = vld [vmem:[%s3641 + $0x4] sm:$0xf]
        %v3644 = vld [vmem:[%s3641 + $0x8] sm:$0xf]
        %v3645 = vld [vmem:[%s3641 + $0xc] sm:$0xf]
        %v3646 = vld [vmem:[%s3641 + $0x10] sm:$0xf]
        %v3647 = vld [vmem:[%s3641 + $0x14] sm:$0xf]
        %v3648 = vld [vmem:[%s3641 + $0x18] sm:$0xf]
        %v3649 = vld [vmem:[%s3641 + $0x1c] sm:$0xf]
        %v3658 = vunpack.c.l.b16 %v3642
        %v3659 = vunpack.c.l.b16 %v3643
        %v3660 = vunpack.c.l.b16 %v3644
        %v3661 = vunpack.c.l.b16 %v3645
        %v3662 = vunpack.c.l.b16 %v3646
        %v3663 = vunpack.c.l.b16 %v3647
        %v3664 = vunpack.c.l.b16 %v3648
        %v3665 = vunpack.c.l.b16 %v3649
        %v3666 = vpack.c.b16 %v3659, %v3658
        %v3667 = vpack.c.b16 %v3661, %v3660
        %v3668 = vpack.c.b16 %v3663, %v3662
        %v3669 = vpack.c.b16 %v3665, %v3664
        %v3675 = vsel %vm2328, %v3634, 0
        %v3678 = vsel %vm2328, %v3635, 0
        %v3681 = vsel %vm2328, %v3636, 0
        %v3684 = vsel %vm2328, %v3637, 0
        %v3687 = vsel %vm2328, %v3638, 0
        %v3690 = vsel %vm2328, %v3639, 0
        %v3693 = vsel %vm2328, %v3640, 0
        %3695 = vmatprep.subr.bf16.mxu0 0
        %3696 = vmatpush1.bf16.msra.mxu0 %v3666
        %3697 = vmatprep.subr.bf16.mxu0 0
        %3698 = vmatpush1.bf16.msra.mxu0 %v3667
        %3699 = vmatprep.subr.bf16.mxu0 0
        %3700 = vmatpush1.bf16.msra.mxu0 %v3668
        %3701 = vmatprep.subr.bf16.mxu0 0
        %3702 = vmatpush1.bf16.msra.mxu0 %v3669
        %3703 = vmatprep.subr.bf16.mxu0 0
        %3704 = vmatpush1.bf16.msra.mxu0 0
        %3705 = vmatprep.subr.bf16.mxu0 0
        %3706 = vmatpush1.bf16.msra.mxu0 0
        %3707 = vmatprep.subr.bf16.mxu0 0
        %3708 = vmatpush1.bf16.msra.mxu0 0
        %3709 = vmatprep.subr.bf16.mxu0 0
        %3710 = vmatpush1.bf16.msra.mxu0 0
        %3711 = vmatprep.subr.bf16.mxu0 0
        %3712 = vmatpush1.bf16.msra.mxu0 0
        %3713 = vmatprep.subr.bf16.mxu0 0
        %3714 = vmatpush1.bf16.msra.mxu0 0
        %3715 = vmatprep.subr.bf16.mxu0 0
        %3716 = vmatpush1.bf16.msra.mxu0 0
        %3717 = vmatprep.subr.bf16.mxu0 0
        %3718 = vmatpush1.bf16.msra.mxu0 0
        %3719 = vmatprep.subr.bf16.mxu0 0
        %3720 = vmatpush1.bf16.msra.mxu0 0
        %3721 = vmatprep.subr.bf16.mxu0 0
        %3722 = vmatpush1.bf16.msra.mxu0 0
        %3723 = vmatprep.subr.bf16.mxu0 0
        %3724 = vmatpush1.bf16.msra.mxu0 0
        %3725 = vmatprep.subr.bf16.mxu0 0
        %3726 = vmatpush1.bf16.msra.mxu0 0
        %3727 = vmatprep.mubr.bf16.mxu0 0
        %3728 = vmatmul.mubr.bf16.gmra.mrb[0].mxu0 %v3675
        %v3729 = vpop.f32.mrb[0].mxu0
        %v3730 = vadd.f32 0.0, %v3729
        %v3731 = vpop.f32.mrb[0].mxu0
        %v3732 = vpop.f32.mrb[0].mxu0
        %v3733 = vadd.f32 0.0, %v3732
        %v3734 = vpop.f32.mrb[0].mxu0
        %3735 = vmatprep.mubr.bf16.mxu0 0
        %3736 = vmatmul.mubr.bf16.gmra.mrb[0].mxu0 %v3678
        %v3737 = vpop.f32.mrb[0].mxu0
        %v3738 = vadd.f32 0.0, %v3737
        %v3739 = vpop.f32.mrb[0].mxu0
        %v3740 = vpop.f32.mrb[0].mxu0
        %v3741 = vadd.f32 0.0, %v3740
        %v3742 = vpop.f32.mrb[0].mxu0
        %3743 = vmatprep.mubr.bf16.mxu0 0
        %3744 = vmatmul.mubr.bf16.gmra.mrb[0].mxu0 %v3681
        %v3745 = vpop.f32.mrb[0].mxu0
        %v3746 = vadd.f32 0.0, %v3745
        %v3747 = vpop.f32.mrb[0].mxu0
        %v3748 = vpop.f32.mrb[0].mxu0
        %v3749 = vadd.f32 0.0, %v3748
        %v3750 = vpop.f32.mrb[0].mxu0
        %3751 = vmatprep.mubr.bf16.mxu0 0
        %3752 = vmatmul.mubr.bf16.gmra.mrb[0].mxu0 %v3684
        %v3753 = vpop.f32.mrb[0].mxu0
        %v3754 = vadd.f32 0.0, %v3753
        %v3755 = vpop.f32.mrb[0].mxu0
        %v3756 = vpop.f32.mrb[0].mxu0
        %v3757 = vadd.f32 0.0, %v3756
        %v3758 = vpop.f32.mrb[0].mxu0
        %3759 = vmatprep.mubr.bf16.mxu0 0
        %3760 = vmatmul.mubr.bf16.gmra.mrb[0].mxu0 %v3687
        %v3761 = vpop.f32.mrb[0].mxu0
        %v3762 = vadd.f32 0.0, %v3761
        %v3763 = vpop.f32.mrb[0].mxu0
        %v3764 = vpop.f32.mrb[0].mxu0
        %v3765 = vadd.f32 0.0, %v3764
        %v3766 = vpop.f32.mrb[0].mxu0
        %3767 = vmatprep.mubr.bf16.mxu0 0
        %3768 = vmatmul.mubr.bf16.gmra.mrb[0].mxu0 %v3690
        %v3769 = vpop.f32.mrb[0].mxu0
        %v3770 = vadd.f32 0.0, %v3769
        %v3771 = vpop.f32.mrb[0].mxu0
        %v3772 = vpop.f32.mrb[0].mxu0
        %v3773 = vadd.f32 0.0, %v3772
        %v3774 = vpop.f32.mrb[0].mxu0
        %3775 = vmatprep.mubr.bf16.mxu0 0
        %3776 = vmatmul.mubr.bf16.gmra.mrb[0].mxu0 %v3693
        %v3777 = vpop.f32.mrb[0].mxu0
        %v3778 = vadd.f32 0.0, %v3777
        %v3779 = vpop.f32.mrb[0].mxu0
        %v3780 = vpop.f32.mrb[0].mxu0
        %v3781 = vpop.f32.mrb[0].mxu0
        %3782 = vdwg.mxu0
        %v3783 = vadd.f32 %v3608, %v3730
        %v3784 = vadd.f32 %v3609, %v3733
        %v3785 = vadd.f32 %v3610, %v3738
        %v3786 = vadd.f32 %v3611, %v3741
        %v3787 = vadd.f32 %v3612, %v3746
        %v3788 = vadd.f32 %v3613, %v3749
        %v3789 = vadd.f32 %v3614, %v3754
        %v3790 = vadd.f32 %v3615, %v3757
        %v3791 = vadd.f32 %v3616, %v3762
        %v3792 = vadd.f32 %v3617, %v3765
        %v3793 = vadd.f32 %v3618, %v3770
        %v3794 = vadd.f32 %v3619, %v3773
        %v3795 = vadd.f32 %v3620, %v3778
        %v3796 = vld [vmem:[%s280] sm:$0x1]
        %v3798 = vlaneseq
        %v3799 = vshrl.u32 %v3798, 7
        %v3800 = vsub.s32 0, %v3799
        %v3801 = vrot.slane %v3796, %v3800
        %v3803 = vadd.f32 %v3783, %v3801
        %v3804 = vadd.f32 %v3784, %v3801
        %v3805 = vadd.f32 %v3785, %v3801
        %v3806 = vadd.f32 %v3786, %v3801
        %v3807 = vadd.f32 %v3787, %v3801
        %v3808 = vadd.f32 %v3788, %v3801
        %v3809 = vadd.f32 %v3789, %v3801
        %v3810 = vadd.f32 %v3790, %v3801
        %v3811 = vadd.f32 %v3791, %v3801
        %v3812 = vadd.f32 %v3792, %v3801
        %v3813 = vadd.f32 %v3793, %v3801
        %v3814 = vadd.f32 %v3794, %v3801
        %v3815 = vadd.f32 %v3795, %v3801
        %v3816 = vmax.f32 %v3803, 0.0
        %v3817 = vmax.f32 %v3804, 0.0
        %v3818 = vmax.f32 %v3805, 0.0
        %v3819 = vmax.f32 %v3806, 0.0
        %v3820 = vmax.f32 %v3807, 0.0
        %v3821 = vmax.f32 %v3808, 0.0
        %v3822 = vmax.f32 %v3809, 0.0
        %v3823 = vmax.f32 %v3810, 0.0
        %v3824 = vmax.f32 %v3811, 0.0
        %v3825 = vmax.f32 %v3812, 0.0
        %v3826 = vmax.f32 %v3813, 0.0
        %v3827 = vmax.f32 %v3814, 0.0
        %v3828 = vmax.f32 %v3815, 0.0
        %v3829 = vld [vmem:[%s0] sm:$0xff]
        %v3830 = vld [vmem:[%s0 + $0x8] sm:$0xff]
        %v3831 = vld [vmem:[%s0 + $0x10] sm:$0xff]
        %v3832 = vld [vmem:[%s0 + $0x18] sm:$0xff]
        %v3833 = vld [vmem:[%s0 + $0x20] sm:$0xff]
        %v3834 = vld [vmem:[%s0 + $0x28] sm:$0xff]
        %v3835 = vld [vmem:[%s0 + $0x30] sm:$0xff]
        %v3836 = vld [vmem:[%s0 + $0x38] sm:$0xff]
        %v3837 = vld [vmem:[%s0 + $0x40] sm:$0xff]
        %v3838 = vld [vmem:[%s0 + $0x48] sm:$0xff]
        %v3839 = vld [vmem:[%s0 + $0x50] sm:$0xff]
        %v3840 = vld [vmem:[%s0 + $0x58] sm:$0xff]
        %v3841 = vld [vmem:[%s0 + $0x60] sm:$0xf]
        %3843 = vset.pattern.permute.xlu0 0
        %3844 = vperm.xlu0 %3843, %v3829
        %v3845 = vpop.permute.xlu0 %3844
        %3848 = vset.pattern.permute.xlu0 0
        %3849 = vperm.xlu0 %3848, %v3830
        %v3850 = vpop.permute.xlu0 %3849
        %3853 = vset.pattern.permute.xlu0 0
        %3854 = vperm.xlu0 %3853, %v3831
        %v3855 = vpop.permute.xlu0 %3854
        %3858 = vset.pattern.permute.xlu0 0
        %3859 = vperm.xlu0 %3858, %v3832
        %v3860 = vpop.permute.xlu0 %3859
        %3863 = vset.pattern.permute.xlu0 0
        %3864 = vperm.xlu0 %3863, %v3833
        %v3865 = vpop.permute.xlu0 %3864
        %3868 = vset.pattern.permute.xlu0 0
        %3869 = vperm.xlu0 %3868, %v3834
        %v3870 = vpop.permute.xlu0 %3869
        %3873 = vset.pattern.permute.xlu0 0
        %3874 = vperm.xlu0 %3873, %v3835
        %v3875 = vpop.permute.xlu0 %3874
        %3878 = vset.pattern.permute.xlu0 0
        %3879 = vperm.xlu0 %3878, %v3836
        %v3880 = vpop.permute.xlu0 %3879
        %3883 = vset.pattern.permute.xlu0 0
        %3884 = vperm.xlu0 %3883, %v3837
        %v3885 = vpop.permute.xlu0 %3884
        %3888 = vset.pattern.permute.xlu0 0
        %3889 = vperm.xlu0 %3888, %v3838
        %v3890 = vpop.permute.xlu0 %3889
        %3893 = vset.pattern.permute.xlu0 0
        %3894 = vperm.xlu0 %3893, %v3839
        %v3895 = vpop.permute.xlu0 %3894
        %3898 = vset.pattern.permute.xlu0 0
        %3899 = vperm.xlu0 %3898, %v3840
        %v3900 = vpop.permute.xlu0 %3899
        %3903 = vset.pattern.permute.xlu0 0
        %3904 = vperm.xlu0 %3903, %v3841
        %v3905 = vpop.permute.xlu0 %3904
        %v3907 = vmul.f32 %v3816, %v3845
        %v3908 = vmul.f32 %v3817, %v3850
        %v3909 = vmul.f32 %v3818, %v3855
        %v3910 = vmul.f32 %v3819, %v3860
        %v3911 = vmul.f32 %v3820, %v3865
        %v3912 = vmul.f32 %v3821, %v3870
        %v3913 = vmul.f32 %v3822, %v3875
        %v3914 = vmul.f32 %v3823, %v3880
        %v3915 = vmul.f32 %v3824, %v3885
        %v3916 = vmul.f32 %v3825, %v3890
        %v3917 = vmul.f32 %v3826, %v3895
        %v3918 = vmul.f32 %v3827, %v3900
        %v3919 = vmul.f32 %v3828, %v3905
        %3920 = vst.msk [vmem:[#allocation2 + $0x10] sm:$0xff] %vm2328, %v3907
        %3921 = vst.msk [vmem:[#allocation2 + $0x18] sm:$0xff] %vm2328, %v3908
        %3922 = vst.msk [vmem:[#allocation2 + $0x20] sm:$0xff] %vm2328, %v3909
        %3923 = vst.msk [vmem:[#allocation2 + $0x28] sm:$0xff] %vm2328, %v3910
        %3924 = vst.msk [vmem:[#allocation2 + $0x30] sm:$0xff] %vm2328, %v3911
        %3925 = vst.msk [vmem:[#allocation2 + $0x38] sm:$0xff] %vm2328, %v3912
        %3926 = vst.msk [vmem:[#allocation2 + $0x40] sm:$0xff] %vm2328, %v3913
        %3927 = vst.msk [vmem:[#allocation2 + $0x48] sm:$0xff] %vm2328, %v3914
        %3928 = vst.msk [vmem:[#allocation2 + $0x50] sm:$0xff] %vm2328, %v3915
        %3929 = vst.msk [vmem:[#allocation2 + $0x58] sm:$0xff] %vm2328, %v3916
        %3930 = vst.msk [vmem:[#allocation2 + $0x60] sm:$0xff] %vm2328, %v3917
        %3931 = vst.msk [vmem:[#allocation2 + $0x68] sm:$0xff] %vm2328, %v3918
        %vm3932 = vcmask 519168
        %3933 = vst.msk [vmem:[#allocation2 + $0x70] sm:$0xf] %vm3932, %v3919
      $region48: #{_lambda_.1} parent=39 // pred_fallthru
        _
      %p3934 = scmp.eq.s32.totalorder %s21, 9
      // Predicated region
      $region49: #{_lambda_.1} parent=39 // pred_check
        %p3935 = pneg %p3934
      $region50: #{_lambda_.1} parent=39 // pred_check_branch
        %3937 = sbr.rel (%p3935) target = $region52
      $region51: #{_lambda_.1} parent=39 // pred_region
        %v3938 = vld [vmem:[#allocation2 + $0x5] sm:$0xff]
        %v3939 = vld [vmem:[#allocation2 + $0xd] sm:$0xff]
        %v3940 = vld [vmem:[#allocation2 + $0x15] sm:$0xff]
        %v3941 = vld [vmem:[#allocation2 + $0x1d] sm:$0xff]
        %v3942 = vld [vmem:[#allocation2 + $0x25] sm:$0xff]
        %v3943 = vld [vmem:[#allocation2 + $0x2d] sm:$0xff]
        %v3944 = vld [vmem:[#allocation2 + $0x35] sm:$0xff]
        %v3945 = vld [vmem:[#allocation2 + $0x3d] sm:$0xff]
        %v3946 = vld [vmem:[#allocation2 + $0x45] sm:$0xff]
        %v3947 = vld [vmem:[#allocation2 + $0x4d] sm:$0xff]
        %v3948 = vld [vmem:[#allocation2 + $0x55] sm:$0xff]
        %v3949 = vld [vmem:[#allocation2 + $0x5d] sm:$0xff]
        %v3950 = vld [vmem:[#allocation2 + $0x65] sm:$0xf]
        %v3951 = vpack.c.bf16 %v3939, %v3938
        %v3952 = vpack.c.bf16 %v3941, %v3940
        %v3953 = vpack.c.bf16 %v3943, %v3942
        %v3954 = vpack.c.bf16 %v3945, %v3944
        %v3955 = vpack.c.bf16 %v3947, %v3946
        %v3956 = vpack.c.bf16 %v3949, %v3948
        %v3957 = vpack.c.bf16 %v3950, %v3950
        %v3958 = vld [vmem:[%s277] sm:$0xf]
        %v3959 = vld [vmem:[%s277 + $0x4] sm:$0xf]
        %v3960 = vld [vmem:[%s277 + $0x8] sm:$0xf]
        %v3961 = vld [vmem:[%s277 + $0xc] sm:$0xf]
        %v3962 = vld [vmem:[%s277 + $0x10] sm:$0xf]
        %v3963 = vld [vmem:[%s277 + $0x14] sm:$0xf]
        %v3964 = vld [vmem:[%s277 + $0x18] sm:$0xf]
        %v3965 = vld [vmem:[%s277 + $0x1c] sm:$0xf]
        %v3966 = vld [vmem:[#allocation2 + $0x6] sm:$0xff]
        %v3967 = vld [vmem:[#allocation2 + $0xe] sm:$0xff]
        %v3968 = vld [vmem:[#allocation2 + $0x16] sm:$0xff]
        %v3969 = vld [vmem:[#allocation2 + $0x1e] sm:$0xff]
        %v3970 = vld [vmem:[#allocation2 + $0x26] sm:$0xff]
        %v3971 = vld [vmem:[#allocation2 + $0x2e] sm:$0xff]
        %v3972 = vld [vmem:[#allocation2 + $0x36] sm:$0xff]
        %v3973 = vld [vmem:[#allocation2 + $0x3e] sm:$0xff]
        %v3974 = vld [vmem:[#allocation2 + $0x46] sm:$0xff]
        %v3975 = vld [vmem:[#allocation2 + $0x4e] sm:$0xff]
        %v3976 = vld [vmem:[#allocation2 + $0x56] sm:$0xff]
        %v3977 = vld [vmem:[#allocation2 + $0x5e] sm:$0xff]
        %v3978 = vld [vmem:[#allocation2 + $0x66] sm:$0xf]
        %v3979 = vpack.c.bf16 %v3967, %v3966
        %v3980 = vpack.c.bf16 %v3969, %v3968
        %v3981 = vpack.c.bf16 %v3971, %v3970
        %v3982 = vpack.c.bf16 %v3973, %v3972
        %v3983 = vpack.c.bf16 %v3975, %v3974
        %v3984 = vpack.c.bf16 %v3977, %v3976
        %v3985 = vpack.c.bf16 %v3978, %v3978
        %s3986 = scalar_lea.vmem %s277, 32
        %v3987 = vld [vmem:[%s3986] sm:$0xf]
        %v3988 = vld [vmem:[%s3986 + $0x4] sm:$0xf]
        %v3989 = vld [vmem:[%s3986 + $0x8] sm:$0xf]
        %v3990 = vld [vmem:[%s3986 + $0xc] sm:$0xf]
        %v3991 = vld [vmem:[%s3986 + $0x10] sm:$0xf]
        %v3992 = vld [vmem:[%s3986 + $0x14] sm:$0xf]
        %v3993 = vld [vmem:[%s3986 + $0x18] sm:$0xf]
        %v3994 = vld [vmem:[%s3986 + $0x1c] sm:$0xf]
        %v4003 = vunpack.c.l.b16 %v3987
        %v4004 = vunpack.c.l.b16 %v3988
        %v4005 = vunpack.c.l.b16 %v3989
        %v4006 = vunpack.c.l.b16 %v3990
        %v4007 = vunpack.c.l.b16 %v3991
        %v4008 = vunpack.c.l.b16 %v3992
        %v4009 = vunpack.c.l.b16 %v3993
        %v4010 = vunpack.c.l.b16 %v3994
        %v4011 = vpack.c.b16 %v4004, %v4003
        %v4012 = vpack.c.b16 %v4006, %v4005
        %v4013 = vpack.c.b16 %v4008, %v4007
        %v4014 = vpack.c.b16 %v4010, %v4009
        %vm4019 = vcmask 523264
        %v4021 = vsel %vm4019, %v3979, 0
        %v4024 = vsel %vm4019, %v3980, 0
        %v4027 = vsel %vm4019, %v3981, 0
        %v4030 = vsel %vm4019, %v3982, 0
        %v4033 = vsel %vm4019, %v3983, 0
        %v4036 = vsel %vm4019, %v3984, 0
        %v4039 = vsel %vm4019, %v3985, 0
        %4041 = vmatprep.subr.bf16.mxu0 0
        %4042 = vmatpush1.bf16.msra.mxu0 %v4011
        %4043 = vmatprep.subr.bf16.mxu0 0
        %4044 = vmatpush1.bf16.msra.mxu0 %v4012
        %4045 = vmatprep.subr.bf16.mxu0 0
        %4046 = vmatpush1.bf16.msra.mxu0 %v4013
        %4047 = vmatprep.subr.bf16.mxu0 0
        %4048 = vmatpush1.bf16.msra.mxu0 %v4014
        %4049 = vmatprep.subr.bf16.mxu0 0
        %4050 = vmatpush1.bf16.msra.mxu0 0
        %4051 = vmatprep.subr.bf16.mxu0 0
        %4052 = vmatpush1.bf16.msra.mxu0 0
        %4053 = vmatprep.subr.bf16.mxu0 0
        %4054 = vmatpush1.bf16.msra.mxu0 0
        %4055 = vmatprep.subr.bf16.mxu0 0
        %4056 = vmatpush1.bf16.msra.mxu0 0
        %4057 = vmatprep.subr.bf16.mxu0 0
        %4058 = vmatpush1.bf16.msra.mxu0 0
        %4059 = vmatprep.subr.bf16.mxu0 0
        %4060 = vmatpush1.bf16.msra.mxu0 0
        %4061 = vmatprep.subr.bf16.mxu0 0
        %4062 = vmatpush1.bf16.msra.mxu0 0
        %4063 = vmatprep.subr.bf16.mxu0 0
        %4064 = vmatpush1.bf16.msra.mxu0 0
        %4065 = vmatprep.subr.bf16.mxu0 0
        %4066 = vmatpush1.bf16.msra.mxu0 0
        %4067 = vmatprep.subr.bf16.mxu0 0
        %4068 = vmatpush1.bf16.msra.mxu0 0
        %4069 = vmatprep.subr.bf16.mxu0 0
        %4070 = vmatpush1.bf16.msra.mxu0 0
        %4071 = vmatprep.subr.bf16.mxu0 0
        %4072 = vmatpush1.bf16.msra.mxu0 0
        %4073 = vmatprep.mubr.bf16.mxu0 0
        %4074 = vmatmul.mubr.bf16.gmra.mrb[0].mxu0 %v4021
        %v4075 = vpop.f32.mrb[0].mxu0
        %v4076 = vadd.f32 0.0, %v4075
        %v4077 = vpop.f32.mrb[0].mxu0
        %v4078 = vpop.f32.mrb[0].mxu0
        %v4079 = vadd.f32 0.0, %v4078
        %v4080 = vpop.f32.mrb[0].mxu0
        %4081 = vmatprep.mubr.bf16.mxu0 0
        %4082 = vmatmul.mubr.bf16.gmra.mrb[0].mxu0 %v4024
        %v4083 = vpop.f32.mrb[0].mxu0
        %v4084 = vadd.f32 0.0, %v4083
        %v4085 = vpop.f32.mrb[0].mxu0
        %v4086 = vpop.f32.mrb[0].mxu0
        %v4087 = vadd.f32 0.0, %v4086
        %v4088 = vpop.f32.mrb[0].mxu0
        %4089 = vmatprep.mubr.bf16.mxu0 0
        %4090 = vmatmul.mubr.bf16.gmra.mrb[0].mxu0 %v4027
        %v4091 = vpop.f32.mrb[0].mxu0
        %v4092 = vadd.f32 0.0, %v4091
        %v4093 = vpop.f32.mrb[0].mxu0
        %v4094 = vpop.f32.mrb[0].mxu0
        %v4095 = vadd.f32 0.0, %v4094
        %v4096 = vpop.f32.mrb[0].mxu0
        %4097 = vmatprep.mubr.bf16.mxu0 0
        %4098 = vmatmul.mubr.bf16.gmra.mrb[0].mxu0 %v4030
        %v4099 = vpop.f32.mrb[0].mxu0
        %v4100 = vadd.f32 0.0, %v4099
        %v4101 = vpop.f32.mrb[0].mxu0
        %v4102 = vpop.f32.mrb[0].mxu0
        %v4103 = vadd.f32 0.0, %v4102
        %v4104 = vpop.f32.mrb[0].mxu0
        %4105 = vmatprep.mubr.bf16.mxu0 0
        %4106 = vmatmul.mubr.bf16.gmra.mrb[0].mxu0 %v4033
        %v4107 = vpop.f32.mrb[0].mxu0
        %v4108 = vadd.f32 0.0, %v4107
        %v4109 = vpop.f32.mrb[0].mxu0
        %v4110 = vpop.f32.mrb[0].mxu0
        %v4111 = vadd.f32 0.0, %v4110
        %v4112 = vpop.f32.mrb[0].mxu0
        %4113 = vmatprep.mubr.bf16.mxu0 0
        %4114 = vmatmul.mubr.bf16.gmra.mrb[0].mxu0 %v4036
        %v4115 = vpop.f32.mrb[0].mxu0
        %v4116 = vadd.f32 0.0, %v4115
        %v4117 = vpop.f32.mrb[0].mxu0
        %v4118 = vpop.f32.mrb[0].mxu0
        %v4119 = vadd.f32 0.0, %v4118
        %v4120 = vpop.f32.mrb[0].mxu0
        %4121 = vmatprep.mubr.bf16.mxu0 0
        %4122 = vmatmul.mubr.bf16.gmra.mrb[0].mxu0 %v4039
        %v4123 = vpop.f32.mrb[0].mxu0
        %v4124 = vadd.f32 0.0, %v4123
        %v4125 = vpop.f32.mrb[0].mxu0
        %v4126 = vpop.f32.mrb[0].mxu0
        %v4127 = vpop.f32.mrb[0].mxu0
        %4128 = vdwg.mxu0
        %v4137 = vunpack.c.l.b16 %v3958
        %v4138 = vunpack.c.l.b16 %v3959
        %v4139 = vunpack.c.l.b16 %v3960
        %v4140 = vunpack.c.l.b16 %v3961
        %v4141 = vunpack.c.l.b16 %v3962
        %v4142 = vunpack.c.l.b16 %v3963
        %v4143 = vunpack.c.l.b16 %v3964
        %v4144 = vunpack.c.l.b16 %v3965
        %v4145 = vpack.c.b16 %v4138, %v4137
        %v4146 = vpack.c.b16 %v4140, %v4139
        %v4147 = vpack.c.b16 %v4142, %v4141
        %v4148 = vpack.c.b16 %v4144, %v4143
        %v4154 = vsel %vm4019, %v3951, 0
        %v4157 = vsel %vm4019, %v3952, 0
        %v4160 = vsel %vm4019, %v3953, 0
        %v4163 = vsel %vm4019, %v3954, 0
        %v4166 = vsel %vm4019, %v3955, 0
        %v4169 = vsel %vm4019, %v3956, 0
        %v4172 = vsel %vm4019, %v3957, 0
        %4174 = vmatprep.subr.bf16.mxu0 0
        %4175 = vmatpush1.bf16.msra.mxu0 %v4145
        %4176 = vmatprep.subr.bf16.mxu0 0
        %4177 = vmatpush1.bf16.msra.mxu0 %v4146
        %4178 = vmatprep.subr.bf16.mxu0 0
        %4179 = vmatpush1.bf16.msra.mxu0 %v4147
        %4180 = vmatprep.subr.bf16.mxu0 0
        %4181 = vmatpush1.bf16.msra.mxu0 %v4148
        %4182 = vmatprep.subr.bf16.mxu0 0
        %4183 = vmatpush1.bf16.msra.mxu0 0
        %4184 = vmatprep.subr.bf16.mxu0 0
        %4185 = vmatpush1.bf16.msra.mxu0 0
        %4186 = vmatprep.subr.bf16.mxu0 0
        %4187 = vmatpush1.bf16.msra.mxu0 0
        %4188 = vmatprep.subr.bf16.mxu0 0
        %4189 = vmatpush1.bf16.msra.mxu0 0
        %4190 = vmatprep.subr.bf16.mxu0 0
        %4191 = vmatpush1.bf16.msra.mxu0 0
        %4192 = vmatprep.subr.bf16.mxu0 0
        %4193 = vmatpush1.bf16.msra.mxu0 0
        %4194 = vmatprep.subr.bf16.mxu0 0
        %4195 = vmatpush1.bf16.msra.mxu0 0
        %4196 = vmatprep.subr.bf16.mxu0 0
        %4197 = vmatpush1.bf16.msra.mxu0 0
        %4198 = vmatprep.subr.bf16.mxu0 0
        %4199 = vmatpush1.bf16.msra.mxu0 0
        %4200 = vmatprep.subr.bf16.mxu0 0
        %4201 = vmatpush1.bf16.msra.mxu0 0
        %4202 = vmatprep.subr.bf16.mxu0 0
        %4203 = vmatpush1.bf16.msra.mxu0 0
        %4204 = vmatprep.subr.bf16.mxu0 0
        %4205 = vmatpush1.bf16.msra.mxu0 0
        %4206 = vmatprep.mubr.bf16.mxu0 0
        %4207 = vmatmul.mubr.bf16.gmra.mrb[0].mxu0 %v4154
        %v4208 = vpop.f32.mrb[0].mxu0
        %v4209 = vadd.f32 %v4076, %v4208
        %v4210 = vpop.f32.mrb[0].mxu0
        %v4211 = vpop.f32.mrb[0].mxu0
        %v4212 = vadd.f32 %v4079, %v4211
        %v4213 = vpop.f32.mrb[0].mxu0
        %4214 = vmatprep.mubr.bf16.mxu0 0
        %4215 = vmatmul.mubr.bf16.gmra.mrb[0].mxu0 %v4157
        %v4216 = vpop.f32.mrb[0].mxu0
        %v4217 = vadd.f32 %v4084, %v4216
        %v4218 = vpop.f32.mrb[0].mxu0
        %v4219 = vpop.f32.mrb[0].mxu0
        %v4220 = vadd.f32 %v4087, %v4219
        %v4221 = vpop.f32.mrb[0].mxu0
        %4222 = vmatprep.mubr.bf16.mxu0 0
        %4223 = vmatmul.mubr.bf16.gmra.mrb[0].mxu0 %v4160
        %v4224 = vpop.f32.mrb[0].mxu0
        %v4225 = vadd.f32 %v4092, %v4224
        %v4226 = vpop.f32.mrb[0].mxu0
        %v4227 = vpop.f32.mrb[0].mxu0
        %v4228 = vadd.f32 %v4095, %v4227
        %v4229 = vpop.f32.mrb[0].mxu0
        %4230 = vmatprep.mubr.bf16.mxu0 0
        %4231 = vmatmul.mubr.bf16.gmra.mrb[0].mxu0 %v4163
        %v4232 = vpop.f32.mrb[0].mxu0
        %v4233 = vadd.f32 %v4100, %v4232
        %v4234 = vpop.f32.mrb[0].mxu0
        %v4235 = vpop.f32.mrb[0].mxu0
        %v4236 = vadd.f32 %v4103, %v4235
        %v4237 = vpop.f32.mrb[0].mxu0
        %4238 = vmatprep.mubr.bf16.mxu0 0
        %4239 = vmatmul.mubr.bf16.gmra.mrb[0].mxu0 %v4166
        %v4240 = vpop.f32.mrb[0].mxu0
        %v4241 = vadd.f32 %v4108, %v4240
        %v4242 = vpop.f32.mrb[0].mxu0
        %v4243 = vpop.f32.mrb[0].mxu0
        %v4244 = vadd.f32 %v4111, %v4243
        %v4245 = vpop.f32.mrb[0].mxu0
        %4246 = vmatprep.mubr.bf16.mxu0 0
        %4247 = vmatmul.mubr.bf16.gmra.mrb[0].mxu0 %v4169
        %v4248 = vpop.f32.mrb[0].mxu0
        %v4249 = vadd.f32 %v4116, %v4248
        %v4250 = vpop.f32.mrb[0].mxu0
        %v4251 = vpop.f32.mrb[0].mxu0
        %v4252 = vadd.f32 %v4119, %v4251
        %v4253 = vpop.f32.mrb[0].mxu0
        %4254 = vmatprep.mubr.bf16.mxu0 0
        %4255 = vmatmul.mubr.bf16.gmra.mrb[0].mxu0 %v4172
        %v4256 = vpop.f32.mrb[0].mxu0
        %v4257 = vadd.f32 %v4124, %v4256
        %v4258 = vpop.f32.mrb[0].mxu0
        %v4259 = vpop.f32.mrb[0].mxu0
        %v4260 = vpop.f32.mrb[0].mxu0
        %4261 = vdwg.mxu0
        %v4262 = vld [vmem:[#allocation2 + $0x7] sm:$0xff]
        %v4263 = vld [vmem:[#allocation2 + $0xf] sm:$0xff]
        %v4264 = vld [vmem:[#allocation2 + $0x17] sm:$0xff]
        %v4265 = vld [vmem:[#allocation2 + $0x1f] sm:$0xff]
        %v4266 = vld [vmem:[#allocation2 + $0x27] sm:$0xff]
        %v4267 = vld [vmem:[#allocation2 + $0x2f] sm:$0xff]
        %v4268 = vld [vmem:[#allocation2 + $0x37] sm:$0xff]
        %v4269 = vld [vmem:[#allocation2 + $0x3f] sm:$0xff]
        %v4270 = vld [vmem:[#allocation2 + $0x47] sm:$0xff]
        %v4271 = vld [vmem:[#allocation2 + $0x4f] sm:$0xff]
        %v4272 = vld [vmem:[#allocation2 + $0x57] sm:$0xff]
        %v4273 = vld [vmem:[#allocation2 + $0x5f] sm:$0xff]
        %v4274 = vld [vmem:[#allocation2 + $0x67] sm:$0xf]
        %v4275 = vpack.c.bf16 %v4263, %v4262
        %v4276 = vpack.c.bf16 %v4265, %v4264
        %v4277 = vpack.c.bf16 %v4267, %v4266
        %v4278 = vpack.c.bf16 %v4269, %v4268
        %v4279 = vpack.c.bf16 %v4271, %v4270
        %v4280 = vpack.c.bf16 %v4273, %v4272
        %v4281 = vpack.c.bf16 %v4274, %v4274
        %s4282 = scalar_lea.vmem %s277, 64
        %v4283 = vld [vmem:[%s4282] sm:$0xf]
        %v4284 = vld [vmem:[%s4282 + $0x4] sm:$0xf]
        %v4285 = vld [vmem:[%s4282 + $0x8] sm:$0xf]
        %v4286 = vld [vmem:[%s4282 + $0xc] sm:$0xf]
        %v4287 = vld [vmem:[%s4282 + $0x10] sm:$0xf]
        %v4288 = vld [vmem:[%s4282 + $0x14] sm:$0xf]
        %v4289 = vld [vmem:[%s4282 + $0x18] sm:$0xf]
        %v4290 = vld [vmem:[%s4282 + $0x1c] sm:$0xf]
        %v4299 = vunpack.c.l.b16 %v4283
        %v4300 = vunpack.c.l.b16 %v4284
        %v4301 = vunpack.c.l.b16 %v4285
        %v4302 = vunpack.c.l.b16 %v4286
        %v4303 = vunpack.c.l.b16 %v4287
        %v4304 = vunpack.c.l.b16 %v4288
        %v4305 = vunpack.c.l.b16 %v4289
        %v4306 = vunpack.c.l.b16 %v4290
        %v4307 = vpack.c.b16 %v4300, %v4299
        %v4308 = vpack.c.b16 %v4302, %v4301
        %v4309 = vpack.c.b16 %v4304, %v4303
        %v4310 = vpack.c.b16 %v4306, %v4305
        %v4316 = vsel %vm4019, %v4275, 0
        %v4319 = vsel %vm4019, %v4276, 0
        %v4322 = vsel %vm4019, %v4277, 0
        %v4325 = vsel %vm4019, %v4278, 0
        %v4328 = vsel %vm4019, %v4279, 0
        %v4331 = vsel %vm4019, %v4280, 0
        %v4334 = vsel %vm4019, %v4281, 0
        %4336 = vmatprep.subr.bf16.mxu0 0
        %4337 = vmatpush1.bf16.msra.mxu0 %v4307
        %4338 = vmatprep.subr.bf16.mxu0 0
        %4339 = vmatpush1.bf16.msra.mxu0 %v4308
        %4340 = vmatprep.subr.bf16.mxu0 0
        %4341 = vmatpush1.bf16.msra.mxu0 %v4309
        %4342 = vmatprep.subr.bf16.mxu0 0
        %4343 = vmatpush1.bf16.msra.mxu0 %v4310
        %4344 = vmatprep.subr.bf16.mxu0 0
        %4345 = vmatpush1.bf16.msra.mxu0 0
        %4346 = vmatprep.subr.bf16.mxu0 0
        %4347 = vmatpush1.bf16.msra.mxu0 0
        %4348 = vmatprep.subr.bf16.mxu0 0
        %4349 = vmatpush1.bf16.msra.mxu0 0
        %4350 = vmatprep.subr.bf16.mxu0 0
        %4351 = vmatpush1.bf16.msra.mxu0 0
        %4352 = vmatprep.subr.bf16.mxu0 0
        %4353 = vmatpush1.bf16.msra.mxu0 0
        %4354 = vmatprep.subr.bf16.mxu0 0
        %4355 = vmatpush1.bf16.msra.mxu0 0
        %4356 = vmatprep.subr.bf16.mxu0 0
        %4357 = vmatpush1.bf16.msra.mxu0 0
        %4358 = vmatprep.subr.bf16.mxu0 0
        %4359 = vmatpush1.bf16.msra.mxu0 0
        %4360 = vmatprep.subr.bf16.mxu0 0
        %4361 = vmatpush1.bf16.msra.mxu0 0
        %4362 = vmatprep.subr.bf16.mxu0 0
        %4363 = vmatpush1.bf16.msra.mxu0 0
        %4364 = vmatprep.subr.bf16.mxu0 0
        %4365 = vmatpush1.bf16.msra.mxu0 0
        %4366 = vmatprep.subr.bf16.mxu0 0
        %4367 = vmatpush1.bf16.msra.mxu0 0
        %4368 = vmatprep.mubr.bf16.mxu0 0
        %4369 = vmatmul.mubr.bf16.gmra.mrb[0].mxu0 %v4316
        %v4370 = vpop.f32.mrb[0].mxu0
        %v4371 = vadd.f32 0.0, %v4370
        %v4372 = vpop.f32.mrb[0].mxu0
        %v4373 = vpop.f32.mrb[0].mxu0
        %v4374 = vadd.f32 0.0, %v4373
        %v4375 = vpop.f32.mrb[0].mxu0
        %4376 = vmatprep.mubr.bf16.mxu0 0
        %4377 = vmatmul.mubr.bf16.gmra.mrb[0].mxu0 %v4319
        %v4378 = vpop.f32.mrb[0].mxu0
        %v4379 = vadd.f32 0.0, %v4378
        %v4380 = vpop.f32.mrb[0].mxu0
        %v4381 = vpop.f32.mrb[0].mxu0
        %v4382 = vadd.f32 0.0, %v4381
        %v4383 = vpop.f32.mrb[0].mxu0
        %4384 = vmatprep.mubr.bf16.mxu0 0
        %4385 = vmatmul.mubr.bf16.gmra.mrb[0].mxu0 %v4322
        %v4386 = vpop.f32.mrb[0].mxu0
        %v4387 = vadd.f32 0.0, %v4386
        %v4388 = vpop.f32.mrb[0].mxu0
        %v4389 = vpop.f32.mrb[0].mxu0
        %v4390 = vadd.f32 0.0, %v4389
        %v4391 = vpop.f32.mrb[0].mxu0
        %4392 = vmatprep.mubr.bf16.mxu0 0
        %4393 = vmatmul.mubr.bf16.gmra.mrb[0].mxu0 %v4325
        %v4394 = vpop.f32.mrb[0].mxu0
        %v4395 = vadd.f32 0.0, %v4394
        %v4396 = vpop.f32.mrb[0].mxu0
        %v4397 = vpop.f32.mrb[0].mxu0
        %v4398 = vadd.f32 0.0, %v4397
        %v4399 = vpop.f32.mrb[0].mxu0
        %4400 = vmatprep.mubr.bf16.mxu0 0
        %4401 = vmatmul.mubr.bf16.gmra.mrb[0].mxu0 %v4328
        %v4402 = vpop.f32.mrb[0].mxu0
        %v4403 = vadd.f32 0.0, %v4402
        %v4404 = vpop.f32.mrb[0].mxu0
        %v4405 = vpop.f32.mrb[0].mxu0
        %v4406 = vadd.f32 0.0, %v4405
        %v4407 = vpop.f32.mrb[0].mxu0
        %4408 = vmatprep.mubr.bf16.mxu0 0
        %4409 = vmatmul.mubr.bf16.gmra.mrb[0].mxu0 %v4331
        %v4410 = vpop.f32.mrb[0].mxu0
        %v4411 = vadd.f32 0.0, %v4410
        %v4412 = vpop.f32.mrb[0].mxu0
        %v4413 = vpop.f32.mrb[0].mxu0
        %v4414 = vadd.f32 0.0, %v4413
        %v4415 = vpop.f32.mrb[0].mxu0
        %4416 = vmatprep.mubr.bf16.mxu0 0
        %4417 = vmatmul.mubr.bf16.gmra.mrb[0].mxu0 %v4334
        %v4418 = vpop.f32.mrb[0].mxu0
        %v4419 = vadd.f32 0.0, %v4418
        %v4420 = vpop.f32.mrb[0].mxu0
        %v4421 = vpop.f32.mrb[0].mxu0
        %v4422 = vpop.f32.mrb[0].mxu0
        %4423 = vdwg.mxu0
        %v4424 = vadd.f32 %v4209, %v4371
        %v4425 = vadd.f32 %v4212, %v4374
        %v4426 = vadd.f32 %v4217, %v4379
        %v4427 = vadd.f32 %v4220, %v4382
        %v4428 = vadd.f32 %v4225, %v4387
        %v4429 = vadd.f32 %v4228, %v4390
        %v4430 = vadd.f32 %v4233, %v4395
        %v4431 = vadd.f32 %v4236, %v4398
        %v4432 = vadd.f32 %v4241, %v4403
        %v4433 = vadd.f32 %v4244, %v4406
        %v4434 = vadd.f32 %v4249, %v4411
        %v4435 = vadd.f32 %v4252, %v4414
        %v4436 = vadd.f32 %v4257, %v4419
        %v4437 = vld [vmem:[#allocation2 + $0xf] sm:$0xff]
        %v4438 = vld [vmem:[#allocation2 + $0x17] sm:$0xff]
        %v4439 = vld [vmem:[#allocation2 + $0x1f] sm:$0xff]
        %v4440 = vld [vmem:[#allocation2 + $0x27] sm:$0xff]
        %v4441 = vld [vmem:[#allocation2 + $0x2f] sm:$0xff]
        %v4442 = vld [vmem:[#allocation2 + $0x37] sm:$0xff]
        %v4443 = vld [vmem:[#allocation2 + $0x3f] sm:$0xff]
        %v4444 = vld [vmem:[#allocation2 + $0x47] sm:$0xff]
        %v4445 = vld [vmem:[#allocation2 + $0x4f] sm:$0xff]
        %v4446 = vld [vmem:[#allocation2 + $0x57] sm:$0xff]
        %v4447 = vld [vmem:[#allocation2 + $0x5f] sm:$0xff]
        %v4448 = vld [vmem:[#allocation2 + $0x67] sm:$0xff]
        %v4449 = vld [vmem:[#allocation2 + $0x6f] sm:$0xf]
        %v4450 = vpack.c.bf16 %v4438, %v4437
        %v4451 = vpack.c.bf16 %v4440, %v4439
        %v4452 = vpack.c.bf16 %v4442, %v4441
        %v4453 = vpack.c.bf16 %v4444, %v4443
        %v4454 = vpack.c.bf16 %v4446, %v4445
        %v4455 = vpack.c.bf16 %v4448, %v4447
        %v4456 = vpack.c.bf16 %v4449, %v4449
        %s4457 = scalar_lea.vmem %s277, 96
        %v4458 = vld [vmem:[%s4457] sm:$0xf]
        %v4459 = vld [vmem:[%s4457 + $0x4] sm:$0xf]
        %v4460 = vld [vmem:[%s4457 + $0x8] sm:$0xf]
        %v4461 = vld [vmem:[%s4457 + $0xc] sm:$0xf]
        %v4462 = vld [vmem:[%s4457 + $0x10] sm:$0xf]
        %v4463 = vld [vmem:[%s4457 + $0x14] sm:$0xf]
        %v4464 = vld [vmem:[%s4457 + $0x18] sm:$0xf]
        %v4465 = vld [vmem:[%s4457 + $0x1c] sm:$0xf]
        %v4474 = vunpack.c.l.b16 %v4458
        %v4475 = vunpack.c.l.b16 %v4459
        %v4476 = vunpack.c.l.b16 %v4460
        %v4477 = vunpack.c.l.b16 %v4461
        %v4478 = vunpack.c.l.b16 %v4462
        %v4479 = vunpack.c.l.b16 %v4463
        %v4480 = vunpack.c.l.b16 %v4464
        %v4481 = vunpack.c.l.b16 %v4465
        %v4482 = vpack.c.b16 %v4475, %v4474
        %v4483 = vpack.c.b16 %v4477, %v4476
        %v4484 = vpack.c.b16 %v4479, %v4478
        %v4485 = vpack.c.b16 %v4481, %v4480
        %v4491 = vsel %vm4019, %v4450, 0
        %v4494 = vsel %vm4019, %v4451, 0
        %v4497 = vsel %vm4019, %v4452, 0
        %v4500 = vsel %vm4019, %v4453, 0
        %v4503 = vsel %vm4019, %v4454, 0
        %v4506 = vsel %vm4019, %v4455, 0
        %v4509 = vsel %vm4019, %v4456, 0
        %4511 = vmatprep.subr.bf16.mxu0 0
        %4512 = vmatpush1.bf16.msra.mxu0 %v4482
        %4513 = vmatprep.subr.bf16.mxu0 0
        %4514 = vmatpush1.bf16.msra.mxu0 %v4483
        %4515 = vmatprep.subr.bf16.mxu0 0
        %4516 = vmatpush1.bf16.msra.mxu0 %v4484
        %4517 = vmatprep.subr.bf16.mxu0 0
        %4518 = vmatpush1.bf16.msra.mxu0 %v4485
        %4519 = vmatprep.subr.bf16.mxu0 0
        %4520 = vmatpush1.bf16.msra.mxu0 0
        %4521 = vmatprep.subr.bf16.mxu0 0
        %4522 = vmatpush1.bf16.msra.mxu0 0
        %4523 = vmatprep.subr.bf16.mxu0 0
        %4524 = vmatpush1.bf16.msra.mxu0 0
        %4525 = vmatprep.subr.bf16.mxu0 0
        %4526 = vmatpush1.bf16.msra.mxu0 0
        %4527 = vmatprep.subr.bf16.mxu0 0
        %4528 = vmatpush1.bf16.msra.mxu0 0
        %4529 = vmatprep.subr.bf16.mxu0 0
        %4530 = vmatpush1.bf16.msra.mxu0 0
        %4531 = vmatprep.subr.bf16.mxu0 0
        %4532 = vmatpush1.bf16.msra.mxu0 0
        %4533 = vmatprep.subr.bf16.mxu0 0
        %4534 = vmatpush1.bf16.msra.mxu0 0
        %4535 = vmatprep.subr.bf16.mxu0 0
        %4536 = vmatpush1.bf16.msra.mxu0 0
        %4537 = vmatprep.subr.bf16.mxu0 0
        %4538 = vmatpush1.bf16.msra.mxu0 0
        %4539 = vmatprep.subr.bf16.mxu0 0
        %4540 = vmatpush1.bf16.msra.mxu0 0
        %4541 = vmatprep.subr.bf16.mxu0 0
        %4542 = vmatpush1.bf16.msra.mxu0 0
        %4543 = vmatprep.mubr.bf16.mxu0 0
        %4544 = vmatmul.mubr.bf16.gmra.mrb[0].mxu0 %v4491
        %v4545 = vpop.f32.mrb[0].mxu0
        %v4546 = vadd.f32 0.0, %v4545
        %v4547 = vpop.f32.mrb[0].mxu0
        %v4548 = vpop.f32.mrb[0].mxu0
        %v4549 = vadd.f32 0.0, %v4548
        %v4550 = vpop.f32.mrb[0].mxu0
        %4551 = vmatprep.mubr.bf16.mxu0 0
        %4552 = vmatmul.mubr.bf16.gmra.mrb[0].mxu0 %v4494
        %v4553 = vpop.f32.mrb[0].mxu0
        %v4554 = vadd.f32 0.0, %v4553
        %v4555 = vpop.f32.mrb[0].mxu0
        %v4556 = vpop.f32.mrb[0].mxu0
        %v4557 = vadd.f32 0.0, %v4556
        %v4558 = vpop.f32.mrb[0].mxu0
        %4559 = vmatprep.mubr.bf16.mxu0 0
        %4560 = vmatmul.mubr.bf16.gmra.mrb[0].mxu0 %v4497
        %v4561 = vpop.f32.mrb[0].mxu0
        %v4562 = vadd.f32 0.0, %v4561
        %v4563 = vpop.f32.mrb[0].mxu0
        %v4564 = vpop.f32.mrb[0].mxu0
        %v4565 = vadd.f32 0.0, %v4564
        %v4566 = vpop.f32.mrb[0].mxu0
        %4567 = vmatprep.mubr.bf16.mxu0 0
        %4568 = vmatmul.mubr.bf16.gmra.mrb[0].mxu0 %v4500
        %v4569 = vpop.f32.mrb[0].mxu0
        %v4570 = vadd.f32 0.0, %v4569
        %v4571 = vpop.f32.mrb[0].mxu0
        %v4572 = vpop.f32.mrb[0].mxu0
        %v4573 = vadd.f32 0.0, %v4572
        %v4574 = vpop.f32.mrb[0].mxu0
        %4575 = vmatprep.mubr.bf16.mxu0 0
        %4576 = vmatmul.mubr.bf16.gmra.mrb[0].mxu0 %v4503
        %v4577 = vpop.f32.mrb[0].mxu0
        %v4578 = vadd.f32 0.0, %v4577
        %v4579 = vpop.f32.mrb[0].mxu0
        %v4580 = vpop.f32.mrb[0].mxu0
        %v4581 = vadd.f32 0.0, %v4580
        %v4582 = vpop.f32.mrb[0].mxu0
        %4583 = vmatprep.mubr.bf16.mxu0 0
        %4584 = vmatmul.mubr.bf16.gmra.mrb[0].mxu0 %v4506
        %v4585 = vpop.f32.mrb[0].mxu0
        %v4586 = vadd.f32 0.0, %v4585
        %v4587 = vpop.f32.mrb[0].mxu0
        %v4588 = vpop.f32.mrb[0].mxu0
        %v4589 = vadd.f32 0.0, %v4588
        %v4590 = vpop.f32.mrb[0].mxu0
        %4591 = vmatprep.mubr.bf16.mxu0 0
        %4592 = vmatmul.mubr.bf16.gmra.mrb[0].mxu0 %v4509
        %v4593 = vpop.f32.mrb[0].mxu0
        %v4594 = vadd.f32 0.0, %v4593
        %v4595 = vpop.f32.mrb[0].mxu0
        %v4596 = vpop.f32.mrb[0].mxu0
        %v4597 = vpop.f32.mrb[0].mxu0
        %4598 = vdwg.mxu0
        %v4599 = vadd.f32 %v4424, %v4546
        %v4600 = vadd.f32 %v4425, %v4549
        %v4601 = vadd.f32 %v4426, %v4554
        %v4602 = vadd.f32 %v4427, %v4557
        %v4603 = vadd.f32 %v4428, %v4562
        %v4604 = vadd.f32 %v4429, %v4565
        %v4605 = vadd.f32 %v4430, %v4570
        %v4606 = vadd.f32 %v4431, %v4573
        %v4607 = vadd.f32 %v4432, %v4578
        %v4608 = vadd.f32 %v4433, %v4581
        %v4609 = vadd.f32 %v4434, %v4586
        %v4610 = vadd.f32 %v4435, %v4589
        %v4611 = vadd.f32 %v4436, %v4594
        %v4612 = vld [vmem:[#allocation2 + $0x10] sm:$0xff]
        %v4613 = vld [vmem:[#allocation2 + $0x18] sm:$0xff]
        %v4614 = vld [vmem:[#allocation2 + $0x20] sm:$0xff]
        %v4615 = vld [vmem:[#allocation2 + $0x28] sm:$0xff]
        %v4616 = vld [vmem:[#allocation2 + $0x30] sm:$0xff]
        %v4617 = vld [vmem:[#allocation2 + $0x38] sm:$0xff]
        %v4618 = vld [vmem:[#allocation2 + $0x40] sm:$0xff]
        %v4619 = vld [vmem:[#allocation2 + $0x48] sm:$0xff]
        %v4620 = vld [vmem:[#allocation2 + $0x50] sm:$0xff]
        %v4621 = vld [vmem:[#allocation2 + $0x58] sm:$0xff]
        %v4622 = vld [vmem:[#allocation2 + $0x60] sm:$0xff]
        %v4623 = vld [vmem:[#allocation2 + $0x68] sm:$0xff]
        %v4624 = vld [vmem:[#allocation2 + $0x70] sm:$0xf]
        %v4625 = vpack.c.bf16 %v4613, %v4612
        %v4626 = vpack.c.bf16 %v4615, %v4614
        %v4627 = vpack.c.bf16 %v4617, %v4616
        %v4628 = vpack.c.bf16 %v4619, %v4618
        %v4629 = vpack.c.bf16 %v4621, %v4620
        %v4630 = vpack.c.bf16 %v4623, %v4622
        %v4631 = vpack.c.bf16 %v4624, %v4624
        %s4632 = scalar_lea.vmem %s277, 128
        %v4633 = vld [vmem:[%s4632] sm:$0xf]
        %v4634 = vld [vmem:[%s4632 + $0x4] sm:$0xf]
        %v4635 = vld [vmem:[%s4632 + $0x8] sm:$0xf]
        %v4636 = vld [vmem:[%s4632 + $0xc] sm:$0xf]
        %v4637 = vld [vmem:[%s4632 + $0x10] sm:$0xf]
        %v4638 = vld [vmem:[%s4632 + $0x14] sm:$0xf]
        %v4639 = vld [vmem:[%s4632 + $0x18] sm:$0xf]
        %v4640 = vld [vmem:[%s4632 + $0x1c] sm:$0xf]
        %v4649 = vunpack.c.l.b16 %v4633
        %v4650 = vunpack.c.l.b16 %v4634
        %v4651 = vunpack.c.l.b16 %v4635
        %v4652 = vunpack.c.l.b16 %v4636
        %v4653 = vunpack.c.l.b16 %v4637
        %v4654 = vunpack.c.l.b16 %v4638
        %v4655 = vunpack.c.l.b16 %v4639
        %v4656 = vunpack.c.l.b16 %v4640
        %v4657 = vpack.c.b16 %v4650, %v4649
        %v4658 = vpack.c.b16 %v4652, %v4651
        %v4659 = vpack.c.b16 %v4654, %v4653
        %v4660 = vpack.c.b16 %v4656, %v4655
        %v4666 = vsel %vm4019, %v4625, 0
        %v4669 = vsel %vm4019, %v4626, 0
        %v4672 = vsel %vm4019, %v4627, 0
        %v4675 = vsel %vm4019, %v4628, 0
        %v4678 = vsel %vm4019, %v4629, 0
        %v4681 = vsel %vm4019, %v4630, 0
        %v4684 = vsel %vm4019, %v4631, 0
        %4686 = vmatprep.subr.bf16.mxu0 0
        %4687 = vmatpush1.bf16.msra.mxu0 %v4657
        %4688 = vmatprep.subr.bf16.mxu0 0
        %4689 = vmatpush1.bf16.msra.mxu0 %v4658
        %4690 = vmatprep.subr.bf16.mxu0 0
        %4691 = vmatpush1.bf16.msra.mxu0 %v4659
        %4692 = vmatprep.subr.bf16.mxu0 0
        %4693 = vmatpush1.bf16.msra.mxu0 %v4660
        %4694 = vmatprep.subr.bf16.mxu0 0
        %4695 = vmatpush1.bf16.msra.mxu0 0
        %4696 = vmatprep.subr.bf16.mxu0 0
        %4697 = vmatpush1.bf16.msra.mxu0 0
        %4698 = vmatprep.subr.bf16.mxu0 0
        %4699 = vmatpush1.bf16.msra.mxu0 0
        %4700 = vmatprep.subr.bf16.mxu0 0
        %4701 = vmatpush1.bf16.msra.mxu0 0
        %4702 = vmatprep.subr.bf16.mxu0 0
        %4703 = vmatpush1.bf16.msra.mxu0 0
        %4704 = vmatprep.subr.bf16.mxu0 0
        %4705 = vmatpush1.bf16.msra.mxu0 0
        %4706 = vmatprep.subr.bf16.mxu0 0
        %4707 = vmatpush1.bf16.msra.mxu0 0
        %4708 = vmatprep.subr.bf16.mxu0 0
        %4709 = vmatpush1.bf16.msra.mxu0 0
        %4710 = vmatprep.subr.bf16.mxu0 0
        %4711 = vmatpush1.bf16.msra.mxu0 0
        %4712 = vmatprep.subr.bf16.mxu0 0
        %4713 = vmatpush1.bf16.msra.mxu0 0
        %4714 = vmatprep.subr.bf16.mxu0 0
        %4715 = vmatpush1.bf16.msra.mxu0 0
        %4716 = vmatprep.subr.bf16.mxu0 0
        %4717 = vmatpush1.bf16.msra.mxu0 0
        %4718 = vmatprep.mubr.bf16.mxu0 0
        %4719 = vmatmul.mubr.bf16.gmra.mrb[0].mxu0 %v4666
        %v4720 = vpop.f32.mrb[0].mxu0
        %v4721 = vadd.f32 0.0, %v4720
        %v4722 = vpop.f32.mrb[0].mxu0
        %v4723 = vpop.f32.mrb[0].mxu0
        %v4724 = vadd.f32 0.0, %v4723
        %v4725 = vpop.f32.mrb[0].mxu0
        %4726 = vmatprep.mubr.bf16.mxu0 0
        %4727 = vmatmul.mubr.bf16.gmra.mrb[0].mxu0 %v4669
        %v4728 = vpop.f32.mrb[0].mxu0
        %v4729 = vadd.f32 0.0, %v4728
        %v4730 = vpop.f32.mrb[0].mxu0
        %v4731 = vpop.f32.mrb[0].mxu0
        %v4732 = vadd.f32 0.0, %v4731
        %v4733 = vpop.f32.mrb[0].mxu0
        %4734 = vmatprep.mubr.bf16.mxu0 0
        %4735 = vmatmul.mubr.bf16.gmra.mrb[0].mxu0 %v4672
        %v4736 = vpop.f32.mrb[0].mxu0
        %v4737 = vadd.f32 0.0, %v4736
        %v4738 = vpop.f32.mrb[0].mxu0
        %v4739 = vpop.f32.mrb[0].mxu0
        %v4740 = vadd.f32 0.0, %v4739
        %v4741 = vpop.f32.mrb[0].mxu0
        %4742 = vmatprep.mubr.bf16.mxu0 0
        %4743 = vmatmul.mubr.bf16.gmra.mrb[0].mxu0 %v4675
        %v4744 = vpop.f32.mrb[0].mxu0
        %v4745 = vadd.f32 0.0, %v4744
        %v4746 = vpop.f32.mrb[0].mxu0
        %v4747 = vpop.f32.mrb[0].mxu0
        %v4748 = vadd.f32 0.0, %v4747
        %v4749 = vpop.f32.mrb[0].mxu0
        %4750 = vmatprep.mubr.bf16.mxu0 0
        %4751 = vmatmul.mubr.bf16.gmra.mrb[0].mxu0 %v4678
        %v4752 = vpop.f32.mrb[0].mxu0
        %v4753 = vadd.f32 0.0, %v4752
        %v4754 = vpop.f32.mrb[0].mxu0
        %v4755 = vpop.f32.mrb[0].mxu0
        %v4756 = vadd.f32 0.0, %v4755
        %v4757 = vpop.f32.mrb[0].mxu0
        %4758 = vmatprep.mubr.bf16.mxu0 0
        %4759 = vmatmul.mubr.bf16.gmra.mrb[0].mxu0 %v4681
        %v4760 = vpop.f32.mrb[0].mxu0
        %v4761 = vadd.f32 0.0, %v4760
        %v4762 = vpop.f32.mrb[0].mxu0
        %v4763 = vpop.f32.mrb[0].mxu0
        %v4764 = vadd.f32 0.0, %v4763
        %v4765 = vpop.f32.mrb[0].mxu0
        %4766 = vmatprep.mubr.bf16.mxu0 0
        %4767 = vmatmul.mubr.bf16.gmra.mrb[0].mxu0 %v4684
        %v4768 = vpop.f32.mrb[0].mxu0
        %v4769 = vadd.f32 0.0, %v4768
        %v4770 = vpop.f32.mrb[0].mxu0
        %v4771 = vpop.f32.mrb[0].mxu0
        %v4772 = vpop.f32.mrb[0].mxu0
        %4773 = vdwg.mxu0
        %v4774 = vadd.f32 %v4599, %v4721
        %v4775 = vadd.f32 %v4600, %v4724
        %v4776 = vadd.f32 %v4601, %v4729
        %v4777 = vadd.f32 %v4602, %v4732
        %v4778 = vadd.f32 %v4603, %v4737
        %v4779 = vadd.f32 %v4604, %v4740
        %v4780 = vadd.f32 %v4605, %v4745
        %v4781 = vadd.f32 %v4606, %v4748
        %v4782 = vadd.f32 %v4607, %v4753
        %v4783 = vadd.f32 %v4608, %v4756
        %v4784 = vadd.f32 %v4609, %v4761
        %v4785 = vadd.f32 %v4610, %v4764
        %v4786 = vadd.f32 %v4611, %v4769
        %v4787 = vld [vmem:[#allocation2 + $0x11] sm:$0xff]
        %v4788 = vld [vmem:[#allocation2 + $0x19] sm:$0xff]
        %v4789 = vld [vmem:[#allocation2 + $0x21] sm:$0xff]
        %v4790 = vld [vmem:[#allocation2 + $0x29] sm:$0xff]
        %v4791 = vld [vmem:[#allocation2 + $0x31] sm:$0xff]
        %v4792 = vld [vmem:[#allocation2 + $0x39] sm:$0xff]
        %v4793 = vld [vmem:[#allocation2 + $0x41] sm:$0xff]
        %v4794 = vld [vmem:[#allocation2 + $0x49] sm:$0xff]
        %v4795 = vld [vmem:[#allocation2 + $0x51] sm:$0xff]
        %v4796 = vld [vmem:[#allocation2 + $0x59] sm:$0xff]
        %v4797 = vld [vmem:[#allocation2 + $0x61] sm:$0xff]
        %v4798 = vld [vmem:[#allocation2 + $0x69] sm:$0xff]
        %v4799 = vld [vmem:[#allocation2 + $0x71] sm:$0xf]
        %v4800 = vpack.c.bf16 %v4788, %v4787
        %v4801 = vpack.c.bf16 %v4790, %v4789
        %v4802 = vpack.c.bf16 %v4792, %v4791
        %v4803 = vpack.c.bf16 %v4794, %v4793
        %v4804 = vpack.c.bf16 %v4796, %v4795
        %v4805 = vpack.c.bf16 %v4798, %v4797
        %v4806 = vpack.c.bf16 %v4799, %v4799
        %s4807 = scalar_lea.vmem %s277, 160
        %v4808 = vld [vmem:[%s4807] sm:$0xf]
        %v4809 = vld [vmem:[%s4807 + $0x4] sm:$0xf]
        %v4810 = vld [vmem:[%s4807 + $0x8] sm:$0xf]
        %v4811 = vld [vmem:[%s4807 + $0xc] sm:$0xf]
        %v4812 = vld [vmem:[%s4807 + $0x10] sm:$0xf]
        %v4813 = vld [vmem:[%s4807 + $0x14] sm:$0xf]
        %v4814 = vld [vmem:[%s4807 + $0x18] sm:$0xf]
        %v4815 = vld [vmem:[%s4807 + $0x1c] sm:$0xf]
        %v4824 = vunpack.c.l.b16 %v4808
        %v4825 = vunpack.c.l.b16 %v4809
        %v4826 = vunpack.c.l.b16 %v4810
        %v4827 = vunpack.c.l.b16 %v4811
        %v4828 = vunpack.c.l.b16 %v4812
        %v4829 = vunpack.c.l.b16 %v4813
        %v4830 = vunpack.c.l.b16 %v4814
        %v4831 = vunpack.c.l.b16 %v4815
        %v4832 = vpack.c.b16 %v4825, %v4824
        %v4833 = vpack.c.b16 %v4827, %v4826
        %v4834 = vpack.c.b16 %v4829, %v4828
        %v4835 = vpack.c.b16 %v4831, %v4830
        %v4841 = vsel %vm4019, %v4800, 0
        %v4844 = vsel %vm4019, %v4801, 0
        %v4847 = vsel %vm4019, %v4802, 0
        %v4850 = vsel %vm4019, %v4803, 0
        %v4853 = vsel %vm4019, %v4804, 0
        %v4856 = vsel %vm4019, %v4805, 0
        %v4859 = vsel %vm4019, %v4806, 0
        %4861 = vmatprep.subr.bf16.mxu0 0
        %4862 = vmatpush1.bf16.msra.mxu0 %v4832
        %4863 = vmatprep.subr.bf16.mxu0 0
        %4864 = vmatpush1.bf16.msra.mxu0 %v4833
        %4865 = vmatprep.subr.bf16.mxu0 0
        %4866 = vmatpush1.bf16.msra.mxu0 %v4834
        %4867 = vmatprep.subr.bf16.mxu0 0
        %4868 = vmatpush1.bf16.msra.mxu0 %v4835
        %4869 = vmatprep.subr.bf16.mxu0 0
        %4870 = vmatpush1.bf16.msra.mxu0 0
        %4871 = vmatprep.subr.bf16.mxu0 0
        %4872 = vmatpush1.bf16.msra.mxu0 0
        %4873 = vmatprep.subr.bf16.mxu0 0
        %4874 = vmatpush1.bf16.msra.mxu0 0
        %4875 = vmatprep.subr.bf16.mxu0 0
        %4876 = vmatpush1.bf16.msra.mxu0 0
        %4877 = vmatprep.subr.bf16.mxu0 0
        %4878 = vmatpush1.bf16.msra.mxu0 0
        %4879 = vmatprep.subr.bf16.mxu0 0
        %4880 = vmatpush1.bf16.msra.mxu0 0
        %4881 = vmatprep.subr.bf16.mxu0 0
        %4882 = vmatpush1.bf16.msra.mxu0 0
        %4883 = vmatprep.subr.bf16.mxu0 0
        %4884 = vmatpush1.bf16.msra.mxu0 0
        %4885 = vmatprep.subr.bf16.mxu0 0
        %4886 = vmatpush1.bf16.msra.mxu0 0
        %4887 = vmatprep.subr.bf16.mxu0 0
        %4888 = vmatpush1.bf16.msra.mxu0 0
        %4889 = vmatprep.subr.bf16.mxu0 0
        %4890 = vmatpush1.bf16.msra.mxu0 0
        %4891 = vmatprep.subr.bf16.mxu0 0
        %4892 = vmatpush1.bf16.msra.mxu0 0
        %4893 = vmatprep.mubr.bf16.mxu0 0
        %4894 = vmatmul.mubr.bf16.gmra.mrb[0].mxu0 %v4841
        %v4895 = vpop.f32.mrb[0].mxu0
        %v4896 = vadd.f32 0.0, %v4895
        %v4897 = vpop.f32.mrb[0].mxu0
        %v4898 = vpop.f32.mrb[0].mxu0
        %v4899 = vadd.f32 0.0, %v4898
        %v4900 = vpop.f32.mrb[0].mxu0
        %4901 = vmatprep.mubr.bf16.mxu0 0
        %4902 = vmatmul.mubr.bf16.gmra.mrb[0].mxu0 %v4844
        %v4903 = vpop.f32.mrb[0].mxu0
        %v4904 = vadd.f32 0.0, %v4903
        %v4905 = vpop.f32.mrb[0].mxu0
        %v4906 = vpop.f32.mrb[0].mxu0
        %v4907 = vadd.f32 0.0, %v4906
        %v4908 = vpop.f32.mrb[0].mxu0
        %4909 = vmatprep.mubr.bf16.mxu0 0
        %4910 = vmatmul.mubr.bf16.gmra.mrb[0].mxu0 %v4847
        %v4911 = vpop.f32.mrb[0].mxu0
        %v4912 = vadd.f32 0.0, %v4911
        %v4913 = vpop.f32.mrb[0].mxu0
        %v4914 = vpop.f32.mrb[0].mxu0
        %v4915 = vadd.f32 0.0, %v4914
        %v4916 = vpop.f32.mrb[0].mxu0
        %4917 = vmatprep.mubr.bf16.mxu0 0
        %4918 = vmatmul.mubr.bf16.gmra.mrb[0].mxu0 %v4850
        %v4919 = vpop.f32.mrb[0].mxu0
        %v4920 = vadd.f32 0.0, %v4919
        %v4921 = vpop.f32.mrb[0].mxu0
        %v4922 = vpop.f32.mrb[0].mxu0
        %v4923 = vadd.f32 0.0, %v4922
        %v4924 = vpop.f32.mrb[0].mxu0
        %4925 = vmatprep.mubr.bf16.mxu0 0
        %4926 = vmatmul.mubr.bf16.gmra.mrb[0].mxu0 %v4853
        %v4927 = vpop.f32.mrb[0].mxu0
        %v4928 = vadd.f32 0.0, %v4927
        %v4929 = vpop.f32.mrb[0].mxu0
        %v4930 = vpop.f32.mrb[0].mxu0
        %v4931 = vadd.f32 0.0, %v4930
        %v4932 = vpop.f32.mrb[0].mxu0
        %4933 = vmatprep.mubr.bf16.mxu0 0
        %4934 = vmatmul.mubr.bf16.gmra.mrb[0].mxu0 %v4856
        %v4935 = vpop.f32.mrb[0].mxu0
        %v4936 = vadd.f32 0.0, %v4935
        %v4937 = vpop.f32.mrb[0].mxu0
        %v4938 = vpop.f32.mrb[0].mxu0
        %v4939 = vadd.f32 0.0, %v4938
        %v4940 = vpop.f32.mrb[0].mxu0
        %4941 = vmatprep.mubr.bf16.mxu0 0
        %4942 = vmatmul.mubr.bf16.gmra.mrb[0].mxu0 %v4859
        %v4943 = vpop.f32.mrb[0].mxu0
        %v4944 = vadd.f32 0.0, %v4943
        %v4945 = vpop.f32.mrb[0].mxu0
        %v4946 = vpop.f32.mrb[0].mxu0
        %v4947 = vpop.f32.mrb[0].mxu0
        %4948 = vdwg.mxu0
        %v4949 = vadd.f32 %v4774, %v4896
        %v4950 = vadd.f32 %v4775, %v4899
        %v4951 = vadd.f32 %v4776, %v4904
        %v4952 = vadd.f32 %v4777, %v4907
        %v4953 = vadd.f32 %v4778, %v4912
        %v4954 = vadd.f32 %v4779, %v4915
        %v4955 = vadd.f32 %v4780, %v4920
        %v4956 = vadd.f32 %v4781, %v4923
        %v4957 = vadd.f32 %v4782, %v4928
        %v4958 = vadd.f32 %v4783, %v4931
        %v4959 = vadd.f32 %v4784, %v4936
        %v4960 = vadd.f32 %v4785, %v4939
        %v4961 = vadd.f32 %v4786, %v4944
        %v4962 = vld [vmem:[#allocation2 + $0x19] sm:$0xff]
        %v4963 = vld [vmem:[#allocation2 + $0x21] sm:$0xff]
        %v4964 = vld [vmem:[#allocation2 + $0x29] sm:$0xff]
        %v4965 = vld [vmem:[#allocation2 + $0x31] sm:$0xff]
        %v4966 = vld [vmem:[#allocation2 + $0x39] sm:$0xff]
        %v4967 = vld [vmem:[#allocation2 + $0x41] sm:$0xff]
        %v4968 = vld [vmem:[#allocation2 + $0x49] sm:$0xff]
        %v4969 = vld [vmem:[#allocation2 + $0x51] sm:$0xff]
        %v4970 = vld [vmem:[#allocation2 + $0x59] sm:$0xff]
        %v4971 = vld [vmem:[#allocation2 + $0x61] sm:$0xff]
        %v4972 = vld [vmem:[#allocation2 + $0x69] sm:$0xff]
        %v4973 = vld [vmem:[#allocation2 + $0x71] sm:$0xff]
        %v4974 = vld [vmem:[#allocation2 + $0x79] sm:$0xf]
        %v4975 = vpack.c.bf16 %v4963, %v4962
        %v4976 = vpack.c.bf16 %v4965, %v4964
        %v4977 = vpack.c.bf16 %v4967, %v4966
        %v4978 = vpack.c.bf16 %v4969, %v4968
        %v4979 = vpack.c.bf16 %v4971, %v4970
        %v4980 = vpack.c.bf16 %v4973, %v4972
        %v4981 = vpack.c.bf16 %v4974, %v4974
        %s4982 = scalar_lea.vmem %s277, 192
        %v4983 = vld [vmem:[%s4982] sm:$0xf]
        %v4984 = vld [vmem:[%s4982 + $0x4] sm:$0xf]
        %v4985 = vld [vmem:[%s4982 + $0x8] sm:$0xf]
        %v4986 = vld [vmem:[%s4982 + $0xc] sm:$0xf]
        %v4987 = vld [vmem:[%s4982 + $0x10] sm:$0xf]
        %v4988 = vld [vmem:[%s4982 + $0x14] sm:$0xf]
        %v4989 = vld [vmem:[%s4982 + $0x18] sm:$0xf]
        %v4990 = vld [vmem:[%s4982 + $0x1c] sm:$0xf]
        %v4999 = vunpack.c.l.b16 %v4983
        %v5000 = vunpack.c.l.b16 %v4984
        %v5001 = vunpack.c.l.b16 %v4985
        %v5002 = vunpack.c.l.b16 %v4986
        %v5003 = vunpack.c.l.b16 %v4987
        %v5004 = vunpack.c.l.b16 %v4988
        %v5005 = vunpack.c.l.b16 %v4989
        %v5006 = vunpack.c.l.b16 %v4990
        %v5007 = vpack.c.b16 %v5000, %v4999
        %v5008 = vpack.c.b16 %v5002, %v5001
        %v5009 = vpack.c.b16 %v5004, %v5003
        %v5010 = vpack.c.b16 %v5006, %v5005
        %v5016 = vsel %vm4019, %v4975, 0
        %v5019 = vsel %vm4019, %v4976, 0
        %v5022 = vsel %vm4019, %v4977, 0
        %v5025 = vsel %vm4019, %v4978, 0
        %v5028 = vsel %vm4019, %v4979, 0
        %v5031 = vsel %vm4019, %v4980, 0
        %v5034 = vsel %vm4019, %v4981, 0
        %5036 = vmatprep.subr.bf16.mxu0 0
        %5037 = vmatpush1.bf16.msra.mxu0 %v5007
        %5038 = vmatprep.subr.bf16.mxu0 0
        %5039 = vmatpush1.bf16.msra.mxu0 %v5008
        %5040 = vmatprep.subr.bf16.mxu0 0
        %5041 = vmatpush1.bf16.msra.mxu0 %v5009
        %5042 = vmatprep.subr.bf16.mxu0 0
        %5043 = vmatpush1.bf16.msra.mxu0 %v5010
        %5044 = vmatprep.subr.bf16.mxu0 0
        %5045 = vmatpush1.bf16.msra.mxu0 0
        %5046 = vmatprep.subr.bf16.mxu0 0
        %5047 = vmatpush1.bf16.msra.mxu0 0
        %5048 = vmatprep.subr.bf16.mxu0 0
        %5049 = vmatpush1.bf16.msra.mxu0 0
        %5050 = vmatprep.subr.bf16.mxu0 0
        %5051 = vmatpush1.bf16.msra.mxu0 0
        %5052 = vmatprep.subr.bf16.mxu0 0
        %5053 = vmatpush1.bf16.msra.mxu0 0
        %5054 = vmatprep.subr.bf16.mxu0 0
        %5055 = vmatpush1.bf16.msra.mxu0 0
        %5056 = vmatprep.subr.bf16.mxu0 0
        %5057 = vmatpush1.bf16.msra.mxu0 0
        %5058 = vmatprep.subr.bf16.mxu0 0
        %5059 = vmatpush1.bf16.msra.mxu0 0
        %5060 = vmatprep.subr.bf16.mxu0 0
        %5061 = vmatpush1.bf16.msra.mxu0 0
        %5062 = vmatprep.subr.bf16.mxu0 0
        %5063 = vmatpush1.bf16.msra.mxu0 0
        %5064 = vmatprep.subr.bf16.mxu0 0
        %5065 = vmatpush1.bf16.msra.mxu0 0
        %5066 = vmatprep.subr.bf16.mxu0 0
        %5067 = vmatpush1.bf16.msra.mxu0 0
        %5068 = vmatprep.mubr.bf16.mxu0 0
        %5069 = vmatmul.mubr.bf16.gmra.mrb[0].mxu0 %v5016
        %v5070 = vpop.f32.mrb[0].mxu0
        %v5071 = vadd.f32 0.0, %v5070
        %v5072 = vpop.f32.mrb[0].mxu0
        %v5073 = vpop.f32.mrb[0].mxu0
        %v5074 = vadd.f32 0.0, %v5073
        %v5075 = vpop.f32.mrb[0].mxu0
        %5076 = vmatprep.mubr.bf16.mxu0 0
        %5077 = vmatmul.mubr.bf16.gmra.mrb[0].mxu0 %v5019
        %v5078 = vpop.f32.mrb[0].mxu0
        %v5079 = vadd.f32 0.0, %v5078
        %v5080 = vpop.f32.mrb[0].mxu0
        %v5081 = vpop.f32.mrb[0].mxu0
        %v5082 = vadd.f32 0.0, %v5081
        %v5083 = vpop.f32.mrb[0].mxu0
        %5084 = vmatprep.mubr.bf16.mxu0 0
        %5085 = vmatmul.mubr.bf16.gmra.mrb[0].mxu0 %v5022
        %v5086 = vpop.f32.mrb[0].mxu0
        %v5087 = vadd.f32 0.0, %v5086
        %v5088 = vpop.f32.mrb[0].mxu0
        %v5089 = vpop.f32.mrb[0].mxu0
        %v5090 = vadd.f32 0.0, %v5089
        %v5091 = vpop.f32.mrb[0].mxu0
        %5092 = vmatprep.mubr.bf16.mxu0 0
        %5093 = vmatmul.mubr.bf16.gmra.mrb[0].mxu0 %v5025
        %v5094 = vpop.f32.mrb[0].mxu0
        %v5095 = vadd.f32 0.0, %v5094
        %v5096 = vpop.f32.mrb[0].mxu0
        %v5097 = vpop.f32.mrb[0].mxu0
        %v5098 = vadd.f32 0.0, %v5097
        %v5099 = vpop.f32.mrb[0].mxu0
        %5100 = vmatprep.mubr.bf16.mxu0 0
        %5101 = vmatmul.mubr.bf16.gmra.mrb[0].mxu0 %v5028
        %v5102 = vpop.f32.mrb[0].mxu0
        %v5103 = vadd.f32 0.0, %v5102
        %v5104 = vpop.f32.mrb[0].mxu0
        %v5105 = vpop.f32.mrb[0].mxu0
        %v5106 = vadd.f32 0.0, %v5105
        %v5107 = vpop.f32.mrb[0].mxu0
        %5108 = vmatprep.mubr.bf16.mxu0 0
        %5109 = vmatmul.mubr.bf16.gmra.mrb[0].mxu0 %v5031
        %v5110 = vpop.f32.mrb[0].mxu0
        %v5111 = vadd.f32 0.0, %v5110
        %v5112 = vpop.f32.mrb[0].mxu0
        %v5113 = vpop.f32.mrb[0].mxu0
        %v5114 = vadd.f32 0.0, %v5113
        %v5115 = vpop.f32.mrb[0].mxu0
        %5116 = vmatprep.mubr.bf16.mxu0 0
        %5117 = vmatmul.mubr.bf16.gmra.mrb[0].mxu0 %v5034
        %v5118 = vpop.f32.mrb[0].mxu0
        %v5119 = vadd.f32 0.0, %v5118
        %v5120 = vpop.f32.mrb[0].mxu0
        %v5121 = vpop.f32.mrb[0].mxu0
        %v5122 = vpop.f32.mrb[0].mxu0
        %5123 = vdwg.mxu0
        %v5124 = vadd.f32 %v4949, %v5071
        %v5125 = vadd.f32 %v4950, %v5074
        %v5126 = vadd.f32 %v4951, %v5079
        %v5127 = vadd.f32 %v4952, %v5082
        %v5128 = vadd.f32 %v4953, %v5087
        %v5129 = vadd.f32 %v4954, %v5090
        %v5130 = vadd.f32 %v4955, %v5095
        %v5131 = vadd.f32 %v4956, %v5098
        %v5132 = vadd.f32 %v4957, %v5103
        %v5133 = vadd.f32 %v4958, %v5106
        %v5134 = vadd.f32 %v4959, %v5111
        %v5135 = vadd.f32 %v4960, %v5114
        %v5136 = vadd.f32 %v4961, %v5119
        %v5137 = vld [vmem:[#allocation2 + $0x1a] sm:$0xff]
        %v5138 = vld [vmem:[#allocation2 + $0x22] sm:$0xff]
        %v5139 = vld [vmem:[#allocation2 + $0x2a] sm:$0xff]
        %v5140 = vld [vmem:[#allocation2 + $0x32] sm:$0xff]
        %v5141 = vld [vmem:[#allocation2 + $0x3a] sm:$0xff]
        %v5142 = vld [vmem:[#allocation2 + $0x42] sm:$0xff]
        %v5143 = vld [vmem:[#allocation2 + $0x4a] sm:$0xff]
        %v5144 = vld [vmem:[#allocation2 + $0x52] sm:$0xff]
        %v5145 = vld [vmem:[#allocation2 + $0x5a] sm:$0xff]
        %v5146 = vld [vmem:[#allocation2 + $0x62] sm:$0xff]
        %v5147 = vld [vmem:[#allocation2 + $0x6a] sm:$0xff]
        %v5148 = vld [vmem:[#allocation2 + $0x72] sm:$0xff]
        %v5149 = vld [vmem:[#allocation2 + $0x7a] sm:$0xf]
        %v5150 = vpack.c.bf16 %v5138, %v5137
        %v5151 = vpack.c.bf16 %v5140, %v5139
        %v5152 = vpack.c.bf16 %v5142, %v5141
        %v5153 = vpack.c.bf16 %v5144, %v5143
        %v5154 = vpack.c.bf16 %v5146, %v5145
        %v5155 = vpack.c.bf16 %v5148, %v5147
        %v5156 = vpack.c.bf16 %v5149, %v5149
        %s5157 = scalar_lea.vmem %s277, 224
        %v5158 = vld [vmem:[%s5157] sm:$0xf]
        %v5159 = vld [vmem:[%s5157 + $0x4] sm:$0xf]
        %v5160 = vld [vmem:[%s5157 + $0x8] sm:$0xf]
        %v5161 = vld [vmem:[%s5157 + $0xc] sm:$0xf]
        %v5162 = vld [vmem:[%s5157 + $0x10] sm:$0xf]
        %v5163 = vld [vmem:[%s5157 + $0x14] sm:$0xf]
        %v5164 = vld [vmem:[%s5157 + $0x18] sm:$0xf]
        %v5165 = vld [vmem:[%s5157 + $0x1c] sm:$0xf]
        %v5174 = vunpack.c.l.b16 %v5158
        %v5175 = vunpack.c.l.b16 %v5159
        %v5176 = vunpack.c.l.b16 %v5160
        %v5177 = vunpack.c.l.b16 %v5161
        %v5178 = vunpack.c.l.b16 %v5162
        %v5179 = vunpack.c.l.b16 %v5163
        %v5180 = vunpack.c.l.b16 %v5164
        %v5181 = vunpack.c.l.b16 %v5165
        %v5182 = vpack.c.b16 %v5175, %v5174
        %v5183 = vpack.c.b16 %v5177, %v5176
        %v5184 = vpack.c.b16 %v5179, %v5178
        %v5185 = vpack.c.b16 %v5181, %v5180
        %v5191 = vsel %vm4019, %v5150, 0
        %v5194 = vsel %vm4019, %v5151, 0
        %v5197 = vsel %vm4019, %v5152, 0
        %v5200 = vsel %vm4019, %v5153, 0
        %v5203 = vsel %vm4019, %v5154, 0
        %v5206 = vsel %vm4019, %v5155, 0
        %v5209 = vsel %vm4019, %v5156, 0
        %5211 = vmatprep.subr.bf16.mxu0 0
        %5212 = vmatpush1.bf16.msra.mxu0 %v5182
        %5213 = vmatprep.subr.bf16.mxu0 0
        %5214 = vmatpush1.bf16.msra.mxu0 %v5183
        %5215 = vmatprep.subr.bf16.mxu0 0
        %5216 = vmatpush1.bf16.msra.mxu0 %v5184
        %5217 = vmatprep.subr.bf16.mxu0 0
        %5218 = vmatpush1.bf16.msra.mxu0 %v5185
        %5219 = vmatprep.subr.bf16.mxu0 0
        %5220 = vmatpush1.bf16.msra.mxu0 0
        %5221 = vmatprep.subr.bf16.mxu0 0
        %5222 = vmatpush1.bf16.msra.mxu0 0
        %5223 = vmatprep.subr.bf16.mxu0 0
        %5224 = vmatpush1.bf16.msra.mxu0 0
        %5225 = vmatprep.subr.bf16.mxu0 0
        %5226 = vmatpush1.bf16.msra.mxu0 0
        %5227 = vmatprep.subr.bf16.mxu0 0
        %5228 = vmatpush1.bf16.msra.mxu0 0
        %5229 = vmatprep.subr.bf16.mxu0 0
        %5230 = vmatpush1.bf16.msra.mxu0 0
        %5231 = vmatprep.subr.bf16.mxu0 0
        %5232 = vmatpush1.bf16.msra.mxu0 0
        %5233 = vmatprep.subr.bf16.mxu0 0
        %5234 = vmatpush1.bf16.msra.mxu0 0
        %5235 = vmatprep.subr.bf16.mxu0 0
        %5236 = vmatpush1.bf16.msra.mxu0 0
        %5237 = vmatprep.subr.bf16.mxu0 0
        %5238 = vmatpush1.bf16.msra.mxu0 0
        %5239 = vmatprep.subr.bf16.mxu0 0
        %5240 = vmatpush1.bf16.msra.mxu0 0
        %5241 = vmatprep.subr.bf16.mxu0 0
        %5242 = vmatpush1.bf16.msra.mxu0 0
        %5243 = vmatprep.mubr.bf16.mxu0 0
        %5244 = vmatmul.mubr.bf16.gmra.mrb[0].mxu0 %v5191
        %v5245 = vpop.f32.mrb[0].mxu0
        %v5246 = vadd.f32 0.0, %v5245
        %v5247 = vpop.f32.mrb[0].mxu0
        %v5248 = vpop.f32.mrb[0].mxu0
        %v5249 = vadd.f32 0.0, %v5248
        %v5250 = vpop.f32.mrb[0].mxu0
        %5251 = vmatprep.mubr.bf16.mxu0 0
        %5252 = vmatmul.mubr.bf16.gmra.mrb[0].mxu0 %v5194
        %v5253 = vpop.f32.mrb[0].mxu0
        %v5254 = vadd.f32 0.0, %v5253
        %v5255 = vpop.f32.mrb[0].mxu0
        %v5256 = vpop.f32.mrb[0].mxu0
        %v5257 = vadd.f32 0.0, %v5256
        %v5258 = vpop.f32.mrb[0].mxu0
        %5259 = vmatprep.mubr.bf16.mxu0 0
        %5260 = vmatmul.mubr.bf16.gmra.mrb[0].mxu0 %v5197
        %v5261 = vpop.f32.mrb[0].mxu0
        %v5262 = vadd.f32 0.0, %v5261
        %v5263 = vpop.f32.mrb[0].mxu0
        %v5264 = vpop.f32.mrb[0].mxu0
        %v5265 = vadd.f32 0.0, %v5264
        %v5266 = vpop.f32.mrb[0].mxu0
        %5267 = vmatprep.mubr.bf16.mxu0 0
        %5268 = vmatmul.mubr.bf16.gmra.mrb[0].mxu0 %v5200
        %v5269 = vpop.f32.mrb[0].mxu0
        %v5270 = vadd.f32 0.0, %v5269
        %v5271 = vpop.f32.mrb[0].mxu0
        %v5272 = vpop.f32.mrb[0].mxu0
        %v5273 = vadd.f32 0.0, %v5272
        %v5274 = vpop.f32.mrb[0].mxu0
        %5275 = vmatprep.mubr.bf16.mxu0 0
        %5276 = vmatmul.mubr.bf16.gmra.mrb[0].mxu0 %v5203
        %v5277 = vpop.f32.mrb[0].mxu0
        %v5278 = vadd.f32 0.0, %v5277
        %v5279 = vpop.f32.mrb[0].mxu0
        %v5280 = vpop.f32.mrb[0].mxu0
        %v5281 = vadd.f32 0.0, %v5280
        %v5282 = vpop.f32.mrb[0].mxu0
        %5283 = vmatprep.mubr.bf16.mxu0 0
        %5284 = vmatmul.mubr.bf16.gmra.mrb[0].mxu0 %v5206
        %v5285 = vpop.f32.mrb[0].mxu0
        %v5286 = vadd.f32 0.0, %v5285
        %v5287 = vpop.f32.mrb[0].mxu0
        %v5288 = vpop.f32.mrb[0].mxu0
        %v5289 = vadd.f32 0.0, %v5288
        %v5290 = vpop.f32.mrb[0].mxu0
        %5291 = vmatprep.mubr.bf16.mxu0 0
        %5292 = vmatmul.mubr.bf16.gmra.mrb[0].mxu0 %v5209
        %v5293 = vpop.f32.mrb[0].mxu0
        %v5294 = vadd.f32 0.0, %v5293
        %v5295 = vpop.f32.mrb[0].mxu0
        %v5296 = vpop.f32.mrb[0].mxu0
        %v5297 = vpop.f32.mrb[0].mxu0
        %5298 = vdwg.mxu0
        %v5299 = vadd.f32 %v5124, %v5246
        %v5300 = vadd.f32 %v5125, %v5249
        %v5301 = vadd.f32 %v5126, %v5254
        %v5302 = vadd.f32 %v5127, %v5257
        %v5303 = vadd.f32 %v5128, %v5262
        %v5304 = vadd.f32 %v5129, %v5265
        %v5305 = vadd.f32 %v5130, %v5270
        %v5306 = vadd.f32 %v5131, %v5273
        %v5307 = vadd.f32 %v5132, %v5278
        %v5308 = vadd.f32 %v5133, %v5281
        %v5309 = vadd.f32 %v5134, %v5286
        %v5310 = vadd.f32 %v5135, %v5289
        %v5311 = vadd.f32 %v5136, %v5294
        %v5312 = vld [vmem:[#allocation2 + $0x1b] sm:$0xff]
        %v5313 = vld [vmem:[#allocation2 + $0x23] sm:$0xff]
        %v5314 = vld [vmem:[#allocation2 + $0x2b] sm:$0xff]
        %v5315 = vld [vmem:[#allocation2 + $0x33] sm:$0xff]
        %v5316 = vld [vmem:[#allocation2 + $0x3b] sm:$0xff]
        %v5317 = vld [vmem:[#allocation2 + $0x43] sm:$0xff]
        %v5318 = vld [vmem:[#allocation2 + $0x4b] sm:$0xff]
        %v5319 = vld [vmem:[#allocation2 + $0x53] sm:$0xff]
        %v5320 = vld [vmem:[#allocation2 + $0x5b] sm:$0xff]
        %v5321 = vld [vmem:[#allocation2 + $0x63] sm:$0xff]
        %v5322 = vld [vmem:[#allocation2 + $0x6b] sm:$0xff]
        %v5323 = vld [vmem:[#allocation2 + $0x73] sm:$0xff]
        %v5324 = vld [vmem:[#allocation2 + $0x7b] sm:$0xf]
        %v5325 = vpack.c.bf16 %v5313, %v5312
        %v5326 = vpack.c.bf16 %v5315, %v5314
        %v5327 = vpack.c.bf16 %v5317, %v5316
        %v5328 = vpack.c.bf16 %v5319, %v5318
        %v5329 = vpack.c.bf16 %v5321, %v5320
        %v5330 = vpack.c.bf16 %v5323, %v5322
        %v5331 = vpack.c.bf16 %v5324, %v5324
        %s5332 = scalar_lea.vmem %s277, 256
        %v5333 = vld [vmem:[%s5332] sm:$0xf]
        %v5334 = vld [vmem:[%s5332 + $0x4] sm:$0xf]
        %v5335 = vld [vmem:[%s5332 + $0x8] sm:$0xf]
        %v5336 = vld [vmem:[%s5332 + $0xc] sm:$0xf]
        %v5337 = vld [vmem:[%s5332 + $0x10] sm:$0xf]
        %v5338 = vld [vmem:[%s5332 + $0x14] sm:$0xf]
        %v5339 = vld [vmem:[%s5332 + $0x18] sm:$0xf]
        %v5340 = vld [vmem:[%s5332 + $0x1c] sm:$0xf]
        %v5349 = vunpack.c.l.b16 %v5333
        %v5350 = vunpack.c.l.b16 %v5334
        %v5351 = vunpack.c.l.b16 %v5335
        %v5352 = vunpack.c.l.b16 %v5336
        %v5353 = vunpack.c.l.b16 %v5337
        %v5354 = vunpack.c.l.b16 %v5338
        %v5355 = vunpack.c.l.b16 %v5339
        %v5356 = vunpack.c.l.b16 %v5340
        %v5357 = vpack.c.b16 %v5350, %v5349
        %v5358 = vpack.c.b16 %v5352, %v5351
        %v5359 = vpack.c.b16 %v5354, %v5353
        %v5360 = vpack.c.b16 %v5356, %v5355
        %v5366 = vsel %vm4019, %v5325, 0
        %v5369 = vsel %vm4019, %v5326, 0
        %v5372 = vsel %vm4019, %v5327, 0
        %v5375 = vsel %vm4019, %v5328, 0
        %v5378 = vsel %vm4019, %v5329, 0
        %v5381 = vsel %vm4019, %v5330, 0
        %v5384 = vsel %vm4019, %v5331, 0
        %5386 = vmatprep.subr.bf16.mxu0 0
        %5387 = vmatpush1.bf16.msra.mxu0 %v5357
        %5388 = vmatprep.subr.bf16.mxu0 0
        %5389 = vmatpush1.bf16.msra.mxu0 %v5358
        %5390 = vmatprep.subr.bf16.mxu0 0
        %5391 = vmatpush1.bf16.msra.mxu0 %v5359
        %5392 = vmatprep.subr.bf16.mxu0 0
        %5393 = vmatpush1.bf16.msra.mxu0 %v5360
        %5394 = vmatprep.subr.bf16.mxu0 0
        %5395 = vmatpush1.bf16.msra.mxu0 0
        %5396 = vmatprep.subr.bf16.mxu0 0
        %5397 = vmatpush1.bf16.msra.mxu0 0
        %5398 = vmatprep.subr.bf16.mxu0 0
        %5399 = vmatpush1.bf16.msra.mxu0 0
        %5400 = vmatprep.subr.bf16.mxu0 0
        %5401 = vmatpush1.bf16.msra.mxu0 0
        %5402 = vmatprep.subr.bf16.mxu0 0
        %5403 = vmatpush1.bf16.msra.mxu0 0
        %5404 = vmatprep.subr.bf16.mxu0 0
        %5405 = vmatpush1.bf16.msra.mxu0 0
        %5406 = vmatprep.subr.bf16.mxu0 0
        %5407 = vmatpush1.bf16.msra.mxu0 0
        %5408 = vmatprep.subr.bf16.mxu0 0
        %5409 = vmatpush1.bf16.msra.mxu0 0
        %5410 = vmatprep.subr.bf16.mxu0 0
        %5411 = vmatpush1.bf16.msra.mxu0 0
        %5412 = vmatprep.subr.bf16.mxu0 0
        %5413 = vmatpush1.bf16.msra.mxu0 0
        %5414 = vmatprep.subr.bf16.mxu0 0
        %5415 = vmatpush1.bf16.msra.mxu0 0
        %5416 = vmatprep.subr.bf16.mxu0 0
        %5417 = vmatpush1.bf16.msra.mxu0 0
        %5418 = vmatprep.mubr.bf16.mxu0 0
        %5419 = vmatmul.mubr.bf16.gmra.mrb[0].mxu0 %v5366
        %v5420 = vpop.f32.mrb[0].mxu0
        %v5421 = vadd.f32 0.0, %v5420
        %v5422 = vpop.f32.mrb[0].mxu0
        %v5423 = vpop.f32.mrb[0].mxu0
        %v5424 = vadd.f32 0.0, %v5423
        %v5425 = vpop.f32.mrb[0].mxu0
        %5426 = vmatprep.mubr.bf16.mxu0 0
        %5427 = vmatmul.mubr.bf16.gmra.mrb[0].mxu0 %v5369
        %v5428 = vpop.f32.mrb[0].mxu0
        %v5429 = vadd.f32 0.0, %v5428
        %v5430 = vpop.f32.mrb[0].mxu0
        %v5431 = vpop.f32.mrb[0].mxu0
        %v5432 = vadd.f32 0.0, %v5431
        %v5433 = vpop.f32.mrb[0].mxu0
        %5434 = vmatprep.mubr.bf16.mxu0 0
        %5435 = vmatmul.mubr.bf16.gmra.mrb[0].mxu0 %v5372
        %v5436 = vpop.f32.mrb[0].mxu0
        %v5437 = vadd.f32 0.0, %v5436
        %v5438 = vpop.f32.mrb[0].mxu0
        %v5439 = vpop.f32.mrb[0].mxu0
        %v5440 = vadd.f32 0.0, %v5439
        %v5441 = vpop.f32.mrb[0].mxu0
        %5442 = vmatprep.mubr.bf16.mxu0 0
        %5443 = vmatmul.mubr.bf16.gmra.mrb[0].mxu0 %v5375
        %v5444 = vpop.f32.mrb[0].mxu0
        %v5445 = vadd.f32 0.0, %v5444
        %v5446 = vpop.f32.mrb[0].mxu0
        %v5447 = vpop.f32.mrb[0].mxu0
        %v5448 = vadd.f32 0.0, %v5447
        %v5449 = vpop.f32.mrb[0].mxu0
        %5450 = vmatprep.mubr.bf16.mxu0 0
        %5451 = vmatmul.mubr.bf16.gmra.mrb[0].mxu0 %v5378
        %v5452 = vpop.f32.mrb[0].mxu0
        %v5453 = vadd.f32 0.0, %v5452
        %v5454 = vpop.f32.mrb[0].mxu0
        %v5455 = vpop.f32.mrb[0].mxu0
        %v5456 = vadd.f32 0.0, %v5455
        %v5457 = vpop.f32.mrb[0].mxu0
        %5458 = vmatprep.mubr.bf16.mxu0 0
        %5459 = vmatmul.mubr.bf16.gmra.mrb[0].mxu0 %v5381
        %v5460 = vpop.f32.mrb[0].mxu0
        %v5461 = vadd.f32 0.0, %v5460
        %v5462 = vpop.f32.mrb[0].mxu0
        %v5463 = vpop.f32.mrb[0].mxu0
        %v5464 = vadd.f32 0.0, %v5463
        %v5465 = vpop.f32.mrb[0].mxu0
        %5466 = vmatprep.mubr.bf16.mxu0 0
        %5467 = vmatmul.mubr.bf16.gmra.mrb[0].mxu0 %v5384
        %v5468 = vpop.f32.mrb[0].mxu0
        %v5469 = vadd.f32 0.0, %v5468
        %v5470 = vpop.f32.mrb[0].mxu0
        %v5471 = vpop.f32.mrb[0].mxu0
        %v5472 = vpop.f32.mrb[0].mxu0
        %5473 = vdwg.mxu0
        %v5474 = vadd.f32 %v5299, %v5421
        %v5475 = vadd.f32 %v5300, %v5424
        %v5476 = vadd.f32 %v5301, %v5429
        %v5477 = vadd.f32 %v5302, %v5432
        %v5478 = vadd.f32 %v5303, %v5437
        %v5479 = vadd.f32 %v5304, %v5440
        %v5480 = vadd.f32 %v5305, %v5445
        %v5481 = vadd.f32 %v5306, %v5448
        %v5482 = vadd.f32 %v5307, %v5453
        %v5483 = vadd.f32 %v5308, %v5456
        %v5484 = vadd.f32 %v5309, %v5461
        %v5485 = vadd.f32 %v5310, %v5464
        %v5486 = vadd.f32 %v5311, %v5469
        %v5487 = vld [vmem:[%s280] sm:$0x1]
        %v5489 = vlaneseq
        %v5490 = vshrl.u32 %v5489, 7
        %v5491 = vsub.s32 0, %v5490
        %v5492 = vrot.slane %v5487, %v5491
        %v5494 = vadd.f32 %v5474, %v5492
        %v5495 = vadd.f32 %v5475, %v5492
        %v5496 = vadd.f32 %v5476, %v5492
        %v5497 = vadd.f32 %v5477, %v5492
        %v5498 = vadd.f32 %v5478, %v5492
        %v5499 = vadd.f32 %v5479, %v5492
        %v5500 = vadd.f32 %v5480, %v5492
        %v5501 = vadd.f32 %v5481, %v5492
        %v5502 = vadd.f32 %v5482, %v5492
        %v5503 = vadd.f32 %v5483, %v5492
        %v5504 = vadd.f32 %v5484, %v5492
        %v5505 = vadd.f32 %v5485, %v5492
        %v5506 = vadd.f32 %v5486, %v5492
        %v5507 = vld [vmem:[%s285] sm:$0xff]
        %v5508 = vld [vmem:[%s285 + $0x8] sm:$0xff]
        %v5509 = vld [vmem:[%s285 + $0x10] sm:$0xff]
        %v5510 = vld [vmem:[%s285 + $0x18] sm:$0xff]
        %v5511 = vld [vmem:[%s285 + $0x20] sm:$0xff]
        %v5512 = vld [vmem:[%s285 + $0x28] sm:$0xff]
        %v5513 = vld [vmem:[%s285 + $0x30] sm:$0xff]
        %v5514 = vld [vmem:[%s285 + $0x38] sm:$0xff]
        %v5515 = vld [vmem:[%s285 + $0x40] sm:$0xff]
        %v5516 = vld [vmem:[%s285 + $0x48] sm:$0xff]
        %v5517 = vld [vmem:[%s285 + $0x50] sm:$0xff]
        %v5518 = vld [vmem:[%s285 + $0x58] sm:$0xff]
        %v5519 = vld [vmem:[%s285 + $0x60] sm:$0xf]
        %v5520 = vadd.f32 %v5494, %v5507
        %v5521 = vadd.f32 %v5495, %v5508
        %v5522 = vadd.f32 %v5496, %v5509
        %v5523 = vadd.f32 %v5497, %v5510
        %v5524 = vadd.f32 %v5498, %v5511
        %v5525 = vadd.f32 %v5499, %v5512
        %v5526 = vadd.f32 %v5500, %v5513
        %v5527 = vadd.f32 %v5501, %v5514
        %v5528 = vadd.f32 %v5502, %v5515
        %v5529 = vadd.f32 %v5503, %v5516
        %v5530 = vadd.f32 %v5504, %v5517
        %v5531 = vadd.f32 %v5505, %v5518
        %v5532 = vadd.f32 %v5506, %v5519
        %v5533 = vmax.f32 %v5520, 0.0
        %v5534 = vmax.f32 %v5521, 0.0
        %v5535 = vmax.f32 %v5522, 0.0
        %v5536 = vmax.f32 %v5523, 0.0
        %v5537 = vmax.f32 %v5524, 0.0
        %v5538 = vmax.f32 %v5525, 0.0
        %v5539 = vmax.f32 %v5526, 0.0
        %v5540 = vmax.f32 %v5527, 0.0
        %v5541 = vmax.f32 %v5528, 0.0
        %v5542 = vmax.f32 %v5529, 0.0
        %v5543 = vmax.f32 %v5530, 0.0
        %v5544 = vmax.f32 %v5531, 0.0
        %v5545 = vmax.f32 %v5532, 0.0
        %5546 = vst [vmem:[%s290] sm:$0xff] %v5533
        %5547 = vst [vmem:[%s290 + $0x8] sm:$0xff] %v5534
        %5548 = vst [vmem:[%s290 + $0x10] sm:$0xff] %v5535
        %5549 = vst [vmem:[%s290 + $0x18] sm:$0xff] %v5536
        %5550 = vst [vmem:[%s290 + $0x20] sm:$0xff] %v5537
        %5551 = vst [vmem:[%s290 + $0x28] sm:$0xff] %v5538
        %5552 = vst [vmem:[%s290 + $0x30] sm:$0xff] %v5539
        %5553 = vst [vmem:[%s290 + $0x38] sm:$0xff] %v5540
        %5554 = vst [vmem:[%s290 + $0x40] sm:$0xff] %v5541
        %5555 = vst [vmem:[%s290 + $0x48] sm:$0xff] %v5542
        %5556 = vst [vmem:[%s290 + $0x50] sm:$0xff] %v5543
        %5557 = vst [vmem:[%s290 + $0x58] sm:$0xff] %v5544
        %5558 = vst [vmem:[%s290 + $0x60] sm:$0xf] %v5545
      $region52: #{_lambda_.1} parent=39 // pred_fallthru
        _
      %p5559 = scmp.lt.s32.totalorder %s20, 1
      %s5560 = scalar_select %p5559, %s20, 1
      %s5561 = smul.addr %s5560, 13
      %s5562 = smul.addr %s5561, 8
      %s5563 = scalar_lea.vmem %s5, %s5562
      // Predicated region
      $region53: #{_lambda_.1} parent=39 // pred_check
        %p5564 = pneg %p171
      $region54: #{_lambda_.1} parent=39 // pred_check_branch
        %5566 = sbr.rel (%p5564) target = $region56
      $region55: #{_lambda_.1} parent=39 // pred_region
        _
      $region56: #{_lambda_.1} parent=39 // pred_fallthru
        _
    $region40: #{_lambda_.1} parent=5 // pred_fallthru
      _
    %p5567 = scmp.le.s32.totalorder 2, %s11
    // Predicated region
    $region57: #{_lambda_.1} parent=5 // pred_check
      %p5568 = pneg %p5567
    $region58: #{_lambda_.1} parent=5 // pred_check_branch
      %5570 = sbr.rel (%p5568) target = $region60
    $region59: #{_lambda_.1} parent=5 // pred_region
      %s5571 = ssub.s32 %s11, 2
      // Predicated region
      $region61: #{_lambda_.1} parent=59 // pred_check
        %p5572 = pneg %p177
      $region62: #{_lambda_.1} parent=59 // pred_check_branch
        %5574 = sbr.rel (%p5572) target = $region64
      $region63: #{_lambda_.1} parent=59 // pred_region
        %p5575 = scmp.lt.s32.totalorder %s22, 1
        %s5576 = scalar_select %p5575, %s22, 1
        %s5577 = smul.addr %s5576, 13
        %s5578 = smul.addr %s5577, 8
        %s5579 = scalar_lea.vmem %s5, %s5578
      $region64: #{_lambda_.1} parent=59 // pred_fallthru
        _
    $region60: #{_lambda_.1} parent=5 // pred_fallthru
      _
  $region6: #{_lambda_.1} parent=0 // loop_footer
    %s15 = sadd.s32 1, %s11
  $region7: #{_lambda_.1} parent=0 // loop_footer_branch
    %10 = sbr.rel target = $region3
  $region8: #{_lambda_.1} parent=0 // loop_exit
    _

</llo_original>
